<compile_context>
chip_gen: v7x
topology: tpu7x:2x2x1
jax: 0.10.0
libtpu: 0.0.40
codegen_flags: <defaults>
</compile_context>

<pallas_src>
import functools
import numpy as np
import jax
import jax.numpy as jnp
from jax.experimental import pallas as pl
from jax.experimental.pallas import tpu as pltpu


def encoder_layer_kernel(x_ref,
                         wq_ref, bq_ref, wk_ref, bk_ref, wv_ref, bv_ref,
                         wfc_ref, bfc_ref, g1_ref, beta1_ref,
                         w1_ref, b1_ref, g2_ref, beta2_ref,
                         o_ref, *,
                         batch_tile, seq_len, d_model, n_head, d_hidden,
                         inv_temperature):
    tb, L, D, dh = batch_tile, seq_len, d_model, d_hidden
    m = tb * L                                            # rows folded into the MXU M dim

    x = x_ref[...]                                        # (M, D) f32 tile (TB batch elems)
    xb = x.astype(jnp.bfloat16)

    # --- QKV projections: single (M, D) @ (D, H*dh) matmuls, bf16 in / f32 accumulate ---
    q = jnp.dot(xb, wq_ref[...], preferred_element_type=jnp.float32) + bq_ref[...]
    k = jnp.dot(xb, wk_ref[...], preferred_element_type=jnp.float32) + bk_ref[...]
    v = jnp.dot(xb, wv_ref[...], preferred_element_type=jnp.float32) + bv_ref[...]
    q = q * inv_temperature        # fold 1/temperature into q (cheaper than scaling LxL scores)

    # per-batch-element views for attention (leading-dim split only; lane dim unchanged)
    q3 = q.reshape(tb, L, n_head * dh)
    k3 = k.reshape(tb, L, n_head * dh)
    v3 = v.reshape(tb, L, n_head * dh)

    # --- per-head attention (static unroll), batched over TB via rank-3 einsums.
    #     The fc projection is folded into the per-head accumulation: no concatenate. ---
    heads_out = jnp.zeros((m, D), jnp.float32)
    for h in range(n_head):
        sl = slice(h * dh, (h + 1) * dh)
        qh = q3[:, :, sl].astype(jnp.bfloat16)            # (TB, L, dh)
        kh = k3[:, :, sl].astype(jnp.bfloat16)
        vh = v3[:, :, sl].astype(jnp.bfloat16)

        s = jnp.einsum("bqd,bkd->bqk", qh, kh,
                       preferred_element_type=jnp.float32)        # (TB, L, L)
        s = s - jnp.max(s, axis=-1, keepdims=True)                # softmax over keys, f32
        p = jnp.exp(s)
        p = p / jnp.sum(p, axis=-1, keepdims=True)                # exact normalization

        ctx = jnp.einsum("bqk,bkd->bqd", p.astype(jnp.bfloat16), vh,
                         preferred_element_type=jnp.float32)      # (TB, L, dh)
        wfc_h = wfc_ref[h * dh:(h + 1) * dh, :]                   # (dh, D) bf16 slice
        heads_out = heads_out + jnp.dot(
            ctx.reshape(m, dh).astype(jnp.bfloat16), wfc_h,
            preferred_element_type=jnp.float32)

    attn_out = heads_out + bfc_ref[...]
    y = attn_out + x                                      # residual (f32)
    mu = jnp.mean(y, axis=-1, keepdims=True)              # LayerNorm 1 (eps = 1e-5)
    var = jnp.mean((y - mu) ** 2, axis=-1, keepdims=True)
    y = (y - mu) * jax.lax.rsqrt(var + 1e-5) * g1_ref[...] + beta1_ref[...]

    # --- position-wise FFN: Conv1d(k=1) == per-position linear, then ReLU ---
    z = jnp.dot(y.astype(jnp.bfloat16), w1_ref[...],
                preferred_element_type=jnp.float32) + b1_ref[...]
    z = jnp.maximum(z, 0.0)
    z = z + y                                             # residual
    mu2 = jnp.mean(z, axis=-1, keepdims=True)             # LayerNorm 2 (eps = 1e-5)
    var2 = jnp.mean((z - mu2) ** 2, axis=-1, keepdims=True)
    z = (z - mu2) * jax.lax.rsqrt(var2 + 1e-5) * g2_ref[...] + beta2_ref[...]

    o_ref[...] = z.astype(o_ref.dtype)


def encoder_layer(x, params, *, n_head, d_hidden, batch_tile=8):
    B, L, D = x.shape
    if B % batch_tile != 0 or ((batch_tile * L) % 8 != 0 and batch_tile != B):
        batch_tile = B                                    # fall back to a single full block
    inv_temp = float(1.0 / np.power(d_hidden, 0.2))

    # Flatten (B, L, D) -> (B*L, D): each grid step gets a (TB*L, D) row slab so the
    # projection/FFN matmuls are fully folded; reshape back outside (free in XLA).
    x_flat = x.reshape(B * L, D)

    # bf16 weight tiles for the MXU (halves weight DMA); biases / LN params stay f32.
    wq = params["wq"].astype(jnp.bfloat16)
    wk = params["wk"].astype(jnp.bfloat16)
    wv = params["wv"].astype(jnp.bfloat16)
    wfc = params["wfc"].astype(jnp.bfloat16)
    w1 = params["w1"].astype(jnp.bfloat16)

    full = lambda a: pl.BlockSpec(a.shape, lambda b: (0, 0))   # weight resident every step
    in_specs = [
        pl.BlockSpec((batch_tile * L, D), lambda b: (b, 0)),   # x row slab
        full(wq), full(params["bq"]),
        full(wk), full(params["bk"]),
        full(wv), full(params["bv"]),
        full(wfc), full(params["bfc"]),
        full(params["g1"]), full(params["beta1"]),
        full(w1), full(params["b1"]),
        full(params["g2"]), full(params["beta2"]),
    ]

    kernel = functools.partial(
        encoder_layer_kernel, batch_tile=batch_tile, seq_len=L, d_model=D,
        n_head=n_head, d_hidden=d_hidden, inv_temperature=inv_temp)

    out_flat = pl.pallas_call(
        kernel,
        out_shape=jax.ShapeDtypeStruct((B * L, D), x.dtype),
        grid_spec=pltpu.PrefetchScalarGridSpec(
            num_scalar_prefetch=0,
            grid=(B // batch_tile,),
            in_specs=in_specs,
            out_specs=pl.BlockSpec((batch_tile * L, D), lambda b: (b, 0)),
        ),
        compiler_params=pltpu.CompilerParams(
            dimension_semantics=("parallel",)),     # >=2 steps -> both v7x TCs busy
    )(x_flat, wq, params["bq"], wk, params["bk"], wv, params["bv"],
      wfc, params["bfc"], params["g1"], params["beta1"],
      w1, params["b1"], params["g2"], params["beta2"])
    return out_flat.reshape(B, L, D)


def make_params(key, d_model, d_hidden, n_head):
    """Deterministic synthetic weights matching the PyTorch module's shapes.
       Linear / Conv1d(k=1) weights are stored transposed: (in_features, out_features)."""
    ks = jax.random.split(key, 8)
    hdh = n_head * d_hidden
    std_qkv = np.sqrt(2.0 / (d_model + d_hidden))
    return {
        "wq": std_qkv * jax.random.normal(ks[0], (d_model, hdh), jnp.float32),
        "wk": std_qkv * jax.random.normal(ks[1], (d_model, hdh), jnp.float32),
        "wv": std_qkv * jax.random.normal(ks[2], (d_model, hdh), jnp.float32),
        "bq": 0.01 * jax.random.normal(ks[3], (1, hdh), jnp.float32),
        "bk": 0.01 * jax.random.normal(ks[4], (1, hdh), jnp.float32),
        "bv": 0.01 * jax.random.normal(ks[5], (1, hdh), jnp.float32),
        "wfc": (np.sqrt(2.0 / (hdh + d_model))
                * jax.random.normal(ks[6], (hdh, d_model), jnp.float32)),
        "bfc": jnp.zeros((1, d_model), jnp.float32),
        "g1": jnp.ones((1, d_model), jnp.float32),
        "beta1": jnp.zeros((1, d_model), jnp.float32),
        "w1": (1.0 / np.sqrt(d_model)
               * jax.random.normal(ks[7], (d_model, d_model), jnp.float32)),
        "b1": jnp.zeros((1, d_model), jnp.float32),
        "g2": jnp.ones((1, d_model), jnp.float32),
        "beta2": jnp.zeros((1, d_model), jnp.float32),
    }


def reference_forward(x, p, n_head, d_hidden, matmul_dtype=jnp.float32):
    """Plain-JAX reference of the PyTorch forward (dropout = identity, mask = None).
       matmul_dtype=bfloat16 mirrors the kernel's numerical policy exactly (bf16 MXU
       inputs, f32 accumulation, 1/temperature folded into q BEFORE the bf16 cast) so
       the primary correctness check is tight.  In f32 the folding is mathematically
       identical to dividing the score matrix, so the same code doubles as the pure-f32
       module reference."""
    B, L, D = x.shape
    inv_temp = float(1.0 / np.power(d_hidden, 0.2))

    def mm(a, b):
        return jnp.dot(a.astype(matmul_dtype), b.astype(matmul_dtype),
                       preferred_element_type=jnp.float32)

    q = (mm(x, p["wq"]) + p["bq"][0]) * inv_temp          # fold 1/temperature (as kernel does)
    k = mm(x, p["wk"]) + p["bk"][0]
    v = mm(x, p["wv"]) + p["bv"][0]

    def split(t):
        return jnp.transpose(t.reshape(B, L, n_head, d_hidden), (2, 0, 1, 3))
    qh, kh, vh = split(q), split(k), split(v)             # (H, B, L, dh)

    attn = jnp.einsum("hbqd,hbkd->hbqk",
                      qh.astype(matmul_dtype), kh.astype(matmul_dtype),
                      preferred_element_type=jnp.float32)
    attn = jax.nn.softmax(attn, axis=-1)
    out = jnp.einsum("hbqk,hbkd->hbqd",
                     attn.astype(matmul_dtype), vh.astype(matmul_dtype),
                     preferred_element_type=jnp.float32)   # (H, B, L, dh)
    out = jnp.transpose(out, (1, 2, 0, 3)).reshape(B, L, n_head * d_hidden)
    out = mm(out, p["wfc"]) + p["bfc"][0]
    y = out + x

    def ln(t, g, b):
        mu = jnp.mean(t, axis=-1, keepdims=True)
        var = jnp.mean((t - mu) ** 2, axis=-1, keepdims=True)
        return (t - mu) * jax.lax.rsqrt(var + 1e-5) * g[0] + b[0]

    y = ln(y, p["g1"], p["beta1"])
    z = jax.nn.relu(mm(y, p["w1"]) + p["b1"][0])
    z = ln(z + y, p["g2"], p["beta2"])
    return z


if __name__ == "__main__":
    # B=16 with batch_tile=8 -> grid of 2 "parallel" steps, 64 rows folded per matmul.
    B, L, d_model, d_hidden, n_head = 16, 8, 32, 16, 2
    key = jax.random.PRNGKey(0)
    kx, kp = jax.random.split(key)
    x = jax.random.normal(kx, (B, L, d_model), jnp.float32)
    params = make_params(kp, d_model, d_hidden, n_head)

    out = encoder_layer(x, params, n_head=n_head, d_hidden=d_hidden, batch_tile=8)
    out = jax.block_until_ready(out)

    # Primary check: reference that mirrors the kernel's bf16 MXU-input policy (tight).
    ref_bf16 = reference_forward(x, params, n_head, d_hidden, matmul_dtype=jnp.bfloat16)
    np.testing.assert_allclose(np.asarray(out), np.asarray(ref_bf16), rtol=2e-2, atol=2e-2)

    # Sanity check: pure-f32 module math; deviation is bounded by bf16 rounding of the
    # MXU inputs (outputs are ~unit-scale after the final LayerNorm).
    ref_f32 = reference_forward(x, params, n_head, d_hidden)
    np.testing.assert_allclose(np.asarray(out), np.asarray(ref_f32), rtol=1e-1, atol=1e-1)

    print("KERNEL_OK")
</pallas_src>

<mosaic_0001>
module attributes {stable_mosaic.version = 11 : i64} {
  func.func @encoder_layer_kernel(%arg0: i32, %arg1: memref<64x32xf32, #tpu.memory_space<vmem>>, %arg2: memref<32x32xbf16, #tpu.memory_space<vmem>>, %arg3: memref<1x32xf32, #tpu.memory_space<vmem>>, %arg4: memref<32x32xbf16, #tpu.memory_space<vmem>>, %arg5: memref<1x32xf32, #tpu.memory_space<vmem>>, %arg6: memref<32x32xbf16, #tpu.memory_space<vmem>>, %arg7: memref<1x32xf32, #tpu.memory_space<vmem>>, %arg8: memref<32x32xbf16, #tpu.memory_space<vmem>>, %arg9: memref<1x32xf32, #tpu.memory_space<vmem>>, %arg10: memref<1x32xf32, #tpu.memory_space<vmem>>, %arg11: memref<1x32xf32, #tpu.memory_space<vmem>>, %arg12: memref<32x32xbf16, #tpu.memory_space<vmem>>, %arg13: memref<1x32xf32, #tpu.memory_space<vmem>>, %arg14: memref<1x32xf32, #tpu.memory_space<vmem>>, %arg15: memref<1x32xf32, #tpu.memory_space<vmem>>, %arg16: memref<64x32xf32, #tpu.memory_space<vmem>>) attributes {dimension_semantics = [#tpu.dimension_semantics<parallel>], iteration_bounds = array<i64: 2>, scalar_prefetch = 0 : i64, scratch_operands = 0 : i64, tpu.core_type = #tpu.core_type<tc>, window_params = [{transform_indices = @transform_0, window_bounds = array<i64: 64, 32>}, {pipeline_mode = #tpu.pipeline_mode<synchronous>, transform_indices = @transform_1, window_bounds = array<i64: 32, 32>}, {pipeline_mode = #tpu.pipeline_mode<synchronous>, transform_indices = @transform_2, window_bounds = array<i64: 1, 32>}, {pipeline_mode = #tpu.pipeline_mode<synchronous>, transform_indices = @transform_3, window_bounds = array<i64: 32, 32>}, {pipeline_mode = #tpu.pipeline_mode<synchronous>, transform_indices = @transform_4, window_bounds = array<i64: 1, 32>}, {pipeline_mode = #tpu.pipeline_mode<synchronous>, transform_indices = @transform_5, window_bounds = array<i64: 32, 32>}, {pipeline_mode = #tpu.pipeline_mode<synchronous>, transform_indices = @transform_6, window_bounds = array<i64: 1, 32>}, {pipeline_mode = #tpu.pipeline_mode<synchronous>, transform_indices = @transform_7, window_bounds = array<i64: 32, 32>}, {pipeline_mode = #tpu.pipeline_mode<synchronous>, transform_indices = @transform_8, window_bounds = array<i64: 1, 32>}, {pipeline_mode = #tpu.pipeline_mode<synchronous>, transform_indices = @transform_9, window_bounds = array<i64: 1, 32>}, {pipeline_mode = #tpu.pipeline_mode<synchronous>, transform_indices = @transform_10, window_bounds = array<i64: 1, 32>}, {pipeline_mode = #tpu.pipeline_mode<synchronous>, transform_indices = @transform_11, window_bounds = array<i64: 32, 32>}, {pipeline_mode = #tpu.pipeline_mode<synchronous>, transform_indices = @transform_12, window_bounds = array<i64: 1, 32>}, {pipeline_mode = #tpu.pipeline_mode<synchronous>, transform_indices = @transform_13, window_bounds = array<i64: 1, 32>}, {pipeline_mode = #tpu.pipeline_mode<synchronous>, transform_indices = @transform_14, window_bounds = array<i64: 1, 32>}, {transform_indices = @transform_15, window_bounds = array<i64: 64, 32>}]} {
    %c0 = arith.constant 0 : index
    %c0_0 = arith.constant 0 : index
    %0 = vector.load %arg1[%c0, %c0_0] : memref<64x32xf32, #tpu.memory_space<vmem>>, vector<64x32xf32>
    %1 = arith.truncf %0 : vector<64x32xf32> to vector<64x32xbf16>
    %c0_1 = arith.constant 0 : index
    %c0_2 = arith.constant 0 : index
    %2 = vector.load %arg2[%c0_1, %c0_2] : memref<32x32xbf16, #tpu.memory_space<vmem>>, vector<32x32xbf16>
    %cst = arith.constant dense<0.000000e+00> : vector<64x32xf32>
    %3 = tpu.matmul %1, %2, %cst {dimension_numbers = #tpu.dot_dimension_numbers<[1], [0], [0], [1], [0, 0, 1, 1], [], []>} : vector<64x32xbf16>, vector<32x32xbf16>, vector<64x32xf32> -> vector<64x32xf32>
    %c0_3 = arith.constant 0 : index
    %c0_4 = arith.constant 0 : index
    %4 = vector.load %arg3[%c0_3, %c0_4] : memref<1x32xf32, #tpu.memory_space<vmem>>, vector<1x32xf32>
    %5 = vector.broadcast %4 : vector<1x32xf32> to vector<64x32xf32>
    %6 = arith.addf %3, %5 : vector<64x32xf32>
    %c0_5 = arith.constant 0 : index
    %c0_6 = arith.constant 0 : index
    %7 = vector.load %arg4[%c0_5, %c0_6] : memref<32x32xbf16, #tpu.memory_space<vmem>>, vector<32x32xbf16>
    %cst_7 = arith.constant dense<0.000000e+00> : vector<64x32xf32>
    %8 = tpu.matmul %1, %7, %cst_7 {dimension_numbers = #tpu.dot_dimension_numbers<[1], [0], [0], [1], [0, 0, 1, 1], [], []>} : vector<64x32xbf16>, vector<32x32xbf16>, vector<64x32xf32> -> vector<64x32xf32>
    %c0_8 = arith.constant 0 : index
    %c0_9 = arith.constant 0 : index
    %9 = vector.load %arg5[%c0_8, %c0_9] : memref<1x32xf32, #tpu.memory_space<vmem>>, vector<1x32xf32>
    %10 = vector.broadcast %9 : vector<1x32xf32> to vector<64x32xf32>
    %11 = arith.addf %8, %10 : vector<64x32xf32>
    %c0_10 = arith.constant 0 : index
    %c0_11 = arith.constant 0 : index
    %12 = vector.load %arg6[%c0_10, %c0_11] : memref<32x32xbf16, #tpu.memory_space<vmem>>, vector<32x32xbf16>
    %cst_12 = arith.constant dense<0.000000e+00> : vector<64x32xf32>
    %13 = tpu.matmul %1, %12, %cst_12 {dimension_numbers = #tpu.dot_dimension_numbers<[1], [0], [0], [1], [0, 0, 1, 1], [], []>} : vector<64x32xbf16>, vector<32x32xbf16>, vector<64x32xf32> -> vector<64x32xf32>
    %c0_13 = arith.constant 0 : index
    %c0_14 = arith.constant 0 : index
    %14 = vector.load %arg7[%c0_13, %c0_14] : memref<1x32xf32, #tpu.memory_space<vmem>>, vector<1x32xf32>
    %15 = vector.broadcast %14 : vector<1x32xf32> to vector<64x32xf32>
    %16 = arith.addf %13, %15 : vector<64x32xf32>
    %cst_15 = arith.constant 0.574349165 : f32
    %17 = vector.broadcast %cst_15 : f32 to vector<64x32xf32>
    %18 = arith.mulf %6, %17 : vector<64x32xf32>
    %19 = vector.shape_cast %18 : vector<64x32xf32> to vector<8x8x32xf32>
    %20 = vector.shape_cast %11 : vector<64x32xf32> to vector<8x8x32xf32>
    %21 = vector.shape_cast %16 : vector<64x32xf32> to vector<8x8x32xf32>
    %cst_16 = arith.constant 0.000000e+00 : f32
    %22 = vector.broadcast %cst_16 : f32 to vector<64x32xf32>
    %23 = vector.extract_strided_slice %19 {offsets = [0, 0, 0], sizes = [8, 8, 16], strides = [1, 1, 1]} : vector<8x8x32xf32> to vector<8x8x16xf32>
    %24 = arith.truncf %23 : vector<8x8x16xf32> to vector<8x8x16xbf16>
    %25 = vector.extract_strided_slice %20 {offsets = [0, 0, 0], sizes = [8, 8, 16], strides = [1, 1, 1]} : vector<8x8x32xf32> to vector<8x8x16xf32>
    %26 = arith.truncf %25 : vector<8x8x16xf32> to vector<8x8x16xbf16>
    %27 = vector.extract_strided_slice %21 {offsets = [0, 0, 0], sizes = [8, 8, 16], strides = [1, 1, 1]} : vector<8x8x32xf32> to vector<8x8x16xf32>
    %28 = arith.truncf %27 : vector<8x8x16xf32> to vector<8x8x16xbf16>
    "tpu.trace_start"() <{level = 10 : i32, message = "bqd,bkd->bqk"}> : () -> ()
    %cst_17 = arith.constant dense<0.000000e+00> : vector<8x8x8xf32>
    %29 = tpu.matmul %24, %26, %cst_17 {dimension_numbers = #tpu.dot_dimension_numbers<[2], [2], [1], [1], [0, 0, 0, 1, 1, 1], [0], [0]>} : vector<8x8x16xbf16>, vector<8x8x16xbf16>, vector<8x8x8xf32> -> vector<8x8x8xf32>
    "tpu.trace_stop"() : () -> ()
    %cst_18 = arith.constant dense<0xFF800000> : vector<8x8xf32>
    %30 = vector.multi_reduction <maximumf>, %29, %cst_18 [2] : vector<8x8x8xf32> to vector<8x8xf32>
    %31 = vector.shape_cast %30 : vector<8x8xf32> to vector<8x8x1xf32>
    %32 = vector.broadcast %31 : vector<8x8x1xf32> to vector<8x8x8xf32>
    %33 = arith.subf %29, %32 : vector<8x8x8xf32>
    %34 = math.exp %33 : vector<8x8x8xf32>
    %cst_19 = arith.constant dense<0.000000e+00> : vector<8x8xf32>
    %35 = vector.multi_reduction <add>, %34, %cst_19 [2] : vector<8x8x8xf32> to vector<8x8xf32>
    %36 = vector.shape_cast %35 : vector<8x8xf32> to vector<8x8x1xf32>
    %37 = vector.broadcast %36 : vector<8x8x1xf32> to vector<8x8x8xf32>
    %38 = arith.divf %34, %37 : vector<8x8x8xf32>
    %39 = arith.truncf %38 : vector<8x8x8xf32> to vector<8x8x8xbf16>
    "tpu.trace_start"() <{level = 10 : i32, message = "bqk,bkd->bqd"}> : () -> ()
    %cst_20 = arith.constant dense<0.000000e+00> : vector<8x8x16xf32>
    %40 = tpu.matmul %39, %28, %cst_20 {dimension_numbers = #tpu.dot_dimension_numbers<[2], [1], [1], [2], [0, 0, 0, 1, 1, 2], [0], [0]>} : vector<8x8x8xbf16>, vector<8x8x16xbf16>, vector<8x8x16xf32> -> vector<8x8x16xf32>
    "tpu.trace_stop"() : () -> ()
    %c0_21 = arith.constant 0 : index
    %c0_22 = arith.constant 0 : index
    %41 = vector.load %arg8[%c0_21, %c0_22] : memref<32x32xbf16, #tpu.memory_space<vmem>>, vector<16x32xbf16>
    %42 = vector.shape_cast %40 : vector<8x8x16xf32> to vector<64x16xf32>
    %43 = arith.truncf %42 : vector<64x16xf32> to vector<64x16xbf16>
    %cst_23 = arith.constant dense<0.000000e+00> : vector<64x32xf32>
    %44 = tpu.matmul %43, %41, %cst_23 {dimension_numbers = #tpu.dot_dimension_numbers<[1], [0], [0], [1], [0, 0, 1, 1], [], []>} : vector<64x16xbf16>, vector<16x32xbf16>, vector<64x32xf32> -> vector<64x32xf32>
    %45 = arith.addf %22, %44 : vector<64x32xf32>
    %46 = vector.extract_strided_slice %19 {offsets = [0, 0, 16], sizes = [8, 8, 16], strides = [1, 1, 1]} : vector<8x8x32xf32> to vector<8x8x16xf32>
    %47 = arith.truncf %46 : vector<8x8x16xf32> to vector<8x8x16xbf16>
    %48 = vector.extract_strided_slice %20 {offsets = [0, 0, 16], sizes = [8, 8, 16], strides = [1, 1, 1]} : vector<8x8x32xf32> to vector<8x8x16xf32>
    %49 = arith.truncf %48 : vector<8x8x16xf32> to vector<8x8x16xbf16>
    %50 = vector.extract_strided_slice %21 {offsets = [0, 0, 16], sizes = [8, 8, 16], strides = [1, 1, 1]} : vector<8x8x32xf32> to vector<8x8x16xf32>
    %51 = arith.truncf %50 : vector<8x8x16xf32> to vector<8x8x16xbf16>
    "tpu.trace_start"() <{level = 10 : i32, message = "bqd,bkd->bqk"}> : () -> ()
    %cst_24 = arith.constant dense<0.000000e+00> : vector<8x8x8xf32>
    %52 = tpu.matmul %47, %49, %cst_24 {dimension_numbers = #tpu.dot_dimension_numbers<[2], [2], [1], [1], [0, 0, 0, 1, 1, 1], [0], [0]>} : vector<8x8x16xbf16>, vector<8x8x16xbf16>, vector<8x8x8xf32> -> vector<8x8x8xf32>
    "tpu.trace_stop"() : () -> ()
    %cst_25 = arith.constant dense<0xFF800000> : vector<8x8xf32>
    %53 = vector.multi_reduction <maximumf>, %52, %cst_25 [2] : vector<8x8x8xf32> to vector<8x8xf32>
    %54 = vector.shape_cast %53 : vector<8x8xf32> to vector<8x8x1xf32>
    %55 = vector.broadcast %54 : vector<8x8x1xf32> to vector<8x8x8xf32>
    %56 = arith.subf %52, %55 : vector<8x8x8xf32>
    %57 = math.exp %56 : vector<8x8x8xf32>
    %cst_26 = arith.constant dense<0.000000e+00> : vector<8x8xf32>
    %58 = vector.multi_reduction <add>, %57, %cst_26 [2] : vector<8x8x8xf32> to vector<8x8xf32>
    %59 = vector.shape_cast %58 : vector<8x8xf32> to vector<8x8x1xf32>
    %60 = vector.broadcast %59 : vector<8x8x1xf32> to vector<8x8x8xf32>
    %61 = arith.divf %57, %60 : vector<8x8x8xf32>
    %62 = arith.truncf %61 : vector<8x8x8xf32> to vector<8x8x8xbf16>
    "tpu.trace_start"() <{level = 10 : i32, message = "bqk,bkd->bqd"}> : () -> ()
    %cst_27 = arith.constant dense<0.000000e+00> : vector<8x8x16xf32>
    %63 = tpu.matmul %62, %51, %cst_27 {dimension_numbers = #tpu.dot_dimension_numbers<[2], [1], [1], [2], [0, 0, 0, 1, 1, 2], [0], [0]>} : vector<8x8x8xbf16>, vector<8x8x16xbf16>, vector<8x8x16xf32> -> vector<8x8x16xf32>
    "tpu.trace_stop"() : () -> ()
    %c16 = arith.constant 16 : index
    %c0_28 = arith.constant 0 : index
    %64 = vector.load %arg8[%c16, %c0_28] : memref<32x32xbf16, #tpu.memory_space<vmem>>, vector<16x32xbf16>
    %65 = vector.shape_cast %63 : vector<8x8x16xf32> to vector<64x16xf32>
    %66 = arith.truncf %65 : vector<64x16xf32> to vector<64x16xbf16>
    %cst_29 = arith.constant dense<0.000000e+00> : vector<64x32xf32>
    %67 = tpu.matmul %66, %64, %cst_29 {dimension_numbers = #tpu.dot_dimension_numbers<[1], [0], [0], [1], [0, 0, 1, 1], [], []>} : vector<64x16xbf16>, vector<16x32xbf16>, vector<64x32xf32> -> vector<64x32xf32>
    %68 = arith.addf %45, %67 : vector<64x32xf32>
    %c0_30 = arith.constant 0 : index
    %c0_31 = arith.constant 0 : index
    %69 = vector.load %arg9[%c0_30, %c0_31] : memref<1x32xf32, #tpu.memory_space<vmem>>, vector<1x32xf32>
    %70 = vector.broadcast %69 : vector<1x32xf32> to vector<64x32xf32>
    %71 = arith.addf %68, %70 : vector<64x32xf32>
    %72 = arith.addf %71, %0 : vector<64x32xf32>
    %cst_32 = arith.constant dense<0.000000e+00> : vector<64xf32>
    %73 = vector.multi_reduction <add>, %72, %cst_32 [1] : vector<64x32xf32> to vector<64xf32>
    %74 = vector.shape_cast %73 : vector<64xf32> to vector<64x1xf32>
    %cst_33 = arith.constant 3.200000e+01 : f32
    %75 = vector.broadcast %cst_33 : f32 to vector<64x1xf32>
    %76 = arith.divf %74, %75 : vector<64x1xf32>
    %77 = vector.broadcast %76 : vector<64x1xf32> to vector<64x32xf32>
    %78 = arith.subf %72, %77 : vector<64x32xf32>
    %79 = arith.mulf %78, %78 : vector<64x32xf32>
    %cst_34 = arith.constant dense<0.000000e+00> : vector<64xf32>
    %80 = vector.multi_reduction <add>, %79, %cst_34 [1] : vector<64x32xf32> to vector<64xf32>
    %81 = vector.shape_cast %80 : vector<64xf32> to vector<64x1xf32>
    %cst_35 = arith.constant 3.200000e+01 : f32
    %82 = vector.broadcast %cst_35 : f32 to vector<64x1xf32>
    %83 = arith.divf %81, %82 : vector<64x1xf32>
    %84 = vector.broadcast %76 : vector<64x1xf32> to vector<64x32xf32>
    %85 = arith.subf %72, %84 : vector<64x32xf32>
    %cst_36 = arith.constant 9.99999974E-6 : f32
    %86 = vector.broadcast %cst_36 : f32 to vector<64x1xf32>
    %87 = arith.addf %83, %86 : vector<64x1xf32>
    %88 = math.rsqrt %87 : vector<64x1xf32>
    %89 = vector.broadcast %88 : vector<64x1xf32> to vector<64x32xf32>
    %90 = arith.mulf %85, %89 : vector<64x32xf32>
    %c0_37 = arith.constant 0 : index
    %c0_38 = arith.constant 0 : index
    %91 = vector.load %arg10[%c0_37, %c0_38] : memref<1x32xf32, #tpu.memory_space<vmem>>, vector<1x32xf32>
    %92 = vector.broadcast %91 : vector<1x32xf32> to vector<64x32xf32>
    %93 = arith.mulf %90, %92 : vector<64x32xf32>
    %c0_39 = arith.constant 0 : index
    %c0_40 = arith.constant 0 : index
    %94 = vector.load %arg11[%c0_39, %c0_40] : memref<1x32xf32, #tpu.memory_space<vmem>>, vector<1x32xf32>
    %95 = vector.broadcast %94 : vector<1x32xf32> to vector<64x32xf32>
    %96 = arith.addf %93, %95 : vector<64x32xf32>
    %97 = arith.truncf %96 : vector<64x32xf32> to vector<64x32xbf16>
    %c0_41 = arith.constant 0 : index
    %c0_42 = arith.constant 0 : index
    %98 = vector.load %arg12[%c0_41, %c0_42] : memref<32x32xbf16, #tpu.memory_space<vmem>>, vector<32x32xbf16>
    %cst_43 = arith.constant dense<0.000000e+00> : vector<64x32xf32>
    %99 = tpu.matmul %97, %98, %cst_43 {dimension_numbers = #tpu.dot_dimension_numbers<[1], [0], [0], [1], [0, 0, 1, 1], [], []>} : vector<64x32xbf16>, vector<32x32xbf16>, vector<64x32xf32> -> vector<64x32xf32>
    %c0_44 = arith.constant 0 : index
    %c0_45 = arith.constant 0 : index
    %100 = vector.load %arg13[%c0_44, %c0_45] : memref<1x32xf32, #tpu.memory_space<vmem>>, vector<1x32xf32>
    %101 = vector.broadcast %100 : vector<1x32xf32> to vector<64x32xf32>
    %102 = arith.addf %99, %101 : vector<64x32xf32>
    %cst_46 = arith.constant 0.000000e+00 : f32
    %103 = vector.broadcast %cst_46 : f32 to vector<64x32xf32>
    %104 = arith.maximumf %102, %103 : vector<64x32xf32>
    %105 = arith.addf %104, %96 : vector<64x32xf32>
    %cst_47 = arith.constant dense<0.000000e+00> : vector<64xf32>
    %106 = vector.multi_reduction <add>, %105, %cst_47 [1] : vector<64x32xf32> to vector<64xf32>
    %107 = vector.shape_cast %106 : vector<64xf32> to vector<64x1xf32>
    %cst_48 = arith.constant 3.200000e+01 : f32
    %108 = vector.broadcast %cst_48 : f32 to vector<64x1xf32>
    %109 = arith.divf %107, %108 : vector<64x1xf32>
    %110 = vector.broadcast %109 : vector<64x1xf32> to vector<64x32xf32>
    %111 = arith.subf %105, %110 : vector<64x32xf32>
    %112 = arith.mulf %111, %111 : vector<64x32xf32>
    %cst_49 = arith.constant dense<0.000000e+00> : vector<64xf32>
    %113 = vector.multi_reduction <add>, %112, %cst_49 [1] : vector<64x32xf32> to vector<64xf32>
    %114 = vector.shape_cast %113 : vector<64xf32> to vector<64x1xf32>
    %cst_50 = arith.constant 3.200000e+01 : f32
    %115 = vector.broadcast %cst_50 : f32 to vector<64x1xf32>
    %116 = arith.divf %114, %115 : vector<64x1xf32>
    %117 = vector.broadcast %109 : vector<64x1xf32> to vector<64x32xf32>
    %118 = arith.subf %105, %117 : vector<64x32xf32>
    %cst_51 = arith.constant 9.99999974E-6 : f32
    %119 = vector.broadcast %cst_51 : f32 to vector<64x1xf32>
    %120 = arith.addf %116, %119 : vector<64x1xf32>
    %121 = math.rsqrt %120 : vector<64x1xf32>
    %122 = vector.broadcast %121 : vector<64x1xf32> to vector<64x32xf32>
    %123 = arith.mulf %118, %122 : vector<64x32xf32>
    %c0_52 = arith.constant 0 : index
    %c0_53 = arith.constant 0 : index
    %124 = vector.load %arg14[%c0_52, %c0_53] : memref<1x32xf32, #tpu.memory_space<vmem>>, vector<1x32xf32>
    %125 = vector.broadcast %124 : vector<1x32xf32> to vector<64x32xf32>
    %126 = arith.mulf %123, %125 : vector<64x32xf32>
    %c0_54 = arith.constant 0 : index
    %c0_55 = arith.constant 0 : index
    %127 = vector.load %arg15[%c0_54, %c0_55] : memref<1x32xf32, #tpu.memory_space<vmem>>, vector<1x32xf32>
    %128 = vector.broadcast %127 : vector<1x32xf32> to vector<64x32xf32>
    %129 = arith.addf %126, %128 : vector<64x32xf32>
    %c0_56 = arith.constant 0 : index
    %c0_57 = arith.constant 0 : index
    %130 = vector.load %arg16[%c0_56, %c0_57] : memref<64x32xf32, #tpu.memory_space<vmem>>, vector<64x32xf32>
    tpu.vector_store %arg16[%c0_56, %c0_57], %129 {strides = array<i32>} : memref<64x32xf32, #tpu.memory_space<vmem>>, vector<64x32xf32>,
    return
  }
  func.func @transform_0(%arg0: i32) -> (i32, i32) {
    %c0_i32 = arith.constant 0 : i32
    %c0_i32_0 = arith.constant 0 : i32
    return %arg0, %c0_i32 : i32, i32
  }
  func.func @transform_1(%arg0: i32) -> (i32, i32) {
    %c0_i32 = arith.constant 0 : i32
    %c0_i32_0 = arith.constant 0 : i32
    %c0_i32_1 = arith.constant 0 : i32
    return %c0_i32, %c0_i32_0 : i32, i32
  }
  func.func @transform_2(%arg0: i32) -> (i32, i32) {
    %c0_i32 = arith.constant 0 : i32
    %c0_i32_0 = arith.constant 0 : i32
    %c0_i32_1 = arith.constant 0 : i32
    return %c0_i32, %c0_i32_0 : i32, i32
  }
  func.func @transform_3(%arg0: i32) -> (i32, i32) {
    %c0_i32 = arith.constant 0 : i32
    %c0_i32_0 = arith.constant 0 : i32
    %c0_i32_1 = arith.constant 0 : i32
    return %c0_i32, %c0_i32_0 : i32, i32
  }
  func.func @transform_4(%arg0: i32) -> (i32, i32) {
    %c0_i32 = arith.constant 0 : i32
    %c0_i32_0 = arith.constant 0 : i32
    %c0_i32_1 = arith.constant 0 : i32
    return %c0_i32, %c0_i32_0 : i32, i32
  }
  func.func @transform_5(%arg0: i32) -> (i32, i32) {
    %c0_i32 = arith.constant 0 : i32
    %c0_i32_0 = arith.constant 0 : i32
    %c0_i32_1 = arith.constant 0 : i32
    return %c0_i32, %c0_i32_0 : i32, i32
  }
  func.func @transform_6(%arg0: i32) -> (i32, i32) {
    %c0_i32 = arith.constant 0 : i32
    %c0_i32_0 = arith.constant 0 : i32
    %c0_i32_1 = arith.constant 0 : i32
    return %c0_i32, %c0_i32_0 : i32, i32
  }
  func.func @transform_7(%arg0: i32) -> (i32, i32) {
    %c0_i32 = arith.constant 0 : i32
    %c0_i32_0 = arith.constant 0 : i32
    %c0_i32_1 = arith.constant 0 : i32
    return %c0_i32, %c0_i32_0 : i32, i32
  }
  func.func @transform_8(%arg0: i32) -> (i32, i32) {
    %c0_i32 = arith.constant 0 : i32
    %c0_i32_0 = arith.constant 0 : i32
    %c0_i32_1 = arith.constant 0 : i32
    return %c0_i32, %c0_i32_0 : i32, i32
  }
  func.func @transform_9(%arg0: i32) -> (i32, i32) {
    %c0_i32 = arith.constant 0 : i32
    %c0_i32_0 = arith.constant 0 : i32
    %c0_i32_1 = arith.constant 0 : i32
    return %c0_i32, %c0_i32_0 : i32, i32
  }
  func.func @transform_10(%arg0: i32) -> (i32, i32) {
    %c0_i32 = arith.constant 0 : i32
    %c0_i32_0 = arith.constant 0 : i32
    %c0_i32_1 = arith.constant 0 : i32
    return %c0_i32, %c0_i32_0 : i32, i32
  }
  func.func @transform_11(%arg0: i32) -> (i32, i32) {
    %c0_i32 = arith.constant 0 : i32
    %c0_i32_0 = arith.constant 0 : i32
    %c0_i32_1 = arith.constant 0 : i32
    return %c0_i32, %c0_i32_0 : i32, i32
  }
  func.func @transform_12(%arg0: i32) -> (i32, i32) {
    %c0_i32 = arith.constant 0 : i32
    %c0_i32_0 = arith.constant 0 : i32
    %c0_i32_1 = arith.constant 0 : i32
    return %c0_i32, %c0_i32_0 : i32, i32
  }
  func.func @transform_13(%arg0: i32) -> (i32, i32) {
    %c0_i32 = arith.constant 0 : i32
    %c0_i32_0 = arith.constant 0 : i32
    %c0_i32_1 = arith.constant 0 : i32
    return %c0_i32, %c0_i32_0 : i32, i32
  }
  func.func @transform_14(%arg0: i32) -> (i32, i32) {
    %c0_i32 = arith.constant 0 : i32
    %c0_i32_0 = arith.constant 0 : i32
    %c0_i32_1 = arith.constant 0 : i32
    return %c0_i32, %c0_i32_0 : i32, i32
  }
  func.func @transform_15(%arg0: i32) -> (i32, i32) {
    %c0_i32 = arith.constant 0 : i32
    %c0_i32_0 = arith.constant 0 : i32
    return %arg0, %c0_i32 : i32, i32
  }
}

</mosaic_0001>

<llo_original>
// kernel: tpu_custom_call.1
$region0: #{tpu_custom_call.1}
  #allocation0 [shape = 'u32[]', space=smem, size = 0x4, offset = 0x4, fixed_abs, tag = 'smem constant byte address 0x4 - core index']
  #allocation1 [shape = 'u32[144,128]{1,0:T(1,128)}', space=vmem, size = 0x12000, scoped, tag = 'internal scratch']
  %s0 = inlined_call_operand.vmem [shape: f32[128,32], index: 0, kind: input, shape index: {}]
  %s1 = inlined_call_operand.vmem [shape: bf16[32,32], index: 1, kind: input, shape index: {}]
  %s2 = inlined_call_operand.vmem [shape: f32[1,32], index: 2, kind: input, shape index: {}]
  %s3 = inlined_call_operand.vmem [shape: bf16[32,32], index: 3, kind: input, shape index: {}]
  %s4 = inlined_call_operand.vmem [shape: f32[1,32], index: 4, kind: input, shape index: {}]
  %s5 = inlined_call_operand.vmem [shape: bf16[32,32], index: 5, kind: input, shape index: {}]
  %s6 = inlined_call_operand.vmem [shape: f32[1,32], index: 6, kind: input, shape index: {}]
  %s7 = inlined_call_operand.vmem [shape: bf16[32,32], index: 7, kind: input, shape index: {}]
  %s8 = inlined_call_operand.vmem [shape: f32[1,32], index: 8, kind: input, shape index: {}]
  %s9 = inlined_call_operand.vmem [shape: f32[1,32], index: 9, kind: input, shape index: {}]
  %s10 = inlined_call_operand.vmem [shape: f32[1,32], index: 10, kind: input, shape index: {}]
  %s11 = inlined_call_operand.vmem [shape: bf16[32,32], index: 11, kind: input, shape index: {}]
  %s12 = inlined_call_operand.vmem [shape: f32[1,32], index: 12, kind: input, shape index: {}]
  %s13 = inlined_call_operand.vmem [shape: f32[1,32], index: 13, kind: input, shape index: {}]
  %s14 = inlined_call_operand.vmem [shape: f32[1,32], index: 14, kind: input, shape index: {}]
  %s15 = inlined_call_operand.vmem [shape: f32[128,32], index: 15, kind: output, shape index: {}]
  %s16 = sld [smem:[#allocation0]]
  $region93: #{tpu_custom_call.1} parent=0
    _
  %s18 = ssub.s32 1, %s16
  %s19 = scalar_select 0, %s18, %s16
  loop: start=0, step=1, limit=4
  $region2: #{tpu_custom_call.1} parent=0 // loop_pre_header
    _
  $region3: #{tpu_custom_call.1} parent=0 // loop_header
    %s21 = sphi 0, %s25
    %p22 = scmp.ge.s32.totalorder %s21, 4
    %s31 = sphi 0, %s33
    %s34 = sphi 0, %s31
    %s35 = sphi 0, %s34
    %s51 = sphi 0, %s35
    %s55 = sphi 0, %s55
    %s57 = sphi 0, %s55
    %s58 = sphi 0, %s57
    %s72 = sphi 0, %s58
    %s76 = sphi 0, %s76
    %s78 = sphi 0, %s76
    %s79 = sphi 0, %s78
    %s93 = sphi 0, %s79
    %s97 = sphi 0, %s97
    %s99 = sphi 0, %s97
    %s100 = sphi 0, %s99
    %s114 = sphi 0, %s100
    %s118 = sphi 0, %s118
    %s120 = sphi 0, %s118
    %s121 = sphi 0, %s120
    %s135 = sphi 0, %s121
    %s139 = sphi 0, %s139
    %s141 = sphi 0, %s139
    %s142 = sphi 0, %s141
    %s156 = sphi 0, %s142
    %s160 = sphi 0, %s160
    %s162 = sphi 0, %s160
    %s163 = sphi 0, %s162
    %s177 = sphi 0, %s163
    %s181 = sphi 0, %s181
    %s183 = sphi 0, %s181
    %s184 = sphi 0, %s183
    %s198 = sphi 0, %s184
    %s202 = sphi 0, %s202
    %s204 = sphi 0, %s202
    %s205 = sphi 0, %s204
    %s219 = sphi 0, %s205
    %s223 = sphi 0, %s223
    %s225 = sphi 0, %s223
    %s226 = sphi 0, %s225
    %s240 = sphi 0, %s226
    %s244 = sphi 0, %s244
    %s246 = sphi 0, %s244
    %s247 = sphi 0, %s246
    %s261 = sphi 0, %s247
    %s265 = sphi 0, %s265
    %s267 = sphi 0, %s265
    %s268 = sphi 0, %s267
    %s282 = sphi 0, %s268
    %s286 = sphi 0, %s286
    %s288 = sphi 0, %s286
    %s289 = sphi 0, %s288
    %s303 = sphi 0, %s289
    %s307 = sphi 0, %s307
    %s309 = sphi 0, %s307
    %s310 = sphi 0, %s309
    %s324 = sphi 0, %s310
    %s328 = sphi 0, %s328
    %s330 = sphi 0, %s328
    %s331 = sphi 0, %s330
    %s345 = sphi 0, %s331
    %s351 = sphi 0, %s353
    %s354 = sphi 0, %s351
    %s355 = sphi 0, %s354
    %s371 = sphi 0, %s355
  $region4: #{tpu_custom_call.1} parent=0 // loop_header_branch
    %24 = sbr.rel (%p22) target = $region8
  $region5: #{tpu_custom_call.1} parent=0 // loop_body
    %s26 = ssub.s32 %s21, 1
    %s27 = ssub.s32 %s21, 2
    %s28 = sadd.s32 %s21, 1
    %s29 = ssub.s32 %s21, %s28
    %p30 = scmp.eq.s32.totalorder %s29, 0
    %s32 = sadd.s32 %s31, 1
    %s33 = scalar_select %p30, %s31, %s32
    %p36 = pneg %p30
    %p37 = scmp.eq.s32.totalorder %s21, 1
    %p38 = por %p36, %p37
    %p39 = scmp.ne.s32.totalorder %s31, %s34
    %p40 = scmp.eq.s32.totalorder %s21, 0
    %p41 = por %p39, %p40
    %p42 = scmp.ne.s32.totalorder %s31, %s34
    %p43 = scmp.eq.s32.totalorder %s26, 1
    %p44 = por %p42, %p43
    %p45 = scmp.ne.s32.totalorder %s34, %s35
    %p46 = scmp.eq.s32.totalorder %s26, 0
    %p47 = por %p45, %p46
    %p48 = scmp.ne.s32.totalorder %s34, %s35
    %p49 = scmp.eq.s32.totalorder %s27, 1
    %p50 = por %p48, %p49
    %p52 = scmp.ne.s32.totalorder %s35, %s51
    %p53 = scmp.eq.s32.totalorder %s27, 0
    %p54 = por %p52, %p53
    %s56 = sadd.s32 %s55, 1
    %p59 = scmp.eq.s32.totalorder %s21, 1
    %p60 = scmp.ne.s32.totalorder %s55, %s57
    %p61 = scmp.eq.s32.totalorder %s21, 0
    %p62 = por %p60, %p61
    %p63 = scmp.ne.s32.totalorder %s55, %s57
    %p64 = scmp.eq.s32.totalorder %s26, 1
    %p65 = por %p63, %p64
    %p66 = scmp.ne.s32.totalorder %s57, %s58
    %p67 = scmp.eq.s32.totalorder %s26, 0
    %p68 = por %p66, %p67
    %p69 = scmp.ne.s32.totalorder %s57, %s58
    %p70 = scmp.eq.s32.totalorder %s27, 1
    %p71 = por %p69, %p70
    %p73 = scmp.ne.s32.totalorder %s58, %s72
    %p74 = scmp.eq.s32.totalorder %s27, 0
    %p75 = por %p73, %p74
    %s77 = sadd.s32 %s76, 1
    %p80 = scmp.eq.s32.totalorder %s21, 1
    %p81 = scmp.ne.s32.totalorder %s76, %s78
    %p82 = scmp.eq.s32.totalorder %s21, 0
    %p83 = por %p81, %p82
    %p84 = scmp.ne.s32.totalorder %s76, %s78
    %p85 = scmp.eq.s32.totalorder %s26, 1
    %p86 = por %p84, %p85
    %p87 = scmp.ne.s32.totalorder %s78, %s79
    %p88 = scmp.eq.s32.totalorder %s26, 0
    %p89 = por %p87, %p88
    %p90 = scmp.ne.s32.totalorder %s78, %s79
    %p91 = scmp.eq.s32.totalorder %s27, 1
    %p92 = por %p90, %p91
    %p94 = scmp.ne.s32.totalorder %s79, %s93
    %p95 = scmp.eq.s32.totalorder %s27, 0
    %p96 = por %p94, %p95
    %s98 = sadd.s32 %s97, 1
    %p101 = scmp.eq.s32.totalorder %s21, 1
    %p102 = scmp.ne.s32.totalorder %s97, %s99
    %p103 = scmp.eq.s32.totalorder %s21, 0
    %p104 = por %p102, %p103
    %p105 = scmp.ne.s32.totalorder %s97, %s99
    %p106 = scmp.eq.s32.totalorder %s26, 1
    %p107 = por %p105, %p106
    %p108 = scmp.ne.s32.totalorder %s99, %s100
    %p109 = scmp.eq.s32.totalorder %s26, 0
    %p110 = por %p108, %p109
    %p111 = scmp.ne.s32.totalorder %s99, %s100
    %p112 = scmp.eq.s32.totalorder %s27, 1
    %p113 = por %p111, %p112
    %p115 = scmp.ne.s32.totalorder %s100, %s114
    %p116 = scmp.eq.s32.totalorder %s27, 0
    %p117 = por %p115, %p116
    %s119 = sadd.s32 %s118, 1
    %p122 = scmp.eq.s32.totalorder %s21, 1
    %p123 = scmp.ne.s32.totalorder %s118, %s120
    %p124 = scmp.eq.s32.totalorder %s21, 0
    %p125 = por %p123, %p124
    %p126 = scmp.ne.s32.totalorder %s118, %s120
    %p127 = scmp.eq.s32.totalorder %s26, 1
    %p128 = por %p126, %p127
    %p129 = scmp.ne.s32.totalorder %s120, %s121
    %p130 = scmp.eq.s32.totalorder %s26, 0
    %p131 = por %p129, %p130
    %p132 = scmp.ne.s32.totalorder %s120, %s121
    %p133 = scmp.eq.s32.totalorder %s27, 1
    %p134 = por %p132, %p133
    %p136 = scmp.ne.s32.totalorder %s121, %s135
    %p137 = scmp.eq.s32.totalorder %s27, 0
    %p138 = por %p136, %p137
    %s140 = sadd.s32 %s139, 1
    %p143 = scmp.eq.s32.totalorder %s21, 1
    %p144 = scmp.ne.s32.totalorder %s139, %s141
    %p145 = scmp.eq.s32.totalorder %s21, 0
    %p146 = por %p144, %p145
    %p147 = scmp.ne.s32.totalorder %s139, %s141
    %p148 = scmp.eq.s32.totalorder %s26, 1
    %p149 = por %p147, %p148
    %p150 = scmp.ne.s32.totalorder %s141, %s142
    %p151 = scmp.eq.s32.totalorder %s26, 0
    %p152 = por %p150, %p151
    %p153 = scmp.ne.s32.totalorder %s141, %s142
    %p154 = scmp.eq.s32.totalorder %s27, 1
    %p155 = por %p153, %p154
    %p157 = scmp.ne.s32.totalorder %s142, %s156
    %p158 = scmp.eq.s32.totalorder %s27, 0
    %p159 = por %p157, %p158
    %s161 = sadd.s32 %s160, 1
    %p164 = scmp.eq.s32.totalorder %s21, 1
    %p165 = scmp.ne.s32.totalorder %s160, %s162
    %p166 = scmp.eq.s32.totalorder %s21, 0
    %p167 = por %p165, %p166
    %p168 = scmp.ne.s32.totalorder %s160, %s162
    %p169 = scmp.eq.s32.totalorder %s26, 1
    %p170 = por %p168, %p169
    %p171 = scmp.ne.s32.totalorder %s162, %s163
    %p172 = scmp.eq.s32.totalorder %s26, 0
    %p173 = por %p171, %p172
    %p174 = scmp.ne.s32.totalorder %s162, %s163
    %p175 = scmp.eq.s32.totalorder %s27, 1
    %p176 = por %p174, %p175
    %p178 = scmp.ne.s32.totalorder %s163, %s177
    %p179 = scmp.eq.s32.totalorder %s27, 0
    %p180 = por %p178, %p179
    %s182 = sadd.s32 %s181, 1
    %p185 = scmp.eq.s32.totalorder %s21, 1
    %p186 = scmp.ne.s32.totalorder %s181, %s183
    %p187 = scmp.eq.s32.totalorder %s21, 0
    %p188 = por %p186, %p187
    %p189 = scmp.ne.s32.totalorder %s181, %s183
    %p190 = scmp.eq.s32.totalorder %s26, 1
    %p191 = por %p189, %p190
    %p192 = scmp.ne.s32.totalorder %s183, %s184
    %p193 = scmp.eq.s32.totalorder %s26, 0
    %p194 = por %p192, %p193
    %p195 = scmp.ne.s32.totalorder %s183, %s184
    %p196 = scmp.eq.s32.totalorder %s27, 1
    %p197 = por %p195, %p196
    %p199 = scmp.ne.s32.totalorder %s184, %s198
    %p200 = scmp.eq.s32.totalorder %s27, 0
    %p201 = por %p199, %p200
    %s203 = sadd.s32 %s202, 1
    %p206 = scmp.eq.s32.totalorder %s21, 1
    %p207 = scmp.ne.s32.totalorder %s202, %s204
    %p208 = scmp.eq.s32.totalorder %s21, 0
    %p209 = por %p207, %p208
    %p210 = scmp.ne.s32.totalorder %s202, %s204
    %p211 = scmp.eq.s32.totalorder %s26, 1
    %p212 = por %p210, %p211
    %p213 = scmp.ne.s32.totalorder %s204, %s205
    %p214 = scmp.eq.s32.totalorder %s26, 0
    %p215 = por %p213, %p214
    %p216 = scmp.ne.s32.totalorder %s204, %s205
    %p217 = scmp.eq.s32.totalorder %s27, 1
    %p218 = por %p216, %p217
    %p220 = scmp.ne.s32.totalorder %s205, %s219
    %p221 = scmp.eq.s32.totalorder %s27, 0
    %p222 = por %p220, %p221
    %s224 = sadd.s32 %s223, 1
    %p227 = scmp.eq.s32.totalorder %s21, 1
    %p228 = scmp.ne.s32.totalorder %s223, %s225
    %p229 = scmp.eq.s32.totalorder %s21, 0
    %p230 = por %p228, %p229
    %p231 = scmp.ne.s32.totalorder %s223, %s225
    %p232 = scmp.eq.s32.totalorder %s26, 1
    %p233 = por %p231, %p232
    %p234 = scmp.ne.s32.totalorder %s225, %s226
    %p235 = scmp.eq.s32.totalorder %s26, 0
    %p236 = por %p234, %p235
    %p237 = scmp.ne.s32.totalorder %s225, %s226
    %p238 = scmp.eq.s32.totalorder %s27, 1
    %p239 = por %p237, %p238
    %p241 = scmp.ne.s32.totalorder %s226, %s240
    %p242 = scmp.eq.s32.totalorder %s27, 0
    %p243 = por %p241, %p242
    %s245 = sadd.s32 %s244, 1
    %p248 = scmp.eq.s32.totalorder %s21, 1
    %p249 = scmp.ne.s32.totalorder %s244, %s246
    %p250 = scmp.eq.s32.totalorder %s21, 0
    %p251 = por %p249, %p250
    %p252 = scmp.ne.s32.totalorder %s244, %s246
    %p253 = scmp.eq.s32.totalorder %s26, 1
    %p254 = por %p252, %p253
    %p255 = scmp.ne.s32.totalorder %s246, %s247
    %p256 = scmp.eq.s32.totalorder %s26, 0
    %p257 = por %p255, %p256
    %p258 = scmp.ne.s32.totalorder %s246, %s247
    %p259 = scmp.eq.s32.totalorder %s27, 1
    %p260 = por %p258, %p259
    %p262 = scmp.ne.s32.totalorder %s247, %s261
    %p263 = scmp.eq.s32.totalorder %s27, 0
    %p264 = por %p262, %p263
    %s266 = sadd.s32 %s265, 1
    %p269 = scmp.eq.s32.totalorder %s21, 1
    %p270 = scmp.ne.s32.totalorder %s265, %s267
    %p271 = scmp.eq.s32.totalorder %s21, 0
    %p272 = por %p270, %p271
    %p273 = scmp.ne.s32.totalorder %s265, %s267
    %p274 = scmp.eq.s32.totalorder %s26, 1
    %p275 = por %p273, %p274
    %p276 = scmp.ne.s32.totalorder %s267, %s268
    %p277 = scmp.eq.s32.totalorder %s26, 0
    %p278 = por %p276, %p277
    %p279 = scmp.ne.s32.totalorder %s267, %s268
    %p280 = scmp.eq.s32.totalorder %s27, 1
    %p281 = por %p279, %p280
    %p283 = scmp.ne.s32.totalorder %s268, %s282
    %p284 = scmp.eq.s32.totalorder %s27, 0
    %p285 = por %p283, %p284
    %s287 = sadd.s32 %s286, 1
    %p290 = scmp.eq.s32.totalorder %s21, 1
    %p291 = scmp.ne.s32.totalorder %s286, %s288
    %p292 = scmp.eq.s32.totalorder %s21, 0
    %p293 = por %p291, %p292
    %p294 = scmp.ne.s32.totalorder %s286, %s288
    %p295 = scmp.eq.s32.totalorder %s26, 1
    %p296 = por %p294, %p295
    %p297 = scmp.ne.s32.totalorder %s288, %s289
    %p298 = scmp.eq.s32.totalorder %s26, 0
    %p299 = por %p297, %p298
    %p300 = scmp.ne.s32.totalorder %s288, %s289
    %p301 = scmp.eq.s32.totalorder %s27, 1
    %p302 = por %p300, %p301
    %p304 = scmp.ne.s32.totalorder %s289, %s303
    %p305 = scmp.eq.s32.totalorder %s27, 0
    %p306 = por %p304, %p305
    %s308 = sadd.s32 %s307, 1
    %p311 = scmp.eq.s32.totalorder %s21, 1
    %p312 = scmp.ne.s32.totalorder %s307, %s309
    %p313 = scmp.eq.s32.totalorder %s21, 0
    %p314 = por %p312, %p313
    %p315 = scmp.ne.s32.totalorder %s307, %s309
    %p316 = scmp.eq.s32.totalorder %s26, 1
    %p317 = por %p315, %p316
    %p318 = scmp.ne.s32.totalorder %s309, %s310
    %p319 = scmp.eq.s32.totalorder %s26, 0
    %p320 = por %p318, %p319
    %p321 = scmp.ne.s32.totalorder %s309, %s310
    %p322 = scmp.eq.s32.totalorder %s27, 1
    %p323 = por %p321, %p322
    %p325 = scmp.ne.s32.totalorder %s310, %s324
    %p326 = scmp.eq.s32.totalorder %s27, 0
    %p327 = por %p325, %p326
    %s329 = sadd.s32 %s328, 1
    %p332 = scmp.eq.s32.totalorder %s21, 1
    %p333 = scmp.ne.s32.totalorder %s328, %s330
    %p334 = scmp.eq.s32.totalorder %s21, 0
    %p335 = por %p333, %p334
    %p336 = scmp.ne.s32.totalorder %s328, %s330
    %p337 = scmp.eq.s32.totalorder %s26, 1
    %p338 = por %p336, %p337
    %p339 = scmp.ne.s32.totalorder %s330, %s331
    %p340 = scmp.eq.s32.totalorder %s26, 0
    %p341 = por %p339, %p340
    %p342 = scmp.ne.s32.totalorder %s330, %s331
    %p343 = scmp.eq.s32.totalorder %s27, 1
    %p344 = por %p342, %p343
    %p346 = scmp.ne.s32.totalorder %s331, %s345
    %p347 = scmp.eq.s32.totalorder %s27, 0
    %p348 = por %p346, %p347
    %s349 = ssub.s32 %s21, %s28
    %p350 = scmp.eq.s32.totalorder %s349, 0
    %s352 = sadd.s32 %s351, 1
    %s353 = scalar_select %p350, %s351, %s352
    %p356 = pneg %p350
    %p357 = scmp.eq.s32.totalorder %s21, 1
    %p358 = por %p356, %p357
    %p359 = scmp.ne.s32.totalorder %s351, %s354
    %p360 = scmp.eq.s32.totalorder %s21, 0
    %p361 = por %p359, %p360
    %p362 = scmp.ne.s32.totalorder %s351, %s354
    %p363 = scmp.eq.s32.totalorder %s26, 1
    %p364 = por %p362, %p363
    %p365 = scmp.ne.s32.totalorder %s354, %s355
    %p366 = scmp.eq.s32.totalorder %s26, 0
    %p367 = por %p365, %p366
    %p368 = scmp.ne.s32.totalorder %s354, %s355
    %p369 = scmp.eq.s32.totalorder %s27, 1
    %p370 = por %p368, %p369
    %p372 = scmp.ne.s32.totalorder %s355, %s371
    %p373 = scmp.eq.s32.totalorder %s27, 0
    %p374 = por %p372, %p373
    %p375 = scmp.le.s32.totalorder 1, %s21
    %p376 = scmp.lt.s32.totalorder %s21, 3
    %p377 = pnand %p375, %p376
    %p378 = pneg %p377
    // Predicated region
    $region9: #{tpu_custom_call.1} parent=5 // pred_check
      _
    $region10: #{tpu_custom_call.1} parent=5 // pred_check_branch
      %380 = sbr.rel (%p377) target = $region12
    $region11: #{tpu_custom_call.1} parent=5 // pred_region
      %s381 = ssub.s32 %s21, 1
      // Predicated region
      $region13: #{tpu_custom_call.1} parent=11 // pred_check
        %p382 = pneg %p68
      $region14: #{tpu_custom_call.1} parent=11 // pred_check_branch
        %384 = sbr.rel (%p382) target = $region16
      $region15: #{tpu_custom_call.1} parent=11 // pred_region
        _
      $region16: #{tpu_custom_call.1} parent=11 // pred_fallthru
        _
      // Predicated region
      $region17: #{tpu_custom_call.1} parent=11 // pred_check
        %p385 = pneg %p89
      $region18: #{tpu_custom_call.1} parent=11 // pred_check_branch
        %387 = sbr.rel (%p385) target = $region20
      $region19: #{tpu_custom_call.1} parent=11 // pred_region
        _
      $region20: #{tpu_custom_call.1} parent=11 // pred_fallthru
        _
      // Predicated region
      $region21: #{tpu_custom_call.1} parent=11 // pred_check
        %p388 = pneg %p110
      $region22: #{tpu_custom_call.1} parent=11 // pred_check_branch
        %390 = sbr.rel (%p388) target = $region24
      $region23: #{tpu_custom_call.1} parent=11 // pred_region
        _
      $region24: #{tpu_custom_call.1} parent=11 // pred_fallthru
        _
      // Predicated region
      $region25: #{tpu_custom_call.1} parent=11 // pred_check
        %p391 = pneg %p131
      $region26: #{tpu_custom_call.1} parent=11 // pred_check_branch
        %393 = sbr.rel (%p391) target = $region28
      $region27: #{tpu_custom_call.1} parent=11 // pred_region
        _
      $region28: #{tpu_custom_call.1} parent=11 // pred_fallthru
        _
      // Predicated region
      $region29: #{tpu_custom_call.1} parent=11 // pred_check
        %p394 = pneg %p152
      $region30: #{tpu_custom_call.1} parent=11 // pred_check_branch
        %396 = sbr.rel (%p394) target = $region32
      $region31: #{tpu_custom_call.1} parent=11 // pred_region
        _
      $region32: #{tpu_custom_call.1} parent=11 // pred_fallthru
        _
      // Predicated region
      $region33: #{tpu_custom_call.1} parent=11 // pred_check
        %p397 = pneg %p173
      $region34: #{tpu_custom_call.1} parent=11 // pred_check_branch
        %399 = sbr.rel (%p397) target = $region36
      $region35: #{tpu_custom_call.1} parent=11 // pred_region
        _
      $region36: #{tpu_custom_call.1} parent=11 // pred_fallthru
        _
      // Predicated region
      $region37: #{tpu_custom_call.1} parent=11 // pred_check
        %p400 = pneg %p194
      $region38: #{tpu_custom_call.1} parent=11 // pred_check_branch
        %402 = sbr.rel (%p400) target = $region40
      $region39: #{tpu_custom_call.1} parent=11 // pred_region
        _
      $region40: #{tpu_custom_call.1} parent=11 // pred_fallthru
        _
      // Predicated region
      $region41: #{tpu_custom_call.1} parent=11 // pred_check
        %p403 = pneg %p215
      $region42: #{tpu_custom_call.1} parent=11 // pred_check_branch
        %405 = sbr.rel (%p403) target = $region44
      $region43: #{tpu_custom_call.1} parent=11 // pred_region
        _
      $region44: #{tpu_custom_call.1} parent=11 // pred_fallthru
        _
      // Predicated region
      $region45: #{tpu_custom_call.1} parent=11 // pred_check
        %p406 = pneg %p236
      $region46: #{tpu_custom_call.1} parent=11 // pred_check_branch
        %408 = sbr.rel (%p406) target = $region48
      $region47: #{tpu_custom_call.1} parent=11 // pred_region
        _
      $region48: #{tpu_custom_call.1} parent=11 // pred_fallthru
        _
      // Predicated region
      $region49: #{tpu_custom_call.1} parent=11 // pred_check
        %p409 = pneg %p257
      $region50: #{tpu_custom_call.1} parent=11 // pred_check_branch
        %411 = sbr.rel (%p409) target = $region52
      $region51: #{tpu_custom_call.1} parent=11 // pred_region
        _
      $region52: #{tpu_custom_call.1} parent=11 // pred_fallthru
        _
      // Predicated region
      $region53: #{tpu_custom_call.1} parent=11 // pred_check
        %p412 = pneg %p278
      $region54: #{tpu_custom_call.1} parent=11 // pred_check_branch
        %414 = sbr.rel (%p412) target = $region56
      $region55: #{tpu_custom_call.1} parent=11 // pred_region
        _
      $region56: #{tpu_custom_call.1} parent=11 // pred_fallthru
        _
      // Predicated region
      $region57: #{tpu_custom_call.1} parent=11 // pred_check
        %p415 = pneg %p299
      $region58: #{tpu_custom_call.1} parent=11 // pred_check_branch
        %417 = sbr.rel (%p415) target = $region60
      $region59: #{tpu_custom_call.1} parent=11 // pred_region
        _
      $region60: #{tpu_custom_call.1} parent=11 // pred_fallthru
        _
      // Predicated region
      $region61: #{tpu_custom_call.1} parent=11 // pred_check
        %p418 = pneg %p320
      $region62: #{tpu_custom_call.1} parent=11 // pred_check_branch
        %420 = sbr.rel (%p418) target = $region64
      $region63: #{tpu_custom_call.1} parent=11 // pred_region
        _
      $region64: #{tpu_custom_call.1} parent=11 // pred_fallthru
        _
      // Predicated region
      $region65: #{tpu_custom_call.1} parent=11 // pred_check
        %p421 = pneg %p341
      $region66: #{tpu_custom_call.1} parent=11 // pred_check_branch
        %423 = sbr.rel (%p421) target = $region68
      $region67: #{tpu_custom_call.1} parent=11 // pred_region
        _
      $region68: #{tpu_custom_call.1} parent=11 // pred_fallthru
        _
    $region12: #{tpu_custom_call.1} parent=5 // pred_fallthru
      _
    %p424 = scmp.lt.s32.totalorder %s21, 2
    // Predicated region
    $region69: #{tpu_custom_call.1} parent=5 // pred_check
      %p425 = pneg %p424
    $region70: #{tpu_custom_call.1} parent=5 // pred_check_branch
      %427 = sbr.rel (%p425) target = $region72
    $region71: #{tpu_custom_call.1} parent=5 // pred_region
      // Predicated region
      $region73: #{tpu_custom_call.1} parent=71 // pred_check
        %p428 = pneg %p41
      $region74: #{tpu_custom_call.1} parent=71 // pred_check_branch
        %430 = sbr.rel (%p428) target = $region76
      $region75: #{tpu_custom_call.1} parent=71 // pred_region
        %s431 = smul.u32 8, %s21
        %p432 = scmp.lt.s32.totalorder %s431, 15
        %s433 = scalar_select %p432, %s431, 15
        %s434 = smul.addr %s433, 8
        %s435 = scalar_lea.vmem %s0, %s434
        %s436 = smul.u32 8, %s21
      $region76: #{tpu_custom_call.1} parent=71 // pred_fallthru
        _
    $region72: #{tpu_custom_call.1} parent=5 // pred_fallthru
      _
    %p437 = scmp.le.s32.totalorder 1, %s21
    %p438 = scmp.lt.s32.totalorder %s21, 3
    %p439 = pnand %p437, %p438
    %p440 = pneg %p439
    // Predicated region
    $region77: #{tpu_custom_call.1} parent=5 // pred_check
      _
    $region78: #{tpu_custom_call.1} parent=5 // pred_check_branch
      %442 = sbr.rel (%p439) target = $region80
    $region79: #{tpu_custom_call.1} parent=5 // pred_region
      %s443 = ssub.s32 %s21, 1
      %s444 = smul.u32 8, %s26
      %p445 = scmp.lt.s32.totalorder %s444, 15
      %s446 = scalar_select %p445, %s444, 15
      %s447 = smul.addr %s446, 8
      %s448 = scalar_lea.vmem %s0, %s447
      %p449 = pneg %p47
      %p450 = pneg %p44
      %p451 = pneg %p68
      %p452 = pneg %p65
      %p453 = pneg %p89
      %p454 = pneg %p86
      %p455 = pneg %p110
      %p456 = pneg %p107
      %p457 = pneg %p131
      %p458 = pneg %p128
      %p459 = pneg %p152
      %p460 = pneg %p149
      %p461 = pneg %p173
      %p462 = pneg %p170
      %p463 = pneg %p194
      %p464 = pneg %p191
      %p465 = pneg %p215
      %p466 = pneg %p212
      %p467 = pneg %p236
      %p468 = pneg %p233
      %p469 = pneg %p257
      %p470 = pneg %p254
      %p471 = pneg %p278
      %p472 = pneg %p275
      %p473 = pneg %p299
      %p474 = pneg %p296
      %p475 = pneg %p320
      %p476 = pneg %p317
      %p477 = pneg %p341
      %p478 = pneg %p338
      %p479 = pneg %p367
      %p480 = pneg %p364
      %s481 = smul.u32 8, %s26
      %p482 = scmp.lt.s32.totalorder %s481, 15
      %s483 = scalar_select %p482, %s481, 15
      %s484 = smul.addr %s483, 8
      %s485 = scalar_lea.vmem %s15, %s484
      %s486 = smul.u32 8, %s26
      %p487 = scmp.lt.s32.totalorder %s486, 15
      %s488 = scalar_select %p487, %s486, 15
      %s489 = smul.addr %s488, 8
      %s490 = scalar_lea.vmem %s0, %s489
      %s491 = smul.u32 8, %s26
      %s492 = smul.u32 8, %s26
      %p493 = scmp.lt.s32.totalorder %s492, 15
      %s494 = scalar_select %p493, %s492, 15
      %s495 = smul.addr %s494, 8
      %s496 = scalar_lea.vmem %s15, %s495
      %s497 = smul.u32 8, %s26
      %v499 = vld [vmem:[%s490] sm:$0xff]
      %v500 = vld [vmem:[%s490 + $0x8] sm:$0xff]
      %v501 = vld [vmem:[%s490 + $0x10] sm:$0xff]
      %v502 = vld [vmem:[%s490 + $0x18] sm:$0xff]
      %v503 = vld [vmem:[%s490 + $0x20] sm:$0xff]
      %v504 = vld [vmem:[%s490 + $0x28] sm:$0xff]
      %v505 = vld [vmem:[%s490 + $0x30] sm:$0xff]
      %v506 = vld [vmem:[%s490 + $0x38] sm:$0xff]
      %v507 = vpack.c.bf16 %v500, %v499
      %v508 = vpack.c.bf16 %v502, %v501
      %v509 = vpack.c.bf16 %v504, %v503
      %v510 = vpack.c.bf16 %v506, %v505
      %v511 = vld [vmem:[%s1] sm:$0xf]
      %v512 = vld [vmem:[%s1 + $0x4] sm:$0xf]
      %v513 = vld [vmem:[%s1 + $0x8] sm:$0xf]
      %v514 = vld [vmem:[%s1 + $0xc] sm:$0xf]
      %v515 = vld [vmem:[%s2] sm:$0x1]
      %v517 = vlaneseq
      %v518 = vshrl.u32 %v517, 7
      %v519 = vsub.s32 0, %v518
      %v520 = vrot.slane %v515, %v519
      %v526 = vunpack.c.l.b16 %v511
      %v527 = vunpack.c.l.b16 %v512
      %v528 = vunpack.c.l.b16 %v513
      %v529 = vunpack.c.l.b16 %v514
      %v530 = vpack.c.b16 %v527, %v526
      %v531 = vpack.c.b16 %v529, %v528
      %vm534 = vcmask 261120
      %v536 = vsel %vm534, %v507, 0
      %v539 = vsel %vm534, %v508, 0
      %v542 = vsel %vm534, %v509, 0
      %v545 = vsel %vm534, %v510, 0
      %547 = vmatprep.subr.bf16.mxu0 0
      %548 = vmatpush1.bf16.msra.mxu0 %v530
      %549 = vmatprep.subr.bf16.mxu0 0
      %550 = vmatpush1.bf16.msra.mxu0 %v531
      %551 = vmatprep.subr.bf16.mxu0 0
      %552 = vmatpush1.bf16.msra.mxu0 0
      %553 = vmatprep.subr.bf16.mxu0 0
      %554 = vmatpush1.bf16.msra.mxu0 0
      %555 = vmatprep.subr.bf16.mxu0 0
      %556 = vmatpush1.bf16.msra.mxu0 0
      %557 = vmatprep.subr.bf16.mxu0 0
      %558 = vmatpush1.bf16.msra.mxu0 0
      %559 = vmatprep.subr.bf16.mxu0 0
      %560 = vmatpush1.bf16.msra.mxu0 0
      %561 = vmatprep.subr.bf16.mxu0 0
      %562 = vmatpush1.bf16.msra.mxu0 0
      %563 = vmatprep.subr.bf16.mxu0 0
      %564 = vmatpush1.bf16.msra.mxu0 0
      %565 = vmatprep.subr.bf16.mxu0 0
      %566 = vmatpush1.bf16.msra.mxu0 0
      %567 = vmatprep.subr.bf16.mxu0 0
      %568 = vmatpush1.bf16.msra.mxu0 0
      %569 = vmatprep.subr.bf16.mxu0 0
      %570 = vmatpush1.bf16.msra.mxu0 0
      %571 = vmatprep.subr.bf16.mxu0 0
      %572 = vmatpush1.bf16.msra.mxu0 0
      %573 = vmatprep.subr.bf16.mxu0 0
      %574 = vmatpush1.bf16.msra.mxu0 0
      %575 = vmatprep.subr.bf16.mxu0 0
      %576 = vmatpush1.bf16.msra.mxu0 0
      %577 = vmatprep.subr.bf16.mxu0 0
      %578 = vmatpush1.bf16.msra.mxu0 0
      %579 = vmatprep.mubr.bf16.mxu0 0
      %580 = vmatmul.mubr.bf16.gmra.mrb[0].mxu0 %v536
      %v581 = vpop.f32.mrb[0].mxu0
      %v582 = vadd.f32 %v520, %v581
      %v583 = vpop.f32.mrb[0].mxu0
      %v584 = vpop.f32.mrb[0].mxu0
      %v585 = vadd.f32 %v520, %v584
      %v586 = vpop.f32.mrb[0].mxu0
      %587 = vmatprep.mubr.bf16.mxu0 0
      %588 = vmatmul.mubr.bf16.gmra.mrb[0].mxu0 %v539
      %v589 = vpop.f32.mrb[0].mxu0
      %v590 = vadd.f32 %v520, %v589
      %v591 = vpop.f32.mrb[0].mxu0
      %v592 = vpop.f32.mrb[0].mxu0
      %v593 = vadd.f32 %v520, %v592
      %v594 = vpop.f32.mrb[0].mxu0
      %595 = vmatprep.mubr.bf16.mxu0 0
      %596 = vmatmul.mubr.bf16.gmra.mrb[0].mxu0 %v542
      %v597 = vpop.f32.mrb[0].mxu0
      %v598 = vadd.f32 %v520, %v597
      %v599 = vpop.f32.mrb[0].mxu0
      %v600 = vpop.f32.mrb[0].mxu0
      %v601 = vadd.f32 %v520, %v600
      %v602 = vpop.f32.mrb[0].mxu0
      %603 = vmatprep.mubr.bf16.mxu0 0
      %604 = vmatmul.mubr.bf16.gmra.mrb[0].mxu0 %v545
      %v605 = vpop.f32.mrb[0].mxu0
      %v606 = vadd.f32 %v520, %v605
      %v607 = vpop.f32.mrb[0].mxu0
      %v608 = vpop.f32.mrb[0].mxu0
      %v609 = vadd.f32 %v520, %v608
      %v610 = vpop.f32.mrb[0].mxu0
      %611 = vdwg.mxu0
      %v612 = vld [vmem:[%s3] sm:$0xf]
      %v613 = vld [vmem:[%s3 + $0x4] sm:$0xf]
      %v614 = vld [vmem:[%s3 + $0x8] sm:$0xf]
      %v615 = vld [vmem:[%s3 + $0xc] sm:$0xf]
      %v616 = vld [vmem:[%s4] sm:$0x1]
      %v618 = vlaneseq
      %v619 = vshrl.u32 %v618, 7
      %v620 = vsub.s32 0, %v619
      %v621 = vrot.slane %v616, %v620
      %v627 = vunpack.c.l.b16 %v612
      %v628 = vunpack.c.l.b16 %v613
      %v629 = vunpack.c.l.b16 %v614
      %v630 = vunpack.c.l.b16 %v615
      %v631 = vpack.c.b16 %v628, %v627
      %v632 = vpack.c.b16 %v630, %v629
      %635 = vmatprep.subr.bf16.mxu0 0
      %636 = vmatpush1.bf16.msra.mxu0 %v631
      %637 = vmatprep.subr.bf16.mxu0 0
      %638 = vmatpush1.bf16.msra.mxu0 %v632
      %639 = vmatprep.subr.bf16.mxu0 0
      %640 = vmatpush1.bf16.msra.mxu0 0
      %641 = vmatprep.subr.bf16.mxu0 0
      %642 = vmatpush1.bf16.msra.mxu0 0
      %643 = vmatprep.subr.bf16.mxu0 0
      %644 = vmatpush1.bf16.msra.mxu0 0
      %645 = vmatprep.subr.bf16.mxu0 0
      %646 = vmatpush1.bf16.msra.mxu0 0
      %647 = vmatprep.subr.bf16.mxu0 0
      %648 = vmatpush1.bf16.msra.mxu0 0
      %649 = vmatprep.subr.bf16.mxu0 0
      %650 = vmatpush1.bf16.msra.mxu0 0
      %651 = vmatprep.subr.bf16.mxu0 0
      %652 = vmatpush1.bf16.msra.mxu0 0
      %653 = vmatprep.subr.bf16.mxu0 0
      %654 = vmatpush1.bf16.msra.mxu0 0
      %655 = vmatprep.subr.bf16.mxu0 0
      %656 = vmatpush1.bf16.msra.mxu0 0
      %657 = vmatprep.subr.bf16.mxu0 0
      %658 = vmatpush1.bf16.msra.mxu0 0
      %659 = vmatprep.subr.bf16.mxu0 0
      %660 = vmatpush1.bf16.msra.mxu0 0
      %661 = vmatprep.subr.bf16.mxu0 0
      %662 = vmatpush1.bf16.msra.mxu0 0
      %663 = vmatprep.subr.bf16.mxu0 0
      %664 = vmatpush1.bf16.msra.mxu0 0
      %665 = vmatprep.subr.bf16.mxu0 0
      %666 = vmatpush1.bf16.msra.mxu0 0
      %667 = vmatprep.mubr.bf16.mxu0 0
      %668 = vmatmul.mubr.bf16.gmra.mrb[0].mxu0 %v536
      %v669 = vpop.f32.mrb[0].mxu0
      %v670 = vadd.f32 %v621, %v669
      %v671 = vpop.f32.mrb[0].mxu0
      %v672 = vpop.f32.mrb[0].mxu0
      %v673 = vadd.f32 %v621, %v672
      %v674 = vpop.f32.mrb[0].mxu0
      %675 = vmatprep.mubr.bf16.mxu0 0
      %676 = vmatmul.mubr.bf16.gmra.mrb[0].mxu0 %v539
      %v677 = vpop.f32.mrb[0].mxu0
      %v678 = vadd.f32 %v621, %v677
      %v679 = vpop.f32.mrb[0].mxu0
      %v680 = vpop.f32.mrb[0].mxu0
      %v681 = vadd.f32 %v621, %v680
      %v682 = vpop.f32.mrb[0].mxu0
      %683 = vmatprep.mubr.bf16.mxu0 0
      %684 = vmatmul.mubr.bf16.gmra.mrb[0].mxu0 %v542
      %v685 = vpop.f32.mrb[0].mxu0
      %v686 = vadd.f32 %v621, %v685
      %v687 = vpop.f32.mrb[0].mxu0
      %v688 = vpop.f32.mrb[0].mxu0
      %v689 = vadd.f32 %v621, %v688
      %v690 = vpop.f32.mrb[0].mxu0
      %691 = vmatprep.mubr.bf16.mxu0 0
      %692 = vmatmul.mubr.bf16.gmra.mrb[0].mxu0 %v545
      %v693 = vpop.f32.mrb[0].mxu0
      %v694 = vadd.f32 %v621, %v693
      %v695 = vpop.f32.mrb[0].mxu0
      %v696 = vpop.f32.mrb[0].mxu0
      %v697 = vadd.f32 %v621, %v696
      %v698 = vpop.f32.mrb[0].mxu0
      %699 = vdwg.mxu0
      %v700 = vld [vmem:[%s5] sm:$0xf]
      %v701 = vld [vmem:[%s5 + $0x4] sm:$0xf]
      %v702 = vld [vmem:[%s5 + $0x8] sm:$0xf]
      %v703 = vld [vmem:[%s5 + $0xc] sm:$0xf]
      %v704 = vld [vmem:[%s6] sm:$0x1]
      %v706 = vlaneseq
      %v707 = vshrl.u32 %v706, 7
      %v708 = vsub.s32 0, %v707
      %v709 = vrot.slane %v704, %v708
      %v715 = vunpack.c.l.b16 %v700
      %v716 = vunpack.c.l.b16 %v701
      %v717 = vunpack.c.l.b16 %v702
      %v718 = vunpack.c.l.b16 %v703
      %v719 = vpack.c.b16 %v716, %v715
      %v720 = vpack.c.b16 %v718, %v717
      %723 = vmatprep.subr.bf16.mxu0 0
      %724 = vmatpush1.bf16.msra.mxu0 %v719
      %725 = vmatprep.subr.bf16.mxu0 0
      %726 = vmatpush1.bf16.msra.mxu0 %v720
      %727 = vmatprep.subr.bf16.mxu0 0
      %728 = vmatpush1.bf16.msra.mxu0 0
      %729 = vmatprep.subr.bf16.mxu0 0
      %730 = vmatpush1.bf16.msra.mxu0 0
      %731 = vmatprep.subr.bf16.mxu0 0
      %732 = vmatpush1.bf16.msra.mxu0 0
      %733 = vmatprep.subr.bf16.mxu0 0
      %734 = vmatpush1.bf16.msra.mxu0 0
      %735 = vmatprep.subr.bf16.mxu0 0
      %736 = vmatpush1.bf16.msra.mxu0 0
      %737 = vmatprep.subr.bf16.mxu0 0
      %738 = vmatpush1.bf16.msra.mxu0 0
      %739 = vmatprep.subr.bf16.mxu0 0
      %740 = vmatpush1.bf16.msra.mxu0 0
      %741 = vmatprep.subr.bf16.mxu0 0
      %742 = vmatpush1.bf16.msra.mxu0 0
      %743 = vmatprep.subr.bf16.mxu0 0
      %744 = vmatpush1.bf16.msra.mxu0 0
      %745 = vmatprep.subr.bf16.mxu0 0
      %746 = vmatpush1.bf16.msra.mxu0 0
      %747 = vmatprep.subr.bf16.mxu0 0
      %748 = vmatpush1.bf16.msra.mxu0 0
      %749 = vmatprep.subr.bf16.mxu0 0
      %750 = vmatpush1.bf16.msra.mxu0 0
      %751 = vmatprep.subr.bf16.mxu0 0
      %752 = vmatpush1.bf16.msra.mxu0 0
      %753 = vmatprep.subr.bf16.mxu0 0
      %754 = vmatpush1.bf16.msra.mxu0 0
      %755 = vmatprep.mubr.bf16.mxu0 0
      %756 = vmatmul.mubr.bf16.gmra.mrb[0].mxu0 %v536
      %v757 = vpop.f32.mrb[0].mxu0
      %v758 = vadd.f32 %v709, %v757
      %v759 = vpop.f32.mrb[0].mxu0
      %v760 = vpop.f32.mrb[0].mxu0
      %v761 = vadd.f32 %v709, %v760
      %v762 = vpop.f32.mrb[0].mxu0
      %763 = vmatprep.mubr.bf16.mxu0 0
      %764 = vmatmul.mubr.bf16.gmra.mrb[0].mxu0 %v539
      %v765 = vpop.f32.mrb[0].mxu0
      %v766 = vadd.f32 %v709, %v765
      %v767 = vpop.f32.mrb[0].mxu0
      %v768 = vpop.f32.mrb[0].mxu0
      %v769 = vadd.f32 %v709, %v768
      %v770 = vpop.f32.mrb[0].mxu0
      %771 = vmatprep.mubr.bf16.mxu0 0
      %772 = vmatmul.mubr.bf16.gmra.mrb[0].mxu0 %v542
      %v773 = vpop.f32.mrb[0].mxu0
      %v774 = vadd.f32 %v709, %v773
      %v775 = vpop.f32.mrb[0].mxu0
      %v776 = vpop.f32.mrb[0].mxu0
      %v777 = vadd.f32 %v709, %v776
      %v778 = vpop.f32.mrb[0].mxu0
      %779 = vmatprep.mubr.bf16.mxu0 0
      %780 = vmatmul.mubr.bf16.gmra.mrb[0].mxu0 %v545
      %v781 = vpop.f32.mrb[0].mxu0
      %v782 = vadd.f32 %v709, %v781
      %v783 = vpop.f32.mrb[0].mxu0
      %v784 = vpop.f32.mrb[0].mxu0
      %v785 = vadd.f32 %v709, %v784
      %v786 = vpop.f32.mrb[0].mxu0
      %787 = vdwg.mxu0
      %v788 = vmul.f32 %v582, 0.57434916
      %v789 = vmul.f32 %v585, 0.57434916
      %v790 = vmul.f32 %v590, 0.57434916
      %v791 = vmul.f32 %v593, 0.57434916
      %v792 = vmul.f32 %v598, 0.57434916
      %v793 = vmul.f32 %v601, 0.57434916
      %v794 = vmul.f32 %v606, 0.57434916
      %v795 = vmul.f32 %v609, 0.57434916
      %v796 = vpack.c.bf16 %v788, %v788
      %v797 = vpack.c.bf16 %v789, %v789
      %v798 = vpack.c.bf16 %v790, %v790
      %v799 = vpack.c.bf16 %v791, %v791
      %v800 = vpack.c.bf16 %v792, %v792
      %v801 = vpack.c.bf16 %v793, %v793
      %v802 = vpack.c.bf16 %v794, %v794
      %v803 = vpack.c.bf16 %v795, %v795
      %v804 = vpack.c.bf16 %v670, %v670
      %v805 = vpack.c.bf16 %v673, %v673
      %v806 = vpack.c.bf16 %v678, %v678
      %v807 = vpack.c.bf16 %v681, %v681
      %v808 = vpack.c.bf16 %v686, %v686
      %v809 = vpack.c.bf16 %v689, %v689
      %v810 = vpack.c.bf16 %v694, %v694
      %v811 = vpack.c.bf16 %v697, %v697
      %v812 = vpack.c.bf16 %v758, %v758
      %v813 = vpack.c.bf16 %v761, %v761
      %v814 = vpack.c.bf16 %v766, %v766
      %v815 = vpack.c.bf16 %v769, %v769
      %v816 = vpack.c.bf16 %v774, %v774
      %v817 = vpack.c.bf16 %v777, %v777
      %v818 = vpack.c.bf16 %v782, %v782
      %v819 = vpack.c.bf16 %v785, %v785
      %vm820 = vcmask 130048
      %v822 = vsel %vm820, %v796, 0
      %v825 = vsel %vm820, %v804, 0
      %827 = vmatprep.subr.bf16.mxu0 0
      %828 = vmatpush1.bf16.xpose.msra.mxu0 %v825
      %829 = vmatprep.subr.bf16.mxu0 0
      %830 = vmatpush1.bf16.xpose.msra.mxu0 0
      %831 = vmatprep.subr.bf16.mxu0 0
      %832 = vmatpush1.bf16.xpose.msra.mxu0 0
      %833 = vmatprep.subr.bf16.mxu0 0
      %834 = vmatpush1.bf16.xpose.msra.mxu0 0
      %835 = vmatprep.subr.bf16.mxu0 0
      %836 = vmatpush1.bf16.xpose.msra.mxu0 0
      %837 = vmatprep.subr.bf16.mxu0 0
      %838 = vmatpush1.bf16.xpose.msra.mxu0 0
      %839 = vmatprep.subr.bf16.mxu0 0
      %840 = vmatpush1.bf16.xpose.msra.mxu0 0
      %841 = vmatprep.subr.bf16.mxu0 0
      %842 = vmatpush1.bf16.xpose.msra.mxu0 0
      %843 = vmatprep.subr.bf16.mxu0 0
      %844 = vmatpush1.bf16.xpose.msra.mxu0 0
      %845 = vmatprep.subr.bf16.mxu0 0
      %846 = vmatpush1.bf16.xpose.msra.mxu0 0
      %847 = vmatprep.subr.bf16.mxu0 0
      %848 = vmatpush1.bf16.xpose.msra.mxu0 0
      %849 = vmatprep.subr.bf16.mxu0 0
      %850 = vmatpush1.bf16.xpose.msra.mxu0 0
      %851 = vmatprep.subr.bf16.mxu0 0
      %852 = vmatpush1.bf16.xpose.msra.mxu0 0
      %853 = vmatprep.subr.bf16.mxu0 0
      %854 = vmatpush1.bf16.xpose.msra.mxu0 0
      %855 = vmatprep.subr.bf16.mxu0 0
      %856 = vmatpush1.bf16.xpose.msra.mxu0 0
      %857 = vmatprep.subr.bf16.mxu0 0
      %858 = vmatpush1.bf16.xpose.msra.mxu0 0
      %859 = vmatprep.mubr.bf16.mxu0 0
      %860 = vmatmul.mubr.bf16.gmra.mrb[0].mxu0 %v822
      %v861 = vpop.f32.mrb[0].mxu0
      %v862 = vadd.f32 0.0, %v861
      %v863 = vpop.f32.mrb[0].mxu0
      %v864 = vpop.f32.mrb[0].mxu0
      %v865 = vpop.f32.mrb[0].mxu0
      %866 = vdwg.mxu0
      %v868 = vsel %vm820, %v797, 0
      %v871 = vsel %vm820, %v805, 0
      %873 = vmatprep.subr.bf16.mxu0 0
      %874 = vmatpush1.bf16.xpose.msra.mxu0 %v871
      %875 = vmatprep.subr.bf16.mxu0 0
      %876 = vmatpush1.bf16.xpose.msra.mxu0 0
      %877 = vmatprep.subr.bf16.mxu0 0
      %878 = vmatpush1.bf16.xpose.msra.mxu0 0
      %879 = vmatprep.subr.bf16.mxu0 0
      %880 = vmatpush1.bf16.xpose.msra.mxu0 0
      %881 = vmatprep.subr.bf16.mxu0 0
      %882 = vmatpush1.bf16.xpose.msra.mxu0 0
      %883 = vmatprep.subr.bf16.mxu0 0
      %884 = vmatpush1.bf16.xpose.msra.mxu0 0
      %885 = vmatprep.subr.bf16.mxu0 0
      %886 = vmatpush1.bf16.xpose.msra.mxu0 0
      %887 = vmatprep.subr.bf16.mxu0 0
      %888 = vmatpush1.bf16.xpose.msra.mxu0 0
      %889 = vmatprep.subr.bf16.mxu0 0
      %890 = vmatpush1.bf16.xpose.msra.mxu0 0
      %891 = vmatprep.subr.bf16.mxu0 0
      %892 = vmatpush1.bf16.xpose.msra.mxu0 0
      %893 = vmatprep.subr.bf16.mxu0 0
      %894 = vmatpush1.bf16.xpose.msra.mxu0 0
      %895 = vmatprep.subr.bf16.mxu0 0
      %896 = vmatpush1.bf16.xpose.msra.mxu0 0
      %897 = vmatprep.subr.bf16.mxu0 0
      %898 = vmatpush1.bf16.xpose.msra.mxu0 0
      %899 = vmatprep.subr.bf16.mxu0 0
      %900 = vmatpush1.bf16.xpose.msra.mxu0 0
      %901 = vmatprep.subr.bf16.mxu0 0
      %902 = vmatpush1.bf16.xpose.msra.mxu0 0
      %903 = vmatprep.subr.bf16.mxu0 0
      %904 = vmatpush1.bf16.xpose.msra.mxu0 0
      %905 = vmatprep.mubr.bf16.mxu0 0
      %906 = vmatmul.mubr.bf16.gmra.mrb[0].mxu0 %v868
      %v907 = vpop.f32.mrb[0].mxu0
      %v908 = vadd.f32 0.0, %v907
      %v909 = vpop.f32.mrb[0].mxu0
      %v910 = vpop.f32.mrb[0].mxu0
      %v911 = vpop.f32.mrb[0].mxu0
      %912 = vdwg.mxu0
      %v914 = vsel %vm820, %v798, 0
      %v917 = vsel %vm820, %v806, 0
      %919 = vmatprep.subr.bf16.mxu0 0
      %920 = vmatpush1.bf16.xpose.msra.mxu0 %v917
      %921 = vmatprep.subr.bf16.mxu0 0
      %922 = vmatpush1.bf16.xpose.msra.mxu0 0
      %923 = vmatprep.subr.bf16.mxu0 0
      %924 = vmatpush1.bf16.xpose.msra.mxu0 0
      %925 = vmatprep.subr.bf16.mxu0 0
      %926 = vmatpush1.bf16.xpose.msra.mxu0 0
      %927 = vmatprep.subr.bf16.mxu0 0
      %928 = vmatpush1.bf16.xpose.msra.mxu0 0
      %929 = vmatprep.subr.bf16.mxu0 0
      %930 = vmatpush1.bf16.xpose.msra.mxu0 0
      %931 = vmatprep.subr.bf16.mxu0 0
      %932 = vmatpush1.bf16.xpose.msra.mxu0 0
      %933 = vmatprep.subr.bf16.mxu0 0
      %934 = vmatpush1.bf16.xpose.msra.mxu0 0
      %935 = vmatprep.subr.bf16.mxu0 0
      %936 = vmatpush1.bf16.xpose.msra.mxu0 0
      %937 = vmatprep.subr.bf16.mxu0 0
      %938 = vmatpush1.bf16.xpose.msra.mxu0 0
      %939 = vmatprep.subr.bf16.mxu0 0
      %940 = vmatpush1.bf16.xpose.msra.mxu0 0
      %941 = vmatprep.subr.bf16.mxu0 0
      %942 = vmatpush1.bf16.xpose.msra.mxu0 0
      %943 = vmatprep.subr.bf16.mxu0 0
      %944 = vmatpush1.bf16.xpose.msra.mxu0 0
      %945 = vmatprep.subr.bf16.mxu0 0
      %946 = vmatpush1.bf16.xpose.msra.mxu0 0
      %947 = vmatprep.subr.bf16.mxu0 0
      %948 = vmatpush1.bf16.xpose.msra.mxu0 0
      %949 = vmatprep.subr.bf16.mxu0 0
      %950 = vmatpush1.bf16.xpose.msra.mxu0 0
      %951 = vmatprep.mubr.bf16.mxu0 0
      %952 = vmatmul.mubr.bf16.gmra.mrb[0].mxu0 %v914
      %v953 = vpop.f32.mrb[0].mxu0
      %v954 = vadd.f32 0.0, %v953
      %v955 = vpop.f32.mrb[0].mxu0
      %v956 = vpop.f32.mrb[0].mxu0
      %v957 = vpop.f32.mrb[0].mxu0
      %958 = vdwg.mxu0
      %v960 = vsel %vm820, %v799, 0
      %v963 = vsel %vm820, %v807, 0
      %965 = vmatprep.subr.bf16.mxu0 0
      %966 = vmatpush1.bf16.xpose.msra.mxu0 %v963
      %967 = vmatprep.subr.bf16.mxu0 0
      %968 = vmatpush1.bf16.xpose.msra.mxu0 0
      %969 = vmatprep.subr.bf16.mxu0 0
      %970 = vmatpush1.bf16.xpose.msra.mxu0 0
      %971 = vmatprep.subr.bf16.mxu0 0
      %972 = vmatpush1.bf16.xpose.msra.mxu0 0
      %973 = vmatprep.subr.bf16.mxu0 0
      %974 = vmatpush1.bf16.xpose.msra.mxu0 0
      %975 = vmatprep.subr.bf16.mxu0 0
      %976 = vmatpush1.bf16.xpose.msra.mxu0 0
      %977 = vmatprep.subr.bf16.mxu0 0
      %978 = vmatpush1.bf16.xpose.msra.mxu0 0
      %979 = vmatprep.subr.bf16.mxu0 0
      %980 = vmatpush1.bf16.xpose.msra.mxu0 0
      %981 = vmatprep.subr.bf16.mxu0 0
      %982 = vmatpush1.bf16.xpose.msra.mxu0 0
      %983 = vmatprep.subr.bf16.mxu0 0
      %984 = vmatpush1.bf16.xpose.msra.mxu0 0
      %985 = vmatprep.subr.bf16.mxu0 0
      %986 = vmatpush1.bf16.xpose.msra.mxu0 0
      %987 = vmatprep.subr.bf16.mxu0 0
      %988 = vmatpush1.bf16.xpose.msra.mxu0 0
      %989 = vmatprep.subr.bf16.mxu0 0
      %990 = vmatpush1.bf16.xpose.msra.mxu0 0
      %991 = vmatprep.subr.bf16.mxu0 0
      %992 = vmatpush1.bf16.xpose.msra.mxu0 0
      %993 = vmatprep.subr.bf16.mxu0 0
      %994 = vmatpush1.bf16.xpose.msra.mxu0 0
      %995 = vmatprep.subr.bf16.mxu0 0
      %996 = vmatpush1.bf16.xpose.msra.mxu0 0
      %997 = vmatprep.mubr.bf16.mxu0 0
      %998 = vmatmul.mubr.bf16.gmra.mrb[0].mxu0 %v960
      %v999 = vpop.f32.mrb[0].mxu0
      %v1000 = vadd.f32 0.0, %v999
      %v1001 = vpop.f32.mrb[0].mxu0
      %v1002 = vpop.f32.mrb[0].mxu0
      %v1003 = vpop.f32.mrb[0].mxu0
      %1004 = vdwg.mxu0
      %v1006 = vsel %vm820, %v800, 0
      %v1009 = vsel %vm820, %v808, 0
      %1011 = vmatprep.subr.bf16.mxu0 0
      %1012 = vmatpush1.bf16.xpose.msra.mxu0 %v1009
      %1013 = vmatprep.subr.bf16.mxu0 0
      %1014 = vmatpush1.bf16.xpose.msra.mxu0 0
      %1015 = vmatprep.subr.bf16.mxu0 0
      %1016 = vmatpush1.bf16.xpose.msra.mxu0 0
      %1017 = vmatprep.subr.bf16.mxu0 0
      %1018 = vmatpush1.bf16.xpose.msra.mxu0 0
      %1019 = vmatprep.subr.bf16.mxu0 0
      %1020 = vmatpush1.bf16.xpose.msra.mxu0 0
      %1021 = vmatprep.subr.bf16.mxu0 0
      %1022 = vmatpush1.bf16.xpose.msra.mxu0 0
      %1023 = vmatprep.subr.bf16.mxu0 0
      %1024 = vmatpush1.bf16.xpose.msra.mxu0 0
      %1025 = vmatprep.subr.bf16.mxu0 0
      %1026 = vmatpush1.bf16.xpose.msra.mxu0 0
      %1027 = vmatprep.subr.bf16.mxu0 0
      %1028 = vmatpush1.bf16.xpose.msra.mxu0 0
      %1029 = vmatprep.subr.bf16.mxu0 0
      %1030 = vmatpush1.bf16.xpose.msra.mxu0 0
      %1031 = vmatprep.subr.bf16.mxu0 0
      %1032 = vmatpush1.bf16.xpose.msra.mxu0 0
      %1033 = vmatprep.subr.bf16.mxu0 0
      %1034 = vmatpush1.bf16.xpose.msra.mxu0 0
      %1035 = vmatprep.subr.bf16.mxu0 0
      %1036 = vmatpush1.bf16.xpose.msra.mxu0 0
      %1037 = vmatprep.subr.bf16.mxu0 0
      %1038 = vmatpush1.bf16.xpose.msra.mxu0 0
      %1039 = vmatprep.subr.bf16.mxu0 0
      %1040 = vmatpush1.bf16.xpose.msra.mxu0 0
      %1041 = vmatprep.subr.bf16.mxu0 0
      %1042 = vmatpush1.bf16.xpose.msra.mxu0 0
      %1043 = vmatprep.mubr.bf16.mxu0 0
      %1044 = vmatmul.mubr.bf16.gmra.mrb[0].mxu0 %v1006
      %v1045 = vpop.f32.mrb[0].mxu0
      %v1046 = vadd.f32 0.0, %v1045
      %v1047 = vpop.f32.mrb[0].mxu0
      %v1048 = vpop.f32.mrb[0].mxu0
      %v1049 = vpop.f32.mrb[0].mxu0
      %1050 = vdwg.mxu0
      %v1052 = vsel %vm820, %v801, 0
      %v1055 = vsel %vm820, %v809, 0
      %1057 = vmatprep.subr.bf16.mxu0 0
      %1058 = vmatpush1.bf16.xpose.msra.mxu0 %v1055
      %1059 = vmatprep.subr.bf16.mxu0 0
      %1060 = vmatpush1.bf16.xpose.msra.mxu0 0
      %1061 = vmatprep.subr.bf16.mxu0 0
      %1062 = vmatpush1.bf16.xpose.msra.mxu0 0
      %1063 = vmatprep.subr.bf16.mxu0 0
      %1064 = vmatpush1.bf16.xpose.msra.mxu0 0
      %1065 = vmatprep.subr.bf16.mxu0 0
      %1066 = vmatpush1.bf16.xpose.msra.mxu0 0
      %1067 = vmatprep.subr.bf16.mxu0 0
      %1068 = vmatpush1.bf16.xpose.msra.mxu0 0
      %1069 = vmatprep.subr.bf16.mxu0 0
      %1070 = vmatpush1.bf16.xpose.msra.mxu0 0
      %1071 = vmatprep.subr.bf16.mxu0 0
      %1072 = vmatpush1.bf16.xpose.msra.mxu0 0
      %1073 = vmatprep.subr.bf16.mxu0 0
      %1074 = vmatpush1.bf16.xpose.msra.mxu0 0
      %1075 = vmatprep.subr.bf16.mxu0 0
      %1076 = vmatpush1.bf16.xpose.msra.mxu0 0
      %1077 = vmatprep.subr.bf16.mxu0 0
      %1078 = vmatpush1.bf16.xpose.msra.mxu0 0
      %1079 = vmatprep.subr.bf16.mxu0 0
      %1080 = vmatpush1.bf16.xpose.msra.mxu0 0
      %1081 = vmatprep.subr.bf16.mxu0 0
      %1082 = vmatpush1.bf16.xpose.msra.mxu0 0
      %1083 = vmatprep.subr.bf16.mxu0 0
      %1084 = vmatpush1.bf16.xpose.msra.mxu0 0
      %1085 = vmatprep.subr.bf16.mxu0 0
      %1086 = vmatpush1.bf16.xpose.msra.mxu0 0
      %1087 = vmatprep.subr.bf16.mxu0 0
      %1088 = vmatpush1.bf16.xpose.msra.mxu0 0
      %1089 = vmatprep.mubr.bf16.mxu0 0
      %1090 = vmatmul.mubr.bf16.gmra.mrb[0].mxu0 %v1052
      %v1091 = vpop.f32.mrb[0].mxu0
      %v1092 = vadd.f32 0.0, %v1091
      %v1093 = vpop.f32.mrb[0].mxu0
      %v1094 = vpop.f32.mrb[0].mxu0
      %v1095 = vpop.f32.mrb[0].mxu0
      %1096 = vdwg.mxu0
      %v1098 = vsel %vm820, %v802, 0
      %v1101 = vsel %vm820, %v810, 0
      %1103 = vmatprep.subr.bf16.mxu0 0
      %1104 = vmatpush1.bf16.xpose.msra.mxu0 %v1101
      %1105 = vmatprep.subr.bf16.mxu0 0
      %1106 = vmatpush1.bf16.xpose.msra.mxu0 0
      %1107 = vmatprep.subr.bf16.mxu0 0
      %1108 = vmatpush1.bf16.xpose.msra.mxu0 0
      %1109 = vmatprep.subr.bf16.mxu0 0
      %1110 = vmatpush1.bf16.xpose.msra.mxu0 0
      %1111 = vmatprep.subr.bf16.mxu0 0
      %1112 = vmatpush1.bf16.xpose.msra.mxu0 0
      %1113 = vmatprep.subr.bf16.mxu0 0
      %1114 = vmatpush1.bf16.xpose.msra.mxu0 0
      %1115 = vmatprep.subr.bf16.mxu0 0
      %1116 = vmatpush1.bf16.xpose.msra.mxu0 0
      %1117 = vmatprep.subr.bf16.mxu0 0
      %1118 = vmatpush1.bf16.xpose.msra.mxu0 0
      %1119 = vmatprep.subr.bf16.mxu0 0
      %1120 = vmatpush1.bf16.xpose.msra.mxu0 0
      %1121 = vmatprep.subr.bf16.mxu0 0
      %1122 = vmatpush1.bf16.xpose.msra.mxu0 0
      %1123 = vmatprep.subr.bf16.mxu0 0
      %1124 = vmatpush1.bf16.xpose.msra.mxu0 0
      %1125 = vmatprep.subr.bf16.mxu0 0
      %1126 = vmatpush1.bf16.xpose.msra.mxu0 0
      %1127 = vmatprep.subr.bf16.mxu0 0
      %1128 = vmatpush1.bf16.xpose.msra.mxu0 0
      %1129 = vmatprep.subr.bf16.mxu0 0
      %1130 = vmatpush1.bf16.xpose.msra.mxu0 0
      %1131 = vmatprep.subr.bf16.mxu0 0
      %1132 = vmatpush1.bf16.xpose.msra.mxu0 0
      %1133 = vmatprep.subr.bf16.mxu0 0
      %1134 = vmatpush1.bf16.xpose.msra.mxu0 0
      %1135 = vmatprep.mubr.bf16.mxu0 0
      %1136 = vmatmul.mubr.bf16.gmra.mrb[0].mxu0 %v1098
      %v1137 = vpop.f32.mrb[0].mxu0
      %v1138 = vadd.f32 0.0, %v1137
      %v1139 = vpop.f32.mrb[0].mxu0
      %v1140 = vpop.f32.mrb[0].mxu0
      %v1141 = vpop.f32.mrb[0].mxu0
      %1142 = vdwg.mxu0
      %v1144 = vsel %vm820, %v803, 0
      %v1147 = vsel %vm820, %v811, 0
      %1149 = vmatprep.subr.bf16.mxu0 0
      %1150 = vmatpush1.bf16.xpose.msra.mxu0 %v1147
      %1151 = vmatprep.subr.bf16.mxu0 0
      %1152 = vmatpush1.bf16.xpose.msra.mxu0 0
      %1153 = vmatprep.subr.bf16.mxu0 0
      %1154 = vmatpush1.bf16.xpose.msra.mxu0 0
      %1155 = vmatprep.subr.bf16.mxu0 0
      %1156 = vmatpush1.bf16.xpose.msra.mxu0 0
      %1157 = vmatprep.subr.bf16.mxu0 0
      %1158 = vmatpush1.bf16.xpose.msra.mxu0 0
      %1159 = vmatprep.subr.bf16.mxu0 0
      %1160 = vmatpush1.bf16.xpose.msra.mxu0 0
      %1161 = vmatprep.subr.bf16.mxu0 0
      %1162 = vmatpush1.bf16.xpose.msra.mxu0 0
      %1163 = vmatprep.subr.bf16.mxu0 0
      %1164 = vmatpush1.bf16.xpose.msra.mxu0 0
      %1165 = vmatprep.subr.bf16.mxu0 0
      %1166 = vmatpush1.bf16.xpose.msra.mxu0 0
      %1167 = vmatprep.subr.bf16.mxu0 0
      %1168 = vmatpush1.bf16.xpose.msra.mxu0 0
      %1169 = vmatprep.subr.bf16.mxu0 0
      %1170 = vmatpush1.bf16.xpose.msra.mxu0 0
      %1171 = vmatprep.subr.bf16.mxu0 0
      %1172 = vmatpush1.bf16.xpose.msra.mxu0 0
      %1173 = vmatprep.subr.bf16.mxu0 0
      %1174 = vmatpush1.bf16.xpose.msra.mxu0 0
      %1175 = vmatprep.subr.bf16.mxu0 0
      %1176 = vmatpush1.bf16.xpose.msra.mxu0 0
      %1177 = vmatprep.subr.bf16.mxu0 0
      %1178 = vmatpush1.bf16.xpose.msra.mxu0 0
      %1179 = vmatprep.subr.bf16.mxu0 0
      %1180 = vmatpush1.bf16.xpose.msra.mxu0 0
      %1181 = vmatprep.mubr.bf16.mxu0 0
      %1182 = vmatmul.mubr.bf16.gmra.mrb[0].mxu0 %v1144
      %v1183 = vpop.f32.mrb[0].mxu0
      %v1184 = vadd.f32 0.0, %v1183
      %v1185 = vpop.f32.mrb[0].mxu0
      %v1186 = vpop.f32.mrb[0].mxu0
      %v1187 = vpop.f32.mrb[0].mxu0
      %1188 = vdwg.mxu0
      %vm1189 = vcmask 64512
      %v1190 = vsel %vm1189, %v862, -inf
      %1191 = vmax.xlane.f32.xlu0 %v1190
      %v1192 = vpop.xlane.xlu0 %1191
      %v1193 = vsel %vm1189, %v908, -inf
      %1194 = vmax.xlane.f32.xlu0 %v1193
      %v1195 = vpop.xlane.xlu0 %1194
      %v1196 = vsel %vm1189, %v954, -inf
      %1197 = vmax.xlane.f32.xlu0 %v1196
      %v1198 = vpop.xlane.xlu0 %1197
      %v1199 = vsel %vm1189, %v1000, -inf
      %1200 = vmax.xlane.f32.xlu0 %v1199
      %v1201 = vpop.xlane.xlu0 %1200
      %v1202 = vsel %vm1189, %v1046, -inf
      %1203 = vmax.xlane.f32.xlu0 %v1202
      %v1204 = vpop.xlane.xlu0 %1203
      %v1205 = vsel %vm1189, %v1092, -inf
      %1206 = vmax.xlane.f32.xlu0 %v1205
      %v1207 = vpop.xlane.xlu0 %1206
      %v1208 = vsel %vm1189, %v1138, -inf
      %1209 = vmax.xlane.f32.xlu0 %v1208
      %v1210 = vpop.xlane.xlu0 %1209
      %v1211 = vsel %vm1189, %v1184, -inf
      %1212 = vmax.xlane.f32.xlu0 %v1211
      %v1213 = vpop.xlane.xlu0 %1212
      %v1214 = vsub.f32 %v862, %v1192
      %v1215 = vsub.f32 %v908, %v1195
      %v1216 = vsub.f32 %v954, %v1198
      %v1217 = vsub.f32 %v1000, %v1201
      %v1218 = vsub.f32 %v1046, %v1204
      %v1219 = vsub.f32 %v1092, %v1207
      %v1220 = vsub.f32 %v1138, %v1210
      %v1221 = vsub.f32 %v1184, %v1213
      %v1222 = vmul.f32 %v1214, 1.442695
      %v1223 = vpow.pop %v1222
      %v1224 = vmul.f32 %v1215, 1.442695
      %v1225 = vpow.pop %v1224
      %v1226 = vmul.f32 %v1216, 1.442695
      %v1227 = vpow.pop %v1226
      %v1228 = vmul.f32 %v1217, 1.442695
      %v1229 = vpow.pop %v1228
      %v1230 = vmul.f32 %v1218, 1.442695
      %v1231 = vpow.pop %v1230
      %v1232 = vmul.f32 %v1219, 1.442695
      %v1233 = vpow.pop %v1232
      %v1234 = vmul.f32 %v1220, 1.442695
      %v1235 = vpow.pop %v1234
      %v1236 = vmul.f32 %v1221, 1.442695
      %v1237 = vpow.pop %v1236
      %v1238 = vsel %vm1189, %v1223, 0.0
      %1239 = vadd.xlane.f32.xlu0 %v1238
      %v1240 = vpop.xlane.xlu0 %1239
      %v1241 = vsel %vm1189, %v1225, 0.0
      %1242 = vadd.xlane.f32.xlu0 %v1241
      %v1243 = vpop.xlane.xlu0 %1242
      %v1244 = vsel %vm1189, %v1227, 0.0
      %1245 = vadd.xlane.f32.xlu0 %v1244
      %v1246 = vpop.xlane.xlu0 %1245
      %v1247 = vsel %vm1189, %v1229, 0.0
      %1248 = vadd.xlane.f32.xlu0 %v1247
      %v1249 = vpop.xlane.xlu0 %1248
      %v1250 = vsel %vm1189, %v1231, 0.0
      %1251 = vadd.xlane.f32.xlu0 %v1250
      %v1252 = vpop.xlane.xlu0 %1251
      %v1253 = vsel %vm1189, %v1233, 0.0
      %1254 = vadd.xlane.f32.xlu0 %v1253
      %v1255 = vpop.xlane.xlu0 %1254
      %v1256 = vsel %vm1189, %v1235, 0.0
      %1257 = vadd.xlane.f32.xlu0 %v1256
      %v1258 = vpop.xlane.xlu0 %1257
      %v1259 = vsel %vm1189, %v1237, 0.0
      %1260 = vadd.xlane.f32.xlu0 %v1259
      %v1261 = vpop.xlane.xlu0 %1260
      %v1262 = vrcp.pop %v1240
      %v1263 = vmul.f32 %v1223, %v1262
      %v1264 = vrcp.pop %v1243
      %v1265 = vmul.f32 %v1225, %v1264
      %v1266 = vrcp.pop %v1246
      %v1267 = vmul.f32 %v1227, %v1266
      %v1268 = vrcp.pop %v1249
      %v1269 = vmul.f32 %v1229, %v1268
      %v1270 = vrcp.pop %v1252
      %v1271 = vmul.f32 %v1231, %v1270
      %v1272 = vrcp.pop %v1255
      %v1273 = vmul.f32 %v1233, %v1272
      %v1274 = vrcp.pop %v1258
      %v1275 = vmul.f32 %v1235, %v1274
      %v1276 = vrcp.pop %v1261
      %v1277 = vmul.f32 %v1237, %v1276
      %v1278 = vpack.c.bf16 %v1263, %v1263
      %v1279 = vpack.c.bf16 %v1265, %v1265
      %v1280 = vpack.c.bf16 %v1267, %v1267
      %v1281 = vpack.c.bf16 %v1269, %v1269
      %v1282 = vpack.c.bf16 %v1271, %v1271
      %v1283 = vpack.c.bf16 %v1273, %v1273
      %v1284 = vpack.c.bf16 %v1275, %v1275
      %v1285 = vpack.c.bf16 %v1277, %v1277
      %v1287 = vsel %vm1189, %v1278, 0
      %vm1289 = vcmask 1043456
      %v1291 = vsel %vm1289, %v812, 0
      %1293 = vmatprep.subr.bf16.mxu0 0
      %1294 = vmatpush1.bf16.msra.mxu0 %v1291
      %1295 = vmatprep.subr.bf16.mxu0 0
      %1296 = vmatpush1.bf16.msra.mxu0 0
      %1297 = vmatprep.subr.bf16.mxu0 0
      %1298 = vmatpush1.bf16.msra.mxu0 0
      %1299 = vmatprep.subr.bf16.mxu0 0
      %1300 = vmatpush1.bf16.msra.mxu0 0
      %1301 = vmatprep.subr.bf16.mxu0 0
      %1302 = vmatpush1.bf16.msra.mxu0 0
      %1303 = vmatprep.subr.bf16.mxu0 0
      %1304 = vmatpush1.bf16.msra.mxu0 0
      %1305 = vmatprep.subr.bf16.mxu0 0
      %1306 = vmatpush1.bf16.msra.mxu0 0
      %1307 = vmatprep.subr.bf16.mxu0 0
      %1308 = vmatpush1.bf16.msra.mxu0 0
      %1309 = vmatprep.subr.bf16.mxu0 0
      %1310 = vmatpush1.bf16.msra.mxu0 0
      %1311 = vmatprep.subr.bf16.mxu0 0
      %1312 = vmatpush1.bf16.msra.mxu0 0
      %1313 = vmatprep.subr.bf16.mxu0 0
      %1314 = vmatpush1.bf16.msra.mxu0 0
      %1315 = vmatprep.subr.bf16.mxu0 0
      %1316 = vmatpush1.bf16.msra.mxu0 0
      %1317 = vmatprep.subr.bf16.mxu0 0
      %1318 = vmatpush1.bf16.msra.mxu0 0
      %1319 = vmatprep.subr.bf16.mxu0 0
      %1320 = vmatpush1.bf16.msra.mxu0 0
      %1321 = vmatprep.subr.bf16.mxu0 0
      %1322 = vmatpush1.bf16.msra.mxu0 0
      %1323 = vmatprep.subr.bf16.mxu0 0
      %1324 = vmatpush1.bf16.msra.mxu0 0
      %1325 = vmatprep.mubr.bf16.mxu0 0
      %1326 = vmatmul.mubr.bf16.gmra.mrb[0].mxu0 %v1287
      %v1327 = vpop.f32.mrb[0].mxu0
      %v1328 = vadd.f32 0.0, %v1327
      %v1329 = vpop.f32.mrb[0].mxu0
      %v1330 = vpop.f32.mrb[0].mxu0
      %v1331 = vpop.f32.mrb[0].mxu0
      %1332 = vdwg.mxu0
      %v1334 = vsel %vm1189, %v1279, 0
      %v1337 = vsel %vm1289, %v813, 0
      %1339 = vmatprep.subr.bf16.mxu0 0
      %1340 = vmatpush1.bf16.msra.mxu0 %v1337
      %1341 = vmatprep.subr.bf16.mxu0 0
      %1342 = vmatpush1.bf16.msra.mxu0 0
      %1343 = vmatprep.subr.bf16.mxu0 0
      %1344 = vmatpush1.bf16.msra.mxu0 0
      %1345 = vmatprep.subr.bf16.mxu0 0
      %1346 = vmatpush1.bf16.msra.mxu0 0
      %1347 = vmatprep.subr.bf16.mxu0 0
      %1348 = vmatpush1.bf16.msra.mxu0 0
      %1349 = vmatprep.subr.bf16.mxu0 0
      %1350 = vmatpush1.bf16.msra.mxu0 0
      %1351 = vmatprep.subr.bf16.mxu0 0
      %1352 = vmatpush1.bf16.msra.mxu0 0
      %1353 = vmatprep.subr.bf16.mxu0 0
      %1354 = vmatpush1.bf16.msra.mxu0 0
      %1355 = vmatprep.subr.bf16.mxu0 0
      %1356 = vmatpush1.bf16.msra.mxu0 0
      %1357 = vmatprep.subr.bf16.mxu0 0
      %1358 = vmatpush1.bf16.msra.mxu0 0
      %1359 = vmatprep.subr.bf16.mxu0 0
      %1360 = vmatpush1.bf16.msra.mxu0 0
      %1361 = vmatprep.subr.bf16.mxu0 0
      %1362 = vmatpush1.bf16.msra.mxu0 0
      %1363 = vmatprep.subr.bf16.mxu0 0
      %1364 = vmatpush1.bf16.msra.mxu0 0
      %1365 = vmatprep.subr.bf16.mxu0 0
      %1366 = vmatpush1.bf16.msra.mxu0 0
      %1367 = vmatprep.subr.bf16.mxu0 0
      %1368 = vmatpush1.bf16.msra.mxu0 0
      %1369 = vmatprep.subr.bf16.mxu0 0
      %1370 = vmatpush1.bf16.msra.mxu0 0
      %1371 = vmatprep.mubr.bf16.mxu0 0
      %1372 = vmatmul.mubr.bf16.gmra.mrb[0].mxu0 %v1334
      %v1373 = vpop.f32.mrb[0].mxu0
      %v1374 = vadd.f32 0.0, %v1373
      %v1375 = vpop.f32.mrb[0].mxu0
      %v1376 = vpop.f32.mrb[0].mxu0
      %v1377 = vpop.f32.mrb[0].mxu0
      %1378 = vdwg.mxu0
      %v1380 = vsel %vm1189, %v1280, 0
      %v1383 = vsel %vm1289, %v814, 0
      %1385 = vmatprep.subr.bf16.mxu0 0
      %1386 = vmatpush1.bf16.msra.mxu0 %v1383
      %1387 = vmatprep.subr.bf16.mxu0 0
      %1388 = vmatpush1.bf16.msra.mxu0 0
      %1389 = vmatprep.subr.bf16.mxu0 0
      %1390 = vmatpush1.bf16.msra.mxu0 0
      %1391 = vmatprep.subr.bf16.mxu0 0
      %1392 = vmatpush1.bf16.msra.mxu0 0
      %1393 = vmatprep.subr.bf16.mxu0 0
      %1394 = vmatpush1.bf16.msra.mxu0 0
      %1395 = vmatprep.subr.bf16.mxu0 0
      %1396 = vmatpush1.bf16.msra.mxu0 0
      %1397 = vmatprep.subr.bf16.mxu0 0
      %1398 = vmatpush1.bf16.msra.mxu0 0
      %1399 = vmatprep.subr.bf16.mxu0 0
      %1400 = vmatpush1.bf16.msra.mxu0 0
      %1401 = vmatprep.subr.bf16.mxu0 0
      %1402 = vmatpush1.bf16.msra.mxu0 0
      %1403 = vmatprep.subr.bf16.mxu0 0
      %1404 = vmatpush1.bf16.msra.mxu0 0
      %1405 = vmatprep.subr.bf16.mxu0 0
      %1406 = vmatpush1.bf16.msra.mxu0 0
      %1407 = vmatprep.subr.bf16.mxu0 0
      %1408 = vmatpush1.bf16.msra.mxu0 0
      %1409 = vmatprep.subr.bf16.mxu0 0
      %1410 = vmatpush1.bf16.msra.mxu0 0
      %1411 = vmatprep.subr.bf16.mxu0 0
      %1412 = vmatpush1.bf16.msra.mxu0 0
      %1413 = vmatprep.subr.bf16.mxu0 0
      %1414 = vmatpush1.bf16.msra.mxu0 0
      %1415 = vmatprep.subr.bf16.mxu0 0
      %1416 = vmatpush1.bf16.msra.mxu0 0
      %1417 = vmatprep.mubr.bf16.mxu0 0
      %1418 = vmatmul.mubr.bf16.gmra.mrb[0].mxu0 %v1380
      %v1419 = vpop.f32.mrb[0].mxu0
      %v1420 = vadd.f32 0.0, %v1419
      %v1421 = vpop.f32.mrb[0].mxu0
      %v1422 = vpop.f32.mrb[0].mxu0
      %v1423 = vpop.f32.mrb[0].mxu0
      %1424 = vdwg.mxu0
      %v1426 = vsel %vm1189, %v1281, 0
      %v1429 = vsel %vm1289, %v815, 0
      %1431 = vmatprep.subr.bf16.mxu0 0
      %1432 = vmatpush1.bf16.msra.mxu0 %v1429
      %1433 = vmatprep.subr.bf16.mxu0 0
      %1434 = vmatpush1.bf16.msra.mxu0 0
      %1435 = vmatprep.subr.bf16.mxu0 0
      %1436 = vmatpush1.bf16.msra.mxu0 0
      %1437 = vmatprep.subr.bf16.mxu0 0
      %1438 = vmatpush1.bf16.msra.mxu0 0
      %1439 = vmatprep.subr.bf16.mxu0 0
      %1440 = vmatpush1.bf16.msra.mxu0 0
      %1441 = vmatprep.subr.bf16.mxu0 0
      %1442 = vmatpush1.bf16.msra.mxu0 0
      %1443 = vmatprep.subr.bf16.mxu0 0
      %1444 = vmatpush1.bf16.msra.mxu0 0
      %1445 = vmatprep.subr.bf16.mxu0 0
      %1446 = vmatpush1.bf16.msra.mxu0 0
      %1447 = vmatprep.subr.bf16.mxu0 0
      %1448 = vmatpush1.bf16.msra.mxu0 0
      %1449 = vmatprep.subr.bf16.mxu0 0
      %1450 = vmatpush1.bf16.msra.mxu0 0
      %1451 = vmatprep.subr.bf16.mxu0 0
      %1452 = vmatpush1.bf16.msra.mxu0 0
      %1453 = vmatprep.subr.bf16.mxu0 0
      %1454 = vmatpush1.bf16.msra.mxu0 0
      %1455 = vmatprep.subr.bf16.mxu0 0
      %1456 = vmatpush1.bf16.msra.mxu0 0
      %1457 = vmatprep.subr.bf16.mxu0 0
      %1458 = vmatpush1.bf16.msra.mxu0 0
      %1459 = vmatprep.subr.bf16.mxu0 0
      %1460 = vmatpush1.bf16.msra.mxu0 0
      %1461 = vmatprep.subr.bf16.mxu0 0
      %1462 = vmatpush1.bf16.msra.mxu0 0
      %1463 = vmatprep.mubr.bf16.mxu0 0
      %1464 = vmatmul.mubr.bf16.gmra.mrb[0].mxu0 %v1426
      %v1465 = vpop.f32.mrb[0].mxu0
      %v1466 = vadd.f32 0.0, %v1465
      %v1467 = vpop.f32.mrb[0].mxu0
      %v1468 = vpop.f32.mrb[0].mxu0
      %v1469 = vpop.f32.mrb[0].mxu0
      %1470 = vdwg.mxu0
      %v1472 = vsel %vm1189, %v1282, 0
      %v1475 = vsel %vm1289, %v816, 0
      %1477 = vmatprep.subr.bf16.mxu0 0
      %1478 = vmatpush1.bf16.msra.mxu0 %v1475
      %1479 = vmatprep.subr.bf16.mxu0 0
      %1480 = vmatpush1.bf16.msra.mxu0 0
      %1481 = vmatprep.subr.bf16.mxu0 0
      %1482 = vmatpush1.bf16.msra.mxu0 0
      %1483 = vmatprep.subr.bf16.mxu0 0
      %1484 = vmatpush1.bf16.msra.mxu0 0
      %1485 = vmatprep.subr.bf16.mxu0 0
      %1486 = vmatpush1.bf16.msra.mxu0 0
      %1487 = vmatprep.subr.bf16.mxu0 0
      %1488 = vmatpush1.bf16.msra.mxu0 0
      %1489 = vmatprep.subr.bf16.mxu0 0
      %1490 = vmatpush1.bf16.msra.mxu0 0
      %1491 = vmatprep.subr.bf16.mxu0 0
      %1492 = vmatpush1.bf16.msra.mxu0 0
      %1493 = vmatprep.subr.bf16.mxu0 0
      %1494 = vmatpush1.bf16.msra.mxu0 0
      %1495 = vmatprep.subr.bf16.mxu0 0
      %1496 = vmatpush1.bf16.msra.mxu0 0
      %1497 = vmatprep.subr.bf16.mxu0 0
      %1498 = vmatpush1.bf16.msra.mxu0 0
      %1499 = vmatprep.subr.bf16.mxu0 0
      %1500 = vmatpush1.bf16.msra.mxu0 0
      %1501 = vmatprep.subr.bf16.mxu0 0
      %1502 = vmatpush1.bf16.msra.mxu0 0
      %1503 = vmatprep.subr.bf16.mxu0 0
      %1504 = vmatpush1.bf16.msra.mxu0 0
      %1505 = vmatprep.subr.bf16.mxu0 0
      %1506 = vmatpush1.bf16.msra.mxu0 0
      %1507 = vmatprep.subr.bf16.mxu0 0
      %1508 = vmatpush1.bf16.msra.mxu0 0
      %1509 = vmatprep.mubr.bf16.mxu0 0
      %1510 = vmatmul.mubr.bf16.gmra.mrb[0].mxu0 %v1472
      %v1511 = vpop.f32.mrb[0].mxu0
      %v1512 = vadd.f32 0.0, %v1511
      %v1513 = vpop.f32.mrb[0].mxu0
      %v1514 = vpop.f32.mrb[0].mxu0
      %v1515 = vpop.f32.mrb[0].mxu0
      %1516 = vdwg.mxu0
      %v1518 = vsel %vm1189, %v1283, 0
      %v1521 = vsel %vm1289, %v817, 0
      %1523 = vmatprep.subr.bf16.mxu0 0
      %1524 = vmatpush1.bf16.msra.mxu0 %v1521
      %1525 = vmatprep.subr.bf16.mxu0 0
      %1526 = vmatpush1.bf16.msra.mxu0 0
      %1527 = vmatprep.subr.bf16.mxu0 0
      %1528 = vmatpush1.bf16.msra.mxu0 0
      %1529 = vmatprep.subr.bf16.mxu0 0
      %1530 = vmatpush1.bf16.msra.mxu0 0
      %1531 = vmatprep.subr.bf16.mxu0 0
      %1532 = vmatpush1.bf16.msra.mxu0 0
      %1533 = vmatprep.subr.bf16.mxu0 0
      %1534 = vmatpush1.bf16.msra.mxu0 0
      %1535 = vmatprep.subr.bf16.mxu0 0
      %1536 = vmatpush1.bf16.msra.mxu0 0
      %1537 = vmatprep.subr.bf16.mxu0 0
      %1538 = vmatpush1.bf16.msra.mxu0 0
      %1539 = vmatprep.subr.bf16.mxu0 0
      %1540 = vmatpush1.bf16.msra.mxu0 0
      %1541 = vmatprep.subr.bf16.mxu0 0
      %1542 = vmatpush1.bf16.msra.mxu0 0
      %1543 = vmatprep.subr.bf16.mxu0 0
      %1544 = vmatpush1.bf16.msra.mxu0 0
      %1545 = vmatprep.subr.bf16.mxu0 0
      %1546 = vmatpush1.bf16.msra.mxu0 0
      %1547 = vmatprep.subr.bf16.mxu0 0
      %1548 = vmatpush1.bf16.msra.mxu0 0
      %1549 = vmatprep.subr.bf16.mxu0 0
      %1550 = vmatpush1.bf16.msra.mxu0 0
      %1551 = vmatprep.subr.bf16.mxu0 0
      %1552 = vmatpush1.bf16.msra.mxu0 0
      %1553 = vmatprep.subr.bf16.mxu0 0
      %1554 = vmatpush1.bf16.msra.mxu0 0
      %1555 = vmatprep.mubr.bf16.mxu0 0
      %1556 = vmatmul.mubr.bf16.gmra.mrb[0].mxu0 %v1518
      %v1557 = vpop.f32.mrb[0].mxu0
      %v1558 = vadd.f32 0.0, %v1557
      %v1559 = vpop.f32.mrb[0].mxu0
      %v1560 = vpop.f32.mrb[0].mxu0
      %v1561 = vpop.f32.mrb[0].mxu0
      %1562 = vdwg.mxu0
      %v1564 = vsel %vm1189, %v1284, 0
      %v1567 = vsel %vm1289, %v818, 0
      %1569 = vmatprep.subr.bf16.mxu0 0
      %1570 = vmatpush1.bf16.msra.mxu0 %v1567
      %1571 = vmatprep.subr.bf16.mxu0 0
      %1572 = vmatpush1.bf16.msra.mxu0 0
      %1573 = vmatprep.subr.bf16.mxu0 0
      %1574 = vmatpush1.bf16.msra.mxu0 0
      %1575 = vmatprep.subr.bf16.mxu0 0
      %1576 = vmatpush1.bf16.msra.mxu0 0
      %1577 = vmatprep.subr.bf16.mxu0 0
      %1578 = vmatpush1.bf16.msra.mxu0 0
      %1579 = vmatprep.subr.bf16.mxu0 0
      %1580 = vmatpush1.bf16.msra.mxu0 0
      %1581 = vmatprep.subr.bf16.mxu0 0
      %1582 = vmatpush1.bf16.msra.mxu0 0
      %1583 = vmatprep.subr.bf16.mxu0 0
      %1584 = vmatpush1.bf16.msra.mxu0 0
      %1585 = vmatprep.subr.bf16.mxu0 0
      %1586 = vmatpush1.bf16.msra.mxu0 0
      %1587 = vmatprep.subr.bf16.mxu0 0
      %1588 = vmatpush1.bf16.msra.mxu0 0
      %1589 = vmatprep.subr.bf16.mxu0 0
      %1590 = vmatpush1.bf16.msra.mxu0 0
      %1591 = vmatprep.subr.bf16.mxu0 0
      %1592 = vmatpush1.bf16.msra.mxu0 0
      %1593 = vmatprep.subr.bf16.mxu0 0
      %1594 = vmatpush1.bf16.msra.mxu0 0
      %1595 = vmatprep.subr.bf16.mxu0 0
      %1596 = vmatpush1.bf16.msra.mxu0 0
      %1597 = vmatprep.subr.bf16.mxu0 0
      %1598 = vmatpush1.bf16.msra.mxu0 0
      %1599 = vmatprep.subr.bf16.mxu0 0
      %1600 = vmatpush1.bf16.msra.mxu0 0
      %1601 = vmatprep.mubr.bf16.mxu0 0
      %1602 = vmatmul.mubr.bf16.gmra.mrb[0].mxu0 %v1564
      %v1603 = vpop.f32.mrb[0].mxu0
      %v1604 = vadd.f32 0.0, %v1603
      %v1605 = vpop.f32.mrb[0].mxu0
      %v1606 = vpop.f32.mrb[0].mxu0
      %v1607 = vpop.f32.mrb[0].mxu0
      %1608 = vdwg.mxu0
      %v1610 = vsel %vm1189, %v1285, 0
      %v1613 = vsel %vm1289, %v819, 0
      %1615 = vmatprep.subr.bf16.mxu0 0
      %1616 = vmatpush1.bf16.msra.mxu0 %v1613
      %1617 = vmatprep.subr.bf16.mxu0 0
      %1618 = vmatpush1.bf16.msra.mxu0 0
      %1619 = vmatprep.subr.bf16.mxu0 0
      %1620 = vmatpush1.bf16.msra.mxu0 0
      %1621 = vmatprep.subr.bf16.mxu0 0
      %1622 = vmatpush1.bf16.msra.mxu0 0
      %1623 = vmatprep.subr.bf16.mxu0 0
      %1624 = vmatpush1.bf16.msra.mxu0 0
      %1625 = vmatprep.subr.bf16.mxu0 0
      %1626 = vmatpush1.bf16.msra.mxu0 0
      %1627 = vmatprep.subr.bf16.mxu0 0
      %1628 = vmatpush1.bf16.msra.mxu0 0
      %1629 = vmatprep.subr.bf16.mxu0 0
      %1630 = vmatpush1.bf16.msra.mxu0 0
      %1631 = vmatprep.subr.bf16.mxu0 0
      %1632 = vmatpush1.bf16.msra.mxu0 0
      %1633 = vmatprep.subr.bf16.mxu0 0
      %1634 = vmatpush1.bf16.msra.mxu0 0
      %1635 = vmatprep.subr.bf16.mxu0 0
      %1636 = vmatpush1.bf16.msra.mxu0 0
      %1637 = vmatprep.subr.bf16.mxu0 0
      %1638 = vmatpush1.bf16.msra.mxu0 0
      %1639 = vmatprep.subr.bf16.mxu0 0
      %1640 = vmatpush1.bf16.msra.mxu0 0
      %1641 = vmatprep.subr.bf16.mxu0 0
      %1642 = vmatpush1.bf16.msra.mxu0 0
      %1643 = vmatprep.subr.bf16.mxu0 0
      %1644 = vmatpush1.bf16.msra.mxu0 0
      %1645 = vmatprep.subr.bf16.mxu0 0
      %1646 = vmatpush1.bf16.msra.mxu0 0
      %1647 = vmatprep.mubr.bf16.mxu0 0
      %1648 = vmatmul.mubr.bf16.gmra.mrb[0].mxu0 %v1610
      %v1649 = vpop.f32.mrb[0].mxu0
      %v1650 = vadd.f32 0.0, %v1649
      %v1651 = vpop.f32.mrb[0].mxu0
      %v1652 = vpop.f32.mrb[0].mxu0
      %v1653 = vpop.f32.mrb[0].mxu0
      %1654 = vdwg.mxu0
      %v1655 = vld [vmem:[%s7] sm:$0xf]
      %v1656 = vld [vmem:[%s7 + $0x4] sm:$0xf]
      %v1657 = vpack.c.bf16 %v1374, %v1328
      %v1658 = vpack.c.bf16 %v1466, %v1420
      %v1659 = vpack.c.bf16 %v1558, %v1512
      %v1660 = vpack.c.bf16 %v1650, %v1604
      %1662 = vrot.lane.b32.xlu0 %v796, 112
      %v1663 = vpop.permute.xlu0 %1662
      %1665 = vrot.lane.b32.xlu0 %v804, 112
      %v1666 = vpop.permute.xlu0 %1665
      %v1668 = vsel %vm820, %v1663, 0
      %v1671 = vsel %vm820, %v1666, 0
      %1673 = vmatprep.subr.bf16.mxu0 0
      %1674 = vmatpush1.bf16.xpose.msra.mxu0 %v1671
      %1675 = vmatprep.subr.bf16.mxu0 0
      %1676 = vmatpush1.bf16.xpose.msra.mxu0 0
      %1677 = vmatprep.subr.bf16.mxu0 0
      %1678 = vmatpush1.bf16.xpose.msra.mxu0 0
      %1679 = vmatprep.subr.bf16.mxu0 0
      %1680 = vmatpush1.bf16.xpose.msra.mxu0 0
      %1681 = vmatprep.subr.bf16.mxu0 0
      %1682 = vmatpush1.bf16.xpose.msra.mxu0 0
      %1683 = vmatprep.subr.bf16.mxu0 0
      %1684 = vmatpush1.bf16.xpose.msra.mxu0 0
      %1685 = vmatprep.subr.bf16.mxu0 0
      %1686 = vmatpush1.bf16.xpose.msra.mxu0 0
      %1687 = vmatprep.subr.bf16.mxu0 0
      %1688 = vmatpush1.bf16.xpose.msra.mxu0 0
      %1689 = vmatprep.subr.bf16.mxu0 0
      %1690 = vmatpush1.bf16.xpose.msra.mxu0 0
      %1691 = vmatprep.subr.bf16.mxu0 0
      %1692 = vmatpush1.bf16.xpose.msra.mxu0 0
      %1693 = vmatprep.subr.bf16.mxu0 0
      %1694 = vmatpush1.bf16.xpose.msra.mxu0 0
      %1695 = vmatprep.subr.bf16.mxu0 0
      %1696 = vmatpush1.bf16.xpose.msra.mxu0 0
      %1697 = vmatprep.subr.bf16.mxu0 0
      %1698 = vmatpush1.bf16.xpose.msra.mxu0 0
      %1699 = vmatprep.subr.bf16.mxu0 0
      %1700 = vmatpush1.bf16.xpose.msra.mxu0 0
      %1701 = vmatprep.subr.bf16.mxu0 0
      %1702 = vmatpush1.bf16.xpose.msra.mxu0 0
      %1703 = vmatprep.subr.bf16.mxu0 0
      %1704 = vmatpush1.bf16.xpose.msra.mxu0 0
      %1705 = vmatprep.mubr.bf16.mxu0 0
      %1706 = vmatmul.mubr.bf16.gmra.mrb[0].mxu0 %v1668
      %v1707 = vpop.f32.mrb[0].mxu0
      %v1708 = vadd.f32 0.0, %v1707
      %v1709 = vpop.f32.mrb[0].mxu0
      %v1710 = vpop.f32.mrb[0].mxu0
      %v1711 = vpop.f32.mrb[0].mxu0
      %1712 = vdwg.mxu0
      %1714 = vrot.lane.b32.xlu0 %v797, 112
      %v1715 = vpop.permute.xlu0 %1714
      %1717 = vrot.lane.b32.xlu0 %v805, 112
      %v1718 = vpop.permute.xlu0 %1717
      %v1720 = vsel %vm820, %v1715, 0
      %v1723 = vsel %vm820, %v1718, 0
      %1725 = vmatprep.subr.bf16.mxu0 0
      %1726 = vmatpush1.bf16.xpose.msra.mxu0 %v1723
      %1727 = vmatprep.subr.bf16.mxu0 0
      %1728 = vmatpush1.bf16.xpose.msra.mxu0 0
      %1729 = vmatprep.subr.bf16.mxu0 0
      %1730 = vmatpush1.bf16.xpose.msra.mxu0 0
      %1731 = vmatprep.subr.bf16.mxu0 0
      %1732 = vmatpush1.bf16.xpose.msra.mxu0 0
      %1733 = vmatprep.subr.bf16.mxu0 0
      %1734 = vmatpush1.bf16.xpose.msra.mxu0 0
      %1735 = vmatprep.subr.bf16.mxu0 0
      %1736 = vmatpush1.bf16.xpose.msra.mxu0 0
      %1737 = vmatprep.subr.bf16.mxu0 0
      %1738 = vmatpush1.bf16.xpose.msra.mxu0 0
      %1739 = vmatprep.subr.bf16.mxu0 0
      %1740 = vmatpush1.bf16.xpose.msra.mxu0 0
      %1741 = vmatprep.subr.bf16.mxu0 0
      %1742 = vmatpush1.bf16.xpose.msra.mxu0 0
      %1743 = vmatprep.subr.bf16.mxu0 0
      %1744 = vmatpush1.bf16.xpose.msra.mxu0 0
      %1745 = vmatprep.subr.bf16.mxu0 0
      %1746 = vmatpush1.bf16.xpose.msra.mxu0 0
      %1747 = vmatprep.subr.bf16.mxu0 0
      %1748 = vmatpush1.bf16.xpose.msra.mxu0 0
      %1749 = vmatprep.subr.bf16.mxu0 0
      %1750 = vmatpush1.bf16.xpose.msra.mxu0 0
      %1751 = vmatprep.subr.bf16.mxu0 0
      %1752 = vmatpush1.bf16.xpose.msra.mxu0 0
      %1753 = vmatprep.subr.bf16.mxu0 0
      %1754 = vmatpush1.bf16.xpose.msra.mxu0 0
      %1755 = vmatprep.subr.bf16.mxu0 0
      %1756 = vmatpush1.bf16.xpose.msra.mxu0 0
      %1757 = vmatprep.mubr.bf16.mxu0 0
      %1758 = vmatmul.mubr.bf16.gmra.mrb[0].mxu0 %v1720
      %v1759 = vpop.f32.mrb[0].mxu0
      %v1760 = vadd.f32 0.0, %v1759
      %v1761 = vpop.f32.mrb[0].mxu0
      %v1762 = vpop.f32.mrb[0].mxu0
      %v1763 = vpop.f32.mrb[0].mxu0
      %1764 = vdwg.mxu0
      %1766 = vrot.lane.b32.xlu0 %v798, 112
      %v1767 = vpop.permute.xlu0 %1766
      %1769 = vrot.lane.b32.xlu0 %v806, 112
      %v1770 = vpop.permute.xlu0 %1769
      %v1772 = vsel %vm820, %v1767, 0
      %v1775 = vsel %vm820, %v1770, 0
      %1777 = vmatprep.subr.bf16.mxu0 0
      %1778 = vmatpush1.bf16.xpose.msra.mxu0 %v1775
      %1779 = vmatprep.subr.bf16.mxu0 0
      %1780 = vmatpush1.bf16.xpose.msra.mxu0 0
      %1781 = vmatprep.subr.bf16.mxu0 0
      %1782 = vmatpush1.bf16.xpose.msra.mxu0 0
      %1783 = vmatprep.subr.bf16.mxu0 0
      %1784 = vmatpush1.bf16.xpose.msra.mxu0 0
      %1785 = vmatprep.subr.bf16.mxu0 0
      %1786 = vmatpush1.bf16.xpose.msra.mxu0 0
      %1787 = vmatprep.subr.bf16.mxu0 0
      %1788 = vmatpush1.bf16.xpose.msra.mxu0 0
      %1789 = vmatprep.subr.bf16.mxu0 0
      %1790 = vmatpush1.bf16.xpose.msra.mxu0 0
      %1791 = vmatprep.subr.bf16.mxu0 0
      %1792 = vmatpush1.bf16.xpose.msra.mxu0 0
      %1793 = vmatprep.subr.bf16.mxu0 0
      %1794 = vmatpush1.bf16.xpose.msra.mxu0 0
      %1795 = vmatprep.subr.bf16.mxu0 0
      %1796 = vmatpush1.bf16.xpose.msra.mxu0 0
      %1797 = vmatprep.subr.bf16.mxu0 0
      %1798 = vmatpush1.bf16.xpose.msra.mxu0 0
      %1799 = vmatprep.subr.bf16.mxu0 0
      %1800 = vmatpush1.bf16.xpose.msra.mxu0 0
      %1801 = vmatprep.subr.bf16.mxu0 0
      %1802 = vmatpush1.bf16.xpose.msra.mxu0 0
      %1803 = vmatprep.subr.bf16.mxu0 0
      %1804 = vmatpush1.bf16.xpose.msra.mxu0 0
      %1805 = vmatprep.subr.bf16.mxu0 0
      %1806 = vmatpush1.bf16.xpose.msra.mxu0 0
      %1807 = vmatprep.subr.bf16.mxu0 0
      %1808 = vmatpush1.bf16.xpose.msra.mxu0 0
      %1809 = vmatprep.mubr.bf16.mxu0 0
      %1810 = vmatmul.mubr.bf16.gmra.mrb[0].mxu0 %v1772
      %v1811 = vpop.f32.mrb[0].mxu0
      %v1812 = vadd.f32 0.0, %v1811
      %v1813 = vpop.f32.mrb[0].mxu0
      %v1814 = vpop.f32.mrb[0].mxu0
      %v1815 = vpop.f32.mrb[0].mxu0
      %1816 = vdwg.mxu0
      %1818 = vrot.lane.b32.xlu0 %v799, 112
      %v1819 = vpop.permute.xlu0 %1818
      %1821 = vrot.lane.b32.xlu0 %v807, 112
      %v1822 = vpop.permute.xlu0 %1821
      %v1824 = vsel %vm820, %v1819, 0
      %v1827 = vsel %vm820, %v1822, 0
      %1829 = vmatprep.subr.bf16.mxu0 0
      %1830 = vmatpush1.bf16.xpose.msra.mxu0 %v1827
      %1831 = vmatprep.subr.bf16.mxu0 0
      %1832 = vmatpush1.bf16.xpose.msra.mxu0 0
      %1833 = vmatprep.subr.bf16.mxu0 0
      %1834 = vmatpush1.bf16.xpose.msra.mxu0 0
      %1835 = vmatprep.subr.bf16.mxu0 0
      %1836 = vmatpush1.bf16.xpose.msra.mxu0 0
      %1837 = vmatprep.subr.bf16.mxu0 0
      %1838 = vmatpush1.bf16.xpose.msra.mxu0 0
      %1839 = vmatprep.subr.bf16.mxu0 0
      %1840 = vmatpush1.bf16.xpose.msra.mxu0 0
      %1841 = vmatprep.subr.bf16.mxu0 0
      %1842 = vmatpush1.bf16.xpose.msra.mxu0 0
      %1843 = vmatprep.subr.bf16.mxu0 0
      %1844 = vmatpush1.bf16.xpose.msra.mxu0 0
      %1845 = vmatprep.subr.bf16.mxu0 0
      %1846 = vmatpush1.bf16.xpose.msra.mxu0 0
      %1847 = vmatprep.subr.bf16.mxu0 0
      %1848 = vmatpush1.bf16.xpose.msra.mxu0 0
      %1849 = vmatprep.subr.bf16.mxu0 0
      %1850 = vmatpush1.bf16.xpose.msra.mxu0 0
      %1851 = vmatprep.subr.bf16.mxu0 0
      %1852 = vmatpush1.bf16.xpose.msra.mxu0 0
      %1853 = vmatprep.subr.bf16.mxu0 0
      %1854 = vmatpush1.bf16.xpose.msra.mxu0 0
      %1855 = vmatprep.subr.bf16.mxu0 0
      %1856 = vmatpush1.bf16.xpose.msra.mxu0 0
      %1857 = vmatprep.subr.bf16.mxu0 0
      %1858 = vmatpush1.bf16.xpose.msra.mxu0 0
      %1859 = vmatprep.subr.bf16.mxu0 0
      %1860 = vmatpush1.bf16.xpose.msra.mxu0 0
      %1861 = vmatprep.mubr.bf16.mxu0 0
      %1862 = vmatmul.mubr.bf16.gmra.mrb[0].mxu0 %v1824
      %v1863 = vpop.f32.mrb[0].mxu0
      %v1864 = vadd.f32 0.0, %v1863
      %v1865 = vpop.f32.mrb[0].mxu0
      %v1866 = vpop.f32.mrb[0].mxu0
      %v1867 = vpop.f32.mrb[0].mxu0
      %1868 = vdwg.mxu0
      %1870 = vrot.lane.b32.xlu0 %v800, 112
      %v1871 = vpop.permute.xlu0 %1870
      %1873 = vrot.lane.b32.xlu0 %v808, 112
      %v1874 = vpop.permute.xlu0 %1873
      %v1876 = vsel %vm820, %v1871, 0
      %v1879 = vsel %vm820, %v1874, 0
      %1881 = vmatprep.subr.bf16.mxu0 0
      %1882 = vmatpush1.bf16.xpose.msra.mxu0 %v1879
      %1883 = vmatprep.subr.bf16.mxu0 0
      %1884 = vmatpush1.bf16.xpose.msra.mxu0 0
      %1885 = vmatprep.subr.bf16.mxu0 0
      %1886 = vmatpush1.bf16.xpose.msra.mxu0 0
      %1887 = vmatprep.subr.bf16.mxu0 0
      %1888 = vmatpush1.bf16.xpose.msra.mxu0 0
      %1889 = vmatprep.subr.bf16.mxu0 0
      %1890 = vmatpush1.bf16.xpose.msra.mxu0 0
      %1891 = vmatprep.subr.bf16.mxu0 0
      %1892 = vmatpush1.bf16.xpose.msra.mxu0 0
      %1893 = vmatprep.subr.bf16.mxu0 0
      %1894 = vmatpush1.bf16.xpose.msra.mxu0 0
      %1895 = vmatprep.subr.bf16.mxu0 0
      %1896 = vmatpush1.bf16.xpose.msra.mxu0 0
      %1897 = vmatprep.subr.bf16.mxu0 0
      %1898 = vmatpush1.bf16.xpose.msra.mxu0 0
      %1899 = vmatprep.subr.bf16.mxu0 0
      %1900 = vmatpush1.bf16.xpose.msra.mxu0 0
      %1901 = vmatprep.subr.bf16.mxu0 0
      %1902 = vmatpush1.bf16.xpose.msra.mxu0 0
      %1903 = vmatprep.subr.bf16.mxu0 0
      %1904 = vmatpush1.bf16.xpose.msra.mxu0 0
      %1905 = vmatprep.subr.bf16.mxu0 0
      %1906 = vmatpush1.bf16.xpose.msra.mxu0 0
      %1907 = vmatprep.subr.bf16.mxu0 0
      %1908 = vmatpush1.bf16.xpose.msra.mxu0 0
      %1909 = vmatprep.subr.bf16.mxu0 0
      %1910 = vmatpush1.bf16.xpose.msra.mxu0 0
      %1911 = vmatprep.subr.bf16.mxu0 0
      %1912 = vmatpush1.bf16.xpose.msra.mxu0 0
      %1913 = vmatprep.mubr.bf16.mxu0 0
      %1914 = vmatmul.mubr.bf16.gmra.mrb[0].mxu0 %v1876
      %v1915 = vpop.f32.mrb[0].mxu0
      %v1916 = vadd.f32 0.0, %v1915
      %v1917 = vpop.f32.mrb[0].mxu0
      %v1918 = vpop.f32.mrb[0].mxu0
      %v1919 = vpop.f32.mrb[0].mxu0
      %1920 = vdwg.mxu0
      %1922 = vrot.lane.b32.xlu0 %v801, 112
      %v1923 = vpop.permute.xlu0 %1922
      %1925 = vrot.lane.b32.xlu0 %v809, 112
      %v1926 = vpop.permute.xlu0 %1925
      %v1928 = vsel %vm820, %v1923, 0
      %v1931 = vsel %vm820, %v1926, 0
      %1933 = vmatprep.subr.bf16.mxu0 0
      %1934 = vmatpush1.bf16.xpose.msra.mxu0 %v1931
      %1935 = vmatprep.subr.bf16.mxu0 0
      %1936 = vmatpush1.bf16.xpose.msra.mxu0 0
      %1937 = vmatprep.subr.bf16.mxu0 0
      %1938 = vmatpush1.bf16.xpose.msra.mxu0 0
      %1939 = vmatprep.subr.bf16.mxu0 0
      %1940 = vmatpush1.bf16.xpose.msra.mxu0 0
      %1941 = vmatprep.subr.bf16.mxu0 0
      %1942 = vmatpush1.bf16.xpose.msra.mxu0 0
      %1943 = vmatprep.subr.bf16.mxu0 0
      %1944 = vmatpush1.bf16.xpose.msra.mxu0 0
      %1945 = vmatprep.subr.bf16.mxu0 0
      %1946 = vmatpush1.bf16.xpose.msra.mxu0 0
      %1947 = vmatprep.subr.bf16.mxu0 0
      %1948 = vmatpush1.bf16.xpose.msra.mxu0 0
      %1949 = vmatprep.subr.bf16.mxu0 0
      %1950 = vmatpush1.bf16.xpose.msra.mxu0 0
      %1951 = vmatprep.subr.bf16.mxu0 0
      %1952 = vmatpush1.bf16.xpose.msra.mxu0 0
      %1953 = vmatprep.subr.bf16.mxu0 0
      %1954 = vmatpush1.bf16.xpose.msra.mxu0 0
      %1955 = vmatprep.subr.bf16.mxu0 0
      %1956 = vmatpush1.bf16.xpose.msra.mxu0 0
      %1957 = vmatprep.subr.bf16.mxu0 0
      %1958 = vmatpush1.bf16.xpose.msra.mxu0 0
      %1959 = vmatprep.subr.bf16.mxu0 0
      %1960 = vmatpush1.bf16.xpose.msra.mxu0 0
      %1961 = vmatprep.subr.bf16.mxu0 0
      %1962 = vmatpush1.bf16.xpose.msra.mxu0 0
      %1963 = vmatprep.subr.bf16.mxu0 0
      %1964 = vmatpush1.bf16.xpose.msra.mxu0 0
      %1965 = vmatprep.mubr.bf16.mxu0 0
      %1966 = vmatmul.mubr.bf16.gmra.mrb[0].mxu0 %v1928
      %v1967 = vpop.f32.mrb[0].mxu0
      %v1968 = vadd.f32 0.0, %v1967
      %v1969 = vpop.f32.mrb[0].mxu0
      %v1970 = vpop.f32.mrb[0].mxu0
      %v1971 = vpop.f32.mrb[0].mxu0
      %1972 = vdwg.mxu0
      %1974 = vrot.lane.b32.xlu0 %v802, 112
      %v1975 = vpop.permute.xlu0 %1974
      %1977 = vrot.lane.b32.xlu0 %v810, 112
      %v1978 = vpop.permute.xlu0 %1977
      %v1980 = vsel %vm820, %v1975, 0
      %v1983 = vsel %vm820, %v1978, 0
      %1985 = vmatprep.subr.bf16.mxu0 0
      %1986 = vmatpush1.bf16.xpose.msra.mxu0 %v1983
      %1987 = vmatprep.subr.bf16.mxu0 0
      %1988 = vmatpush1.bf16.xpose.msra.mxu0 0
      %1989 = vmatprep.subr.bf16.mxu0 0
      %1990 = vmatpush1.bf16.xpose.msra.mxu0 0
      %1991 = vmatprep.subr.bf16.mxu0 0
      %1992 = vmatpush1.bf16.xpose.msra.mxu0 0
      %1993 = vmatprep.subr.bf16.mxu0 0
      %1994 = vmatpush1.bf16.xpose.msra.mxu0 0
      %1995 = vmatprep.subr.bf16.mxu0 0
      %1996 = vmatpush1.bf16.xpose.msra.mxu0 0
      %1997 = vmatprep.subr.bf16.mxu0 0
      %1998 = vmatpush1.bf16.xpose.msra.mxu0 0
      %1999 = vmatprep.subr.bf16.mxu0 0
      %2000 = vmatpush1.bf16.xpose.msra.mxu0 0
      %2001 = vmatprep.subr.bf16.mxu0 0
      %2002 = vmatpush1.bf16.xpose.msra.mxu0 0
      %2003 = vmatprep.subr.bf16.mxu0 0
      %2004 = vmatpush1.bf16.xpose.msra.mxu0 0
      %2005 = vmatprep.subr.bf16.mxu0 0
      %2006 = vmatpush1.bf16.xpose.msra.mxu0 0
      %2007 = vmatprep.subr.bf16.mxu0 0
      %2008 = vmatpush1.bf16.xpose.msra.mxu0 0
      %2009 = vmatprep.subr.bf16.mxu0 0
      %2010 = vmatpush1.bf16.xpose.msra.mxu0 0
      %2011 = vmatprep.subr.bf16.mxu0 0
      %2012 = vmatpush1.bf16.xpose.msra.mxu0 0
      %2013 = vmatprep.subr.bf16.mxu0 0
      %2014 = vmatpush1.bf16.xpose.msra.mxu0 0
      %2015 = vmatprep.subr.bf16.mxu0 0
      %2016 = vmatpush1.bf16.xpose.msra.mxu0 0
      %2017 = vmatprep.mubr.bf16.mxu0 0
      %2018 = vmatmul.mubr.bf16.gmra.mrb[0].mxu0 %v1980
      %v2019 = vpop.f32.mrb[0].mxu0
      %v2020 = vadd.f32 0.0, %v2019
      %v2021 = vpop.f32.mrb[0].mxu0
      %v2022 = vpop.f32.mrb[0].mxu0
      %v2023 = vpop.f32.mrb[0].mxu0
      %2024 = vdwg.mxu0
      %2026 = vrot.lane.b32.xlu0 %v803, 112
      %v2027 = vpop.permute.xlu0 %2026
      %2029 = vrot.lane.b32.xlu0 %v811, 112
      %v2030 = vpop.permute.xlu0 %2029
      %v2032 = vsel %vm820, %v2027, 0
      %v2035 = vsel %vm820, %v2030, 0
      %2037 = vmatprep.subr.bf16.mxu0 0
      %2038 = vmatpush1.bf16.xpose.msra.mxu0 %v2035
      %2039 = vmatprep.subr.bf16.mxu0 0
      %2040 = vmatpush1.bf16.xpose.msra.mxu0 0
      %2041 = vmatprep.subr.bf16.mxu0 0
      %2042 = vmatpush1.bf16.xpose.msra.mxu0 0
      %2043 = vmatprep.subr.bf16.mxu0 0
      %2044 = vmatpush1.bf16.xpose.msra.mxu0 0
      %2045 = vmatprep.subr.bf16.mxu0 0
      %2046 = vmatpush1.bf16.xpose.msra.mxu0 0
      %2047 = vmatprep.subr.bf16.mxu0 0
      %2048 = vmatpush1.bf16.xpose.msra.mxu0 0
      %2049 = vmatprep.subr.bf16.mxu0 0
      %2050 = vmatpush1.bf16.xpose.msra.mxu0 0
      %2051 = vmatprep.subr.bf16.mxu0 0
      %2052 = vmatpush1.bf16.xpose.msra.mxu0 0
      %2053 = vmatprep.subr.bf16.mxu0 0
      %2054 = vmatpush1.bf16.xpose.msra.mxu0 0
      %2055 = vmatprep.subr.bf16.mxu0 0
      %2056 = vmatpush1.bf16.xpose.msra.mxu0 0
      %2057 = vmatprep.subr.bf16.mxu0 0
      %2058 = vmatpush1.bf16.xpose.msra.mxu0 0
      %2059 = vmatprep.subr.bf16.mxu0 0
      %2060 = vmatpush1.bf16.xpose.msra.mxu0 0
      %2061 = vmatprep.subr.bf16.mxu0 0
      %2062 = vmatpush1.bf16.xpose.msra.mxu0 0
      %2063 = vmatprep.subr.bf16.mxu0 0
      %2064 = vmatpush1.bf16.xpose.msra.mxu0 0
      %2065 = vmatprep.subr.bf16.mxu0 0
      %2066 = vmatpush1.bf16.xpose.msra.mxu0 0
      %2067 = vmatprep.subr.bf16.mxu0 0
      %2068 = vmatpush1.bf16.xpose.msra.mxu0 0
      %2069 = vmatprep.mubr.bf16.mxu0 0
      %2070 = vmatmul.mubr.bf16.gmra.mrb[0].mxu0 %v2032
      %v2071 = vpop.f32.mrb[0].mxu0
      %v2072 = vadd.f32 0.0, %v2071
      %v2073 = vpop.f32.mrb[0].mxu0
      %v2074 = vpop.f32.mrb[0].mxu0
      %v2075 = vpop.f32.mrb[0].mxu0
      %2076 = vdwg.mxu0
      %v2077 = vsel %vm1189, %v1708, -inf
      %2078 = vmax.xlane.f32.xlu0 %v2077
      %v2079 = vpop.xlane.xlu0 %2078
      %v2080 = vsel %vm1189, %v1760, -inf
      %2081 = vmax.xlane.f32.xlu0 %v2080
      %v2082 = vpop.xlane.xlu0 %2081
      %v2083 = vsel %vm1189, %v1812, -inf
      %2084 = vmax.xlane.f32.xlu0 %v2083
      %v2085 = vpop.xlane.xlu0 %2084
      %v2086 = vsel %vm1189, %v1864, -inf
      %2087 = vmax.xlane.f32.xlu0 %v2086
      %v2088 = vpop.xlane.xlu0 %2087
      %v2089 = vsel %vm1189, %v1916, -inf
      %2090 = vmax.xlane.f32.xlu0 %v2089
      %v2091 = vpop.xlane.xlu0 %2090
      %v2092 = vsel %vm1189, %v1968, -inf
      %2093 = vmax.xlane.f32.xlu0 %v2092
      %v2094 = vpop.xlane.xlu0 %2093
      %v2095 = vsel %vm1189, %v2020, -inf
      %2096 = vmax.xlane.f32.xlu0 %v2095
      %v2097 = vpop.xlane.xlu0 %2096
      %v2098 = vsel %vm1189, %v2072, -inf
      %2099 = vmax.xlane.f32.xlu0 %v2098
      %v2100 = vpop.xlane.xlu0 %2099
      %v2101 = vsub.f32 %v1708, %v2079
      %v2102 = vsub.f32 %v1760, %v2082
      %v2103 = vsub.f32 %v1812, %v2085
      %v2104 = vsub.f32 %v1864, %v2088
      %v2105 = vsub.f32 %v1916, %v2091
      %v2106 = vsub.f32 %v1968, %v2094
      %v2107 = vsub.f32 %v2020, %v2097
      %v2108 = vsub.f32 %v2072, %v2100
      %v2109 = vmul.f32 %v2101, 1.442695
      %v2110 = vpow.pop %v2109
      %v2111 = vmul.f32 %v2102, 1.442695
      %v2112 = vpow.pop %v2111
      %v2113 = vmul.f32 %v2103, 1.442695
      %v2114 = vpow.pop %v2113
      %v2115 = vmul.f32 %v2104, 1.442695
      %v2116 = vpow.pop %v2115
      %v2117 = vmul.f32 %v2105, 1.442695
      %v2118 = vpow.pop %v2117
      %v2119 = vmul.f32 %v2106, 1.442695
      %v2120 = vpow.pop %v2119
      %v2121 = vmul.f32 %v2107, 1.442695
      %v2122 = vpow.pop %v2121
      %v2123 = vmul.f32 %v2108, 1.442695
      %v2124 = vpow.pop %v2123
      %v2125 = vsel %vm1189, %v2110, 0.0
      %2126 = vadd.xlane.f32.xlu0 %v2125
      %v2127 = vpop.xlane.xlu0 %2126
      %v2128 = vsel %vm1189, %v2112, 0.0
      %2129 = vadd.xlane.f32.xlu0 %v2128
      %v2130 = vpop.xlane.xlu0 %2129
      %v2131 = vsel %vm1189, %v2114, 0.0
      %2132 = vadd.xlane.f32.xlu0 %v2131
      %v2133 = vpop.xlane.xlu0 %2132
      %v2134 = vsel %vm1189, %v2116, 0.0
      %2135 = vadd.xlane.f32.xlu0 %v2134
      %v2136 = vpop.xlane.xlu0 %2135
      %v2137 = vsel %vm1189, %v2118, 0.0
      %2138 = vadd.xlane.f32.xlu0 %v2137
      %v2139 = vpop.xlane.xlu0 %2138
      %v2140 = vsel %vm1189, %v2120, 0.0
      %2141 = vadd.xlane.f32.xlu0 %v2140
      %v2142 = vpop.xlane.xlu0 %2141
      %v2143 = vsel %vm1189, %v2122, 0.0
      %2144 = vadd.xlane.f32.xlu0 %v2143
      %v2145 = vpop.xlane.xlu0 %2144
      %v2146 = vsel %vm1189, %v2124, 0.0
      %2147 = vadd.xlane.f32.xlu0 %v2146
      %v2148 = vpop.xlane.xlu0 %2147
      %v2149 = vrcp.pop %v2127
      %v2150 = vmul.f32 %v2110, %v2149
      %v2151 = vrcp.pop %v2130
      %v2152 = vmul.f32 %v2112, %v2151
      %v2153 = vrcp.pop %v2133
      %v2154 = vmul.f32 %v2114, %v2153
      %v2155 = vrcp.pop %v2136
      %v2156 = vmul.f32 %v2116, %v2155
      %v2157 = vrcp.pop %v2139
      %v2158 = vmul.f32 %v2118, %v2157
      %v2159 = vrcp.pop %v2142
      %v2160 = vmul.f32 %v2120, %v2159
      %v2161 = vrcp.pop %v2145
      %v2162 = vmul.f32 %v2122, %v2161
      %v2163 = vrcp.pop %v2148
      %v2164 = vmul.f32 %v2124, %v2163
      %v2165 = vpack.c.bf16 %v2150, %v2150
      %v2166 = vpack.c.bf16 %v2152, %v2152
      %v2167 = vpack.c.bf16 %v2154, %v2154
      %v2168 = vpack.c.bf16 %v2156, %v2156
      %v2169 = vpack.c.bf16 %v2158, %v2158
      %v2170 = vpack.c.bf16 %v2160, %v2160
      %v2171 = vpack.c.bf16 %v2162, %v2162
      %v2172 = vpack.c.bf16 %v2164, %v2164
      %2174 = vrot.lane.b32.xlu0 %v812, 112
      %v2175 = vpop.permute.xlu0 %2174
      %v2177 = vsel %vm1189, %v2165, 0
      %v2180 = vsel %vm1289, %v2175, 0
      %2182 = vmatprep.subr.bf16.mxu0 0
      %2183 = vmatpush1.bf16.msra.mxu0 %v2180
      %2184 = vmatprep.subr.bf16.mxu0 0
      %2185 = vmatpush1.bf16.msra.mxu0 0
      %2186 = vmatprep.subr.bf16.mxu0 0
      %2187 = vmatpush1.bf16.msra.mxu0 0
      %2188 = vmatprep.subr.bf16.mxu0 0
      %2189 = vmatpush1.bf16.msra.mxu0 0
      %2190 = vmatprep.subr.bf16.mxu0 0
      %2191 = vmatpush1.bf16.msra.mxu0 0
      %2192 = vmatprep.subr.bf16.mxu0 0
      %2193 = vmatpush1.bf16.msra.mxu0 0
      %2194 = vmatprep.subr.bf16.mxu0 0
      %2195 = vmatpush1.bf16.msra.mxu0 0
      %2196 = vmatprep.subr.bf16.mxu0 0
      %2197 = vmatpush1.bf16.msra.mxu0 0
      %2198 = vmatprep.subr.bf16.mxu0 0
      %2199 = vmatpush1.bf16.msra.mxu0 0
      %2200 = vmatprep.subr.bf16.mxu0 0
      %2201 = vmatpush1.bf16.msra.mxu0 0
      %2202 = vmatprep.subr.bf16.mxu0 0
      %2203 = vmatpush1.bf16.msra.mxu0 0
      %2204 = vmatprep.subr.bf16.mxu0 0
      %2205 = vmatpush1.bf16.msra.mxu0 0
      %2206 = vmatprep.subr.bf16.mxu0 0
      %2207 = vmatpush1.bf16.msra.mxu0 0
      %2208 = vmatprep.subr.bf16.mxu0 0
      %2209 = vmatpush1.bf16.msra.mxu0 0
      %2210 = vmatprep.subr.bf16.mxu0 0
      %2211 = vmatpush1.bf16.msra.mxu0 0
      %2212 = vmatprep.subr.bf16.mxu0 0
      %2213 = vmatpush1.bf16.msra.mxu0 0
      %2214 = vmatprep.mubr.bf16.mxu0 0
      %2215 = vmatmul.mubr.bf16.gmra.mrb[0].mxu0 %v2177
      %v2216 = vpop.f32.mrb[0].mxu0
      %v2217 = vadd.f32 0.0, %v2216
      %v2218 = vpop.f32.mrb[0].mxu0
      %v2219 = vpop.f32.mrb[0].mxu0
      %v2220 = vpop.f32.mrb[0].mxu0
      %2221 = vdwg.mxu0
      %2223 = vrot.lane.b32.xlu0 %v813, 112
      %v2224 = vpop.permute.xlu0 %2223
      %v2226 = vsel %vm1189, %v2166, 0
      %v2229 = vsel %vm1289, %v2224, 0
      %2231 = vmatprep.subr.bf16.mxu0 0
      %2232 = vmatpush1.bf16.msra.mxu0 %v2229
      %2233 = vmatprep.subr.bf16.mxu0 0
      %2234 = vmatpush1.bf16.msra.mxu0 0
      %2235 = vmatprep.subr.bf16.mxu0 0
      %2236 = vmatpush1.bf16.msra.mxu0 0
      %2237 = vmatprep.subr.bf16.mxu0 0
      %2238 = vmatpush1.bf16.msra.mxu0 0
      %2239 = vmatprep.subr.bf16.mxu0 0
      %2240 = vmatpush1.bf16.msra.mxu0 0
      %2241 = vmatprep.subr.bf16.mxu0 0
      %2242 = vmatpush1.bf16.msra.mxu0 0
      %2243 = vmatprep.subr.bf16.mxu0 0
      %2244 = vmatpush1.bf16.msra.mxu0 0
      %2245 = vmatprep.subr.bf16.mxu0 0
      %2246 = vmatpush1.bf16.msra.mxu0 0
      %2247 = vmatprep.subr.bf16.mxu0 0
      %2248 = vmatpush1.bf16.msra.mxu0 0
      %2249 = vmatprep.subr.bf16.mxu0 0
      %2250 = vmatpush1.bf16.msra.mxu0 0
      %2251 = vmatprep.subr.bf16.mxu0 0
      %2252 = vmatpush1.bf16.msra.mxu0 0
      %2253 = vmatprep.subr.bf16.mxu0 0
      %2254 = vmatpush1.bf16.msra.mxu0 0
      %2255 = vmatprep.subr.bf16.mxu0 0
      %2256 = vmatpush1.bf16.msra.mxu0 0
      %2257 = vmatprep.subr.bf16.mxu0 0
      %2258 = vmatpush1.bf16.msra.mxu0 0
      %2259 = vmatprep.subr.bf16.mxu0 0
      %2260 = vmatpush1.bf16.msra.mxu0 0
      %2261 = vmatprep.subr.bf16.mxu0 0
      %2262 = vmatpush1.bf16.msra.mxu0 0
      %2263 = vmatprep.mubr.bf16.mxu0 0
      %2264 = vmatmul.mubr.bf16.gmra.mrb[0].mxu0 %v2226
      %v2265 = vpop.f32.mrb[0].mxu0
      %v2266 = vadd.f32 0.0, %v2265
      %v2267 = vpop.f32.mrb[0].mxu0
      %v2268 = vpop.f32.mrb[0].mxu0
      %v2269 = vpop.f32.mrb[0].mxu0
      %2270 = vdwg.mxu0
      %2272 = vrot.lane.b32.xlu0 %v814, 112
      %v2273 = vpop.permute.xlu0 %2272
      %v2275 = vsel %vm1189, %v2167, 0
      %v2278 = vsel %vm1289, %v2273, 0
      %2280 = vmatprep.subr.bf16.mxu0 0
      %2281 = vmatpush1.bf16.msra.mxu0 %v2278
      %2282 = vmatprep.subr.bf16.mxu0 0
      %2283 = vmatpush1.bf16.msra.mxu0 0
      %2284 = vmatprep.subr.bf16.mxu0 0
      %2285 = vmatpush1.bf16.msra.mxu0 0
      %2286 = vmatprep.subr.bf16.mxu0 0
      %2287 = vmatpush1.bf16.msra.mxu0 0
      %2288 = vmatprep.subr.bf16.mxu0 0
      %2289 = vmatpush1.bf16.msra.mxu0 0
      %2290 = vmatprep.subr.bf16.mxu0 0
      %2291 = vmatpush1.bf16.msra.mxu0 0
      %2292 = vmatprep.subr.bf16.mxu0 0
      %2293 = vmatpush1.bf16.msra.mxu0 0
      %2294 = vmatprep.subr.bf16.mxu0 0
      %2295 = vmatpush1.bf16.msra.mxu0 0
      %2296 = vmatprep.subr.bf16.mxu0 0
      %2297 = vmatpush1.bf16.msra.mxu0 0
      %2298 = vmatprep.subr.bf16.mxu0 0
      %2299 = vmatpush1.bf16.msra.mxu0 0
      %2300 = vmatprep.subr.bf16.mxu0 0
      %2301 = vmatpush1.bf16.msra.mxu0 0
      %2302 = vmatprep.subr.bf16.mxu0 0
      %2303 = vmatpush1.bf16.msra.mxu0 0
      %2304 = vmatprep.subr.bf16.mxu0 0
      %2305 = vmatpush1.bf16.msra.mxu0 0
      %2306 = vmatprep.subr.bf16.mxu0 0
      %2307 = vmatpush1.bf16.msra.mxu0 0
      %2308 = vmatprep.subr.bf16.mxu0 0
      %2309 = vmatpush1.bf16.msra.mxu0 0
      %2310 = vmatprep.subr.bf16.mxu0 0
      %2311 = vmatpush1.bf16.msra.mxu0 0
      %2312 = vmatprep.mubr.bf16.mxu0 0
      %2313 = vmatmul.mubr.bf16.gmra.mrb[0].mxu0 %v2275
      %v2314 = vpop.f32.mrb[0].mxu0
      %v2315 = vadd.f32 0.0, %v2314
      %v2316 = vpop.f32.mrb[0].mxu0
      %v2317 = vpop.f32.mrb[0].mxu0
      %v2318 = vpop.f32.mrb[0].mxu0
      %2319 = vdwg.mxu0
      %2321 = vrot.lane.b32.xlu0 %v815, 112
      %v2322 = vpop.permute.xlu0 %2321
      %v2324 = vsel %vm1189, %v2168, 0
      %v2327 = vsel %vm1289, %v2322, 0
      %2329 = vmatprep.subr.bf16.mxu0 0
      %2330 = vmatpush1.bf16.msra.mxu0 %v2327
      %2331 = vmatprep.subr.bf16.mxu0 0
      %2332 = vmatpush1.bf16.msra.mxu0 0
      %2333 = vmatprep.subr.bf16.mxu0 0
      %2334 = vmatpush1.bf16.msra.mxu0 0
      %2335 = vmatprep.subr.bf16.mxu0 0
      %2336 = vmatpush1.bf16.msra.mxu0 0
      %2337 = vmatprep.subr.bf16.mxu0 0
      %2338 = vmatpush1.bf16.msra.mxu0 0
      %2339 = vmatprep.subr.bf16.mxu0 0
      %2340 = vmatpush1.bf16.msra.mxu0 0
      %2341 = vmatprep.subr.bf16.mxu0 0
      %2342 = vmatpush1.bf16.msra.mxu0 0
      %2343 = vmatprep.subr.bf16.mxu0 0
      %2344 = vmatpush1.bf16.msra.mxu0 0
      %2345 = vmatprep.subr.bf16.mxu0 0
      %2346 = vmatpush1.bf16.msra.mxu0 0
      %2347 = vmatprep.subr.bf16.mxu0 0
      %2348 = vmatpush1.bf16.msra.mxu0 0
      %2349 = vmatprep.subr.bf16.mxu0 0
      %2350 = vmatpush1.bf16.msra.mxu0 0
      %2351 = vmatprep.subr.bf16.mxu0 0
      %2352 = vmatpush1.bf16.msra.mxu0 0
      %2353 = vmatprep.subr.bf16.mxu0 0
      %2354 = vmatpush1.bf16.msra.mxu0 0
      %2355 = vmatprep.subr.bf16.mxu0 0
      %2356 = vmatpush1.bf16.msra.mxu0 0
      %2357 = vmatprep.subr.bf16.mxu0 0
      %2358 = vmatpush1.bf16.msra.mxu0 0
      %2359 = vmatprep.subr.bf16.mxu0 0
      %2360 = vmatpush1.bf16.msra.mxu0 0
      %2361 = vmatprep.mubr.bf16.mxu0 0
      %2362 = vmatmul.mubr.bf16.gmra.mrb[0].mxu0 %v2324
      %v2363 = vpop.f32.mrb[0].mxu0
      %v2364 = vadd.f32 0.0, %v2363
      %v2365 = vpop.f32.mrb[0].mxu0
      %v2366 = vpop.f32.mrb[0].mxu0
      %v2367 = vpop.f32.mrb[0].mxu0
      %2368 = vdwg.mxu0
      %2370 = vrot.lane.b32.xlu0 %v816, 112
      %v2371 = vpop.permute.xlu0 %2370
      %v2373 = vsel %vm1189, %v2169, 0
      %v2376 = vsel %vm1289, %v2371, 0
      %2378 = vmatprep.subr.bf16.mxu0 0
      %2379 = vmatpush1.bf16.msra.mxu0 %v2376
      %2380 = vmatprep.subr.bf16.mxu0 0
      %2381 = vmatpush1.bf16.msra.mxu0 0
      %2382 = vmatprep.subr.bf16.mxu0 0
      %2383 = vmatpush1.bf16.msra.mxu0 0
      %2384 = vmatprep.subr.bf16.mxu0 0
      %2385 = vmatpush1.bf16.msra.mxu0 0
      %2386 = vmatprep.subr.bf16.mxu0 0
      %2387 = vmatpush1.bf16.msra.mxu0 0
      %2388 = vmatprep.subr.bf16.mxu0 0
      %2389 = vmatpush1.bf16.msra.mxu0 0
      %2390 = vmatprep.subr.bf16.mxu0 0
      %2391 = vmatpush1.bf16.msra.mxu0 0
      %2392 = vmatprep.subr.bf16.mxu0 0
      %2393 = vmatpush1.bf16.msra.mxu0 0
      %2394 = vmatprep.subr.bf16.mxu0 0
      %2395 = vmatpush1.bf16.msra.mxu0 0
      %2396 = vmatprep.subr.bf16.mxu0 0
      %2397 = vmatpush1.bf16.msra.mxu0 0
      %2398 = vmatprep.subr.bf16.mxu0 0
      %2399 = vmatpush1.bf16.msra.mxu0 0
      %2400 = vmatprep.subr.bf16.mxu0 0
      %2401 = vmatpush1.bf16.msra.mxu0 0
      %2402 = vmatprep.subr.bf16.mxu0 0
      %2403 = vmatpush1.bf16.msra.mxu0 0
      %2404 = vmatprep.subr.bf16.mxu0 0
      %2405 = vmatpush1.bf16.msra.mxu0 0
      %2406 = vmatprep.subr.bf16.mxu0 0
      %2407 = vmatpush1.bf16.msra.mxu0 0
      %2408 = vmatprep.subr.bf16.mxu0 0
      %2409 = vmatpush1.bf16.msra.mxu0 0
      %2410 = vmatprep.mubr.bf16.mxu0 0
      %2411 = vmatmul.mubr.bf16.gmra.mrb[0].mxu0 %v2373
      %v2412 = vpop.f32.mrb[0].mxu0
      %v2413 = vadd.f32 0.0, %v2412
      %v2414 = vpop.f32.mrb[0].mxu0
      %v2415 = vpop.f32.mrb[0].mxu0
      %v2416 = vpop.f32.mrb[0].mxu0
      %2417 = vdwg.mxu0
      %2419 = vrot.lane.b32.xlu0 %v817, 112
      %v2420 = vpop.permute.xlu0 %2419
      %v2422 = vsel %vm1189, %v2170, 0
      %v2425 = vsel %vm1289, %v2420, 0
      %2427 = vmatprep.subr.bf16.mxu0 0
      %2428 = vmatpush1.bf16.msra.mxu0 %v2425
      %2429 = vmatprep.subr.bf16.mxu0 0
      %2430 = vmatpush1.bf16.msra.mxu0 0
      %2431 = vmatprep.subr.bf16.mxu0 0
      %2432 = vmatpush1.bf16.msra.mxu0 0
      %2433 = vmatprep.subr.bf16.mxu0 0
      %2434 = vmatpush1.bf16.msra.mxu0 0
      %2435 = vmatprep.subr.bf16.mxu0 0
      %2436 = vmatpush1.bf16.msra.mxu0 0
      %2437 = vmatprep.subr.bf16.mxu0 0
      %2438 = vmatpush1.bf16.msra.mxu0 0
      %2439 = vmatprep.subr.bf16.mxu0 0
      %2440 = vmatpush1.bf16.msra.mxu0 0
      %2441 = vmatprep.subr.bf16.mxu0 0
      %2442 = vmatpush1.bf16.msra.mxu0 0
      %2443 = vmatprep.subr.bf16.mxu0 0
      %2444 = vmatpush1.bf16.msra.mxu0 0
      %2445 = vmatprep.subr.bf16.mxu0 0
      %2446 = vmatpush1.bf16.msra.mxu0 0
      %2447 = vmatprep.subr.bf16.mxu0 0
      %2448 = vmatpush1.bf16.msra.mxu0 0
      %2449 = vmatprep.subr.bf16.mxu0 0
      %2450 = vmatpush1.bf16.msra.mxu0 0
      %2451 = vmatprep.subr.bf16.mxu0 0
      %2452 = vmatpush1.bf16.msra.mxu0 0
      %2453 = vmatprep.subr.bf16.mxu0 0
      %2454 = vmatpush1.bf16.msra.mxu0 0
      %2455 = vmatprep.subr.bf16.mxu0 0
      %2456 = vmatpush1.bf16.msra.mxu0 0
      %2457 = vmatprep.subr.bf16.mxu0 0
      %2458 = vmatpush1.bf16.msra.mxu0 0
      %2459 = vmatprep.mubr.bf16.mxu0 0
      %2460 = vmatmul.mubr.bf16.gmra.mrb[0].mxu0 %v2422
      %v2461 = vpop.f32.mrb[0].mxu0
      %v2462 = vadd.f32 0.0, %v2461
      %v2463 = vpop.f32.mrb[0].mxu0
      %v2464 = vpop.f32.mrb[0].mxu0
      %v2465 = vpop.f32.mrb[0].mxu0
      %2466 = vdwg.mxu0
      %2468 = vrot.lane.b32.xlu0 %v818, 112
      %v2469 = vpop.permute.xlu0 %2468
      %v2471 = vsel %vm1189, %v2171, 0
      %v2474 = vsel %vm1289, %v2469, 0
      %2476 = vmatprep.subr.bf16.mxu0 0
      %2477 = vmatpush1.bf16.msra.mxu0 %v2474
      %2478 = vmatprep.subr.bf16.mxu0 0
      %2479 = vmatpush1.bf16.msra.mxu0 0
      %2480 = vmatprep.subr.bf16.mxu0 0
      %2481 = vmatpush1.bf16.msra.mxu0 0
      %2482 = vmatprep.subr.bf16.mxu0 0
      %2483 = vmatpush1.bf16.msra.mxu0 0
      %2484 = vmatprep.subr.bf16.mxu0 0
      %2485 = vmatpush1.bf16.msra.mxu0 0
      %2486 = vmatprep.subr.bf16.mxu0 0
      %2487 = vmatpush1.bf16.msra.mxu0 0
      %2488 = vmatprep.subr.bf16.mxu0 0
      %2489 = vmatpush1.bf16.msra.mxu0 0
      %2490 = vmatprep.subr.bf16.mxu0 0
      %2491 = vmatpush1.bf16.msra.mxu0 0
      %2492 = vmatprep.subr.bf16.mxu0 0
      %2493 = vmatpush1.bf16.msra.mxu0 0
      %2494 = vmatprep.subr.bf16.mxu0 0
      %2495 = vmatpush1.bf16.msra.mxu0 0
      %2496 = vmatprep.subr.bf16.mxu0 0
      %2497 = vmatpush1.bf16.msra.mxu0 0
      %2498 = vmatprep.subr.bf16.mxu0 0
      %2499 = vmatpush1.bf16.msra.mxu0 0
      %2500 = vmatprep.subr.bf16.mxu0 0
      %2501 = vmatpush1.bf16.msra.mxu0 0
      %2502 = vmatprep.subr.bf16.mxu0 0
      %2503 = vmatpush1.bf16.msra.mxu0 0
      %2504 = vmatprep.subr.bf16.mxu0 0
      %2505 = vmatpush1.bf16.msra.mxu0 0
      %2506 = vmatprep.subr.bf16.mxu0 0
      %2507 = vmatpush1.bf16.msra.mxu0 0
      %2508 = vmatprep.mubr.bf16.mxu0 0
      %2509 = vmatmul.mubr.bf16.gmra.mrb[0].mxu0 %v2471
      %v2510 = vpop.f32.mrb[0].mxu0
      %v2511 = vadd.f32 0.0, %v2510
      %v2512 = vpop.f32.mrb[0].mxu0
      %v2513 = vpop.f32.mrb[0].mxu0
      %v2514 = vpop.f32.mrb[0].mxu0
      %2515 = vdwg.mxu0
      %2517 = vrot.lane.b32.xlu0 %v819, 112
      %v2518 = vpop.permute.xlu0 %2517
      %v2520 = vsel %vm1189, %v2172, 0
      %v2523 = vsel %vm1289, %v2518, 0
      %2525 = vmatprep.subr.bf16.mxu0 0
      %2526 = vmatpush1.bf16.msra.mxu0 %v2523
      %2527 = vmatprep.subr.bf16.mxu0 0
      %2528 = vmatpush1.bf16.msra.mxu0 0
      %2529 = vmatprep.subr.bf16.mxu0 0
      %2530 = vmatpush1.bf16.msra.mxu0 0
      %2531 = vmatprep.subr.bf16.mxu0 0
      %2532 = vmatpush1.bf16.msra.mxu0 0
      %2533 = vmatprep.subr.bf16.mxu0 0
      %2534 = vmatpush1.bf16.msra.mxu0 0
      %2535 = vmatprep.subr.bf16.mxu0 0
      %2536 = vmatpush1.bf16.msra.mxu0 0
      %2537 = vmatprep.subr.bf16.mxu0 0
      %2538 = vmatpush1.bf16.msra.mxu0 0
      %2539 = vmatprep.subr.bf16.mxu0 0
      %2540 = vmatpush1.bf16.msra.mxu0 0
      %2541 = vmatprep.subr.bf16.mxu0 0
      %2542 = vmatpush1.bf16.msra.mxu0 0
      %2543 = vmatprep.subr.bf16.mxu0 0
      %2544 = vmatpush1.bf16.msra.mxu0 0
      %2545 = vmatprep.subr.bf16.mxu0 0
      %2546 = vmatpush1.bf16.msra.mxu0 0
      %2547 = vmatprep.subr.bf16.mxu0 0
      %2548 = vmatpush1.bf16.msra.mxu0 0
      %2549 = vmatprep.subr.bf16.mxu0 0
      %2550 = vmatpush1.bf16.msra.mxu0 0
      %2551 = vmatprep.subr.bf16.mxu0 0
      %2552 = vmatpush1.bf16.msra.mxu0 0
      %2553 = vmatprep.subr.bf16.mxu0 0
      %2554 = vmatpush1.bf16.msra.mxu0 0
      %2555 = vmatprep.subr.bf16.mxu0 0
      %2556 = vmatpush1.bf16.msra.mxu0 0
      %2557 = vmatprep.mubr.bf16.mxu0 0
      %2558 = vmatmul.mubr.bf16.gmra.mrb[0].mxu0 %v2520
      %v2559 = vpop.f32.mrb[0].mxu0
      %v2560 = vadd.f32 0.0, %v2559
      %v2561 = vpop.f32.mrb[0].mxu0
      %v2562 = vpop.f32.mrb[0].mxu0
      %v2563 = vpop.f32.mrb[0].mxu0
      %2564 = vdwg.mxu0
      %v2565 = vld [vmem:[%s7 + $0x8] sm:$0xf]
      %v2566 = vld [vmem:[%s7 + $0xc] sm:$0xf]
      %v2567 = vpack.c.bf16 %v2266, %v2217
      %v2568 = vpack.c.bf16 %v2364, %v2315
      %v2569 = vpack.c.bf16 %v2462, %v2413
      %v2570 = vpack.c.bf16 %v2560, %v2511
      %v2573 = vunpack.c.l.b16 %v2565
      %v2574 = vunpack.c.l.b16 %v2566
      %v2575 = vpack.c.b16 %v2574, %v2573
      %v2578 = vsel %vm820, %v2567, 0
      %v2581 = vsel %vm820, %v2568, 0
      %v2584 = vsel %vm820, %v2569, 0
      %v2587 = vsel %vm820, %v2570, 0
      %2589 = vmatprep.subr.bf16.mxu0 0
      %2590 = vmatpush1.bf16.msra.mxu0 %v2575
      %2591 = vmatprep.subr.bf16.mxu0 0
      %2592 = vmatpush1.bf16.msra.mxu0 0
      %2593 = vmatprep.subr.bf16.mxu0 0
      %2594 = vmatpush1.bf16.msra.mxu0 0
      %2595 = vmatprep.subr.bf16.mxu0 0
      %2596 = vmatpush1.bf16.msra.mxu0 0
      %2597 = vmatprep.subr.bf16.mxu0 0
      %2598 = vmatpush1.bf16.msra.mxu0 0
      %2599 = vmatprep.subr.bf16.mxu0 0
      %2600 = vmatpush1.bf16.msra.mxu0 0
      %2601 = vmatprep.subr.bf16.mxu0 0
      %2602 = vmatpush1.bf16.msra.mxu0 0
      %2603 = vmatprep.subr.bf16.mxu0 0
      %2604 = vmatpush1.bf16.msra.mxu0 0
      %2605 = vmatprep.subr.bf16.mxu0 0
      %2606 = vmatpush1.bf16.msra.mxu0 0
      %2607 = vmatprep.subr.bf16.mxu0 0
      %2608 = vmatpush1.bf16.msra.mxu0 0
      %2609 = vmatprep.subr.bf16.mxu0 0
      %2610 = vmatpush1.bf16.msra.mxu0 0
      %2611 = vmatprep.subr.bf16.mxu0 0
      %2612 = vmatpush1.bf16.msra.mxu0 0
      %2613 = vmatprep.subr.bf16.mxu0 0
      %2614 = vmatpush1.bf16.msra.mxu0 0
      %2615 = vmatprep.subr.bf16.mxu0 0
      %2616 = vmatpush1.bf16.msra.mxu0 0
      %2617 = vmatprep.subr.bf16.mxu0 0
      %2618 = vmatpush1.bf16.msra.mxu0 0
      %2619 = vmatprep.subr.bf16.mxu0 0
      %2620 = vmatpush1.bf16.msra.mxu0 0
      %2621 = vmatprep.mubr.bf16.mxu0 0
      %2622 = vmatmul.mubr.bf16.gmra.mrb[0].mxu0 %v2578
      %v2623 = vpop.f32.mrb[0].mxu0
      %v2624 = vadd.f32 0.0, %v2623
      %v2625 = vpop.f32.mrb[0].mxu0
      %v2626 = vpop.f32.mrb[0].mxu0
      %v2627 = vadd.f32 0.0, %v2626
      %v2628 = vpop.f32.mrb[0].mxu0
      %2629 = vmatprep.mubr.bf16.mxu0 0
      %2630 = vmatmul.mubr.bf16.gmra.mrb[0].mxu0 %v2581
      %v2631 = vpop.f32.mrb[0].mxu0
      %v2632 = vadd.f32 0.0, %v2631
      %v2633 = vpop.f32.mrb[0].mxu0
      %v2634 = vpop.f32.mrb[0].mxu0
      %v2635 = vadd.f32 0.0, %v2634
      %v2636 = vpop.f32.mrb[0].mxu0
      %2637 = vmatprep.mubr.bf16.mxu0 0
      %2638 = vmatmul.mubr.bf16.gmra.mrb[0].mxu0 %v2584
      %v2639 = vpop.f32.mrb[0].mxu0
      %v2640 = vadd.f32 0.0, %v2639
      %v2641 = vpop.f32.mrb[0].mxu0
      %v2642 = vpop.f32.mrb[0].mxu0
      %v2643 = vadd.f32 0.0, %v2642
      %v2644 = vpop.f32.mrb[0].mxu0
      %2645 = vmatprep.mubr.bf16.mxu0 0
      %2646 = vmatmul.mubr.bf16.gmra.mrb[0].mxu0 %v2587
      %v2647 = vpop.f32.mrb[0].mxu0
      %v2648 = vadd.f32 0.0, %v2647
      %v2649 = vpop.f32.mrb[0].mxu0
      %v2650 = vpop.f32.mrb[0].mxu0
      %v2651 = vadd.f32 0.0, %v2650
      %v2652 = vpop.f32.mrb[0].mxu0
      %2653 = vdwg.mxu0
      %v2656 = vunpack.c.l.b16 %v1655
      %v2657 = vunpack.c.l.b16 %v1656
      %v2658 = vpack.c.b16 %v2657, %v2656
      %v2661 = vsel %vm820, %v1657, 0
      %v2664 = vsel %vm820, %v1658, 0
      %v2667 = vsel %vm820, %v1659, 0
      %v2670 = vsel %vm820, %v1660, 0
      %2672 = vmatprep.subr.bf16.mxu0 0
      %2673 = vmatpush1.bf16.msra.mxu0 %v2658
      %2674 = vmatprep.subr.bf16.mxu0 0
      %2675 = vmatpush1.bf16.msra.mxu0 0
      %2676 = vmatprep.subr.bf16.mxu0 0
      %2677 = vmatpush1.bf16.msra.mxu0 0
      %2678 = vmatprep.subr.bf16.mxu0 0
      %2679 = vmatpush1.bf16.msra.mxu0 0
      %2680 = vmatprep.subr.bf16.mxu0 0
      %2681 = vmatpush1.bf16.msra.mxu0 0
      %2682 = vmatprep.subr.bf16.mxu0 0
      %2683 = vmatpush1.bf16.msra.mxu0 0
      %2684 = vmatprep.subr.bf16.mxu0 0
      %2685 = vmatpush1.bf16.msra.mxu0 0
      %2686 = vmatprep.subr.bf16.mxu0 0
      %2687 = vmatpush1.bf16.msra.mxu0 0
      %2688 = vmatprep.subr.bf16.mxu0 0
      %2689 = vmatpush1.bf16.msra.mxu0 0
      %2690 = vmatprep.subr.bf16.mxu0 0
      %2691 = vmatpush1.bf16.msra.mxu0 0
      %2692 = vmatprep.subr.bf16.mxu0 0
      %2693 = vmatpush1.bf16.msra.mxu0 0
      %2694 = vmatprep.subr.bf16.mxu0 0
      %2695 = vmatpush1.bf16.msra.mxu0 0
      %2696 = vmatprep.subr.bf16.mxu0 0
      %2697 = vmatpush1.bf16.msra.mxu0 0
      %2698 = vmatprep.subr.bf16.mxu0 0
      %2699 = vmatpush1.bf16.msra.mxu0 0
      %2700 = vmatprep.subr.bf16.mxu0 0
      %2701 = vmatpush1.bf16.msra.mxu0 0
      %2702 = vmatprep.subr.bf16.mxu0 0
      %2703 = vmatpush1.bf16.msra.mxu0 0
      %2704 = vmatprep.mubr.bf16.mxu0 0
      %2705 = vmatmul.mubr.bf16.gmra.mrb[0].mxu0 %v2661
      %v2706 = vpop.f32.mrb[0].mxu0
      %v2707 = vadd.f32 %v2624, %v2706
      %v2708 = vpop.f32.mrb[0].mxu0
      %v2709 = vpop.f32.mrb[0].mxu0
      %v2710 = vadd.f32 %v2627, %v2709
      %v2711 = vpop.f32.mrb[0].mxu0
      %2712 = vmatprep.mubr.bf16.mxu0 0
      %2713 = vmatmul.mubr.bf16.gmra.mrb[0].mxu0 %v2664
      %v2714 = vpop.f32.mrb[0].mxu0
      %v2715 = vadd.f32 %v2632, %v2714
      %v2716 = vpop.f32.mrb[0].mxu0
      %v2717 = vpop.f32.mrb[0].mxu0
      %v2718 = vadd.f32 %v2635, %v2717
      %v2719 = vpop.f32.mrb[0].mxu0
      %2720 = vmatprep.mubr.bf16.mxu0 0
      %2721 = vmatmul.mubr.bf16.gmra.mrb[0].mxu0 %v2667
      %v2722 = vpop.f32.mrb[0].mxu0
      %v2723 = vadd.f32 %v2640, %v2722
      %v2724 = vpop.f32.mrb[0].mxu0
      %v2725 = vpop.f32.mrb[0].mxu0
      %v2726 = vadd.f32 %v2643, %v2725
      %v2727 = vpop.f32.mrb[0].mxu0
      %2728 = vmatprep.mubr.bf16.mxu0 0
      %2729 = vmatmul.mubr.bf16.gmra.mrb[0].mxu0 %v2670
      %v2730 = vpop.f32.mrb[0].mxu0
      %v2731 = vadd.f32 %v2648, %v2730
      %v2732 = vpop.f32.mrb[0].mxu0
      %v2733 = vpop.f32.mrb[0].mxu0
      %v2734 = vadd.f32 %v2651, %v2733
      %v2735 = vpop.f32.mrb[0].mxu0
      %2736 = vdwg.mxu0
      %v2737 = vld [vmem:[%s8] sm:$0x1]
      %v2739 = vlaneseq
      %v2740 = vshrl.u32 %v2739, 7
      %v2741 = vsub.s32 0, %v2740
      %v2742 = vrot.slane %v2737, %v2741
      %v2744 = vadd.f32 %v2707, %v2742
      %v2745 = vadd.f32 %v2710, %v2742
      %v2746 = vadd.f32 %v2715, %v2742
      %v2747 = vadd.f32 %v2718, %v2742
      %v2748 = vadd.f32 %v2723, %v2742
      %v2749 = vadd.f32 %v2726, %v2742
      %v2750 = vadd.f32 %v2731, %v2742
      %v2751 = vadd.f32 %v2734, %v2742
      %v2752 = vadd.f32 %v2744, %v499
      %v2753 = vadd.f32 %v2745, %v500
      %v2754 = vadd.f32 %v2746, %v501
      %v2755 = vadd.f32 %v2747, %v502
      %v2756 = vadd.f32 %v2748, %v503
      %v2757 = vadd.f32 %v2749, %v504
      %v2758 = vadd.f32 %v2750, %v505
      %v2759 = vadd.f32 %v2751, %v506
      %v2760 = vsel %vm534, %v2752, 0.0
      %2761 = vadd.xlane.f32.xlu0 %v2760
      %v2762 = vpop.xlane.xlu0 %2761
      %v2763 = vsel %vm534, %v2753, 0.0
      %2764 = vadd.xlane.f32.xlu0 %v2763
      %v2765 = vpop.xlane.xlu0 %2764
      %v2766 = vsel %vm534, %v2754, 0.0
      %2767 = vadd.xlane.f32.xlu0 %v2766
      %v2768 = vpop.xlane.xlu0 %2767
      %v2769 = vsel %vm534, %v2755, 0.0
      %2770 = vadd.xlane.f32.xlu0 %v2769
      %v2771 = vpop.xlane.xlu0 %2770
      %v2772 = vsel %vm534, %v2756, 0.0
      %2773 = vadd.xlane.f32.xlu0 %v2772
      %v2774 = vpop.xlane.xlu0 %2773
      %v2775 = vsel %vm534, %v2757, 0.0
      %2776 = vadd.xlane.f32.xlu0 %v2775
      %v2777 = vpop.xlane.xlu0 %2776
      %v2778 = vsel %vm534, %v2758, 0.0
      %2779 = vadd.xlane.f32.xlu0 %v2778
      %v2780 = vpop.xlane.xlu0 %2779
      %v2781 = vsel %vm534, %v2759, 0.0
      %2782 = vadd.xlane.f32.xlu0 %v2781
      %v2783 = vpop.xlane.xlu0 %2782
      %v2784 = vrcp.pop 32.0
      %v2785 = vmul.f32 %v2762, %v2784
      %v2786 = vmul.f32 %v2765, %v2784
      %v2787 = vmul.f32 %v2768, %v2784
      %v2788 = vmul.f32 %v2771, %v2784
      %v2789 = vmul.f32 %v2774, %v2784
      %v2790 = vmul.f32 %v2777, %v2784
      %v2791 = vmul.f32 %v2780, %v2784
      %v2792 = vmul.f32 %v2783, %v2784
      %v2793 = vsub.f32 %v2752, %v2785
      %v2794 = vsub.f32 %v2753, %v2786
      %v2795 = vsub.f32 %v2754, %v2787
      %v2796 = vsub.f32 %v2755, %v2788
      %v2797 = vsub.f32 %v2756, %v2789
      %v2798 = vsub.f32 %v2757, %v2790
      %v2799 = vsub.f32 %v2758, %v2791
      %v2800 = vsub.f32 %v2759, %v2792
      %v2801 = vmul.f32 %v2793, %v2793
      %v2802 = vmul.f32 %v2794, %v2794
      %v2803 = vmul.f32 %v2795, %v2795
      %v2804 = vmul.f32 %v2796, %v2796
      %v2805 = vmul.f32 %v2797, %v2797
      %v2806 = vmul.f32 %v2798, %v2798
      %v2807 = vmul.f32 %v2799, %v2799
      %v2808 = vmul.f32 %v2800, %v2800
      %v2809 = vsel %vm534, %v2801, 0.0
      %2810 = vadd.xlane.f32.xlu0 %v2809
      %v2811 = vpop.xlane.xlu0 %2810
      %v2812 = vsel %vm534, %v2802, 0.0
      %2813 = vadd.xlane.f32.xlu0 %v2812
      %v2814 = vpop.xlane.xlu0 %2813
      %v2815 = vsel %vm534, %v2803, 0.0
      %2816 = vadd.xlane.f32.xlu0 %v2815
      %v2817 = vpop.xlane.xlu0 %2816
      %v2818 = vsel %vm534, %v2804, 0.0
      %2819 = vadd.xlane.f32.xlu0 %v2818
      %v2820 = vpop.xlane.xlu0 %2819
      %v2821 = vsel %vm534, %v2805, 0.0
      %2822 = vadd.xlane.f32.xlu0 %v2821
      %v2823 = vpop.xlane.xlu0 %2822
      %v2824 = vsel %vm534, %v2806, 0.0
      %2825 = vadd.xlane.f32.xlu0 %v2824
      %v2826 = vpop.xlane.xlu0 %2825
      %v2827 = vsel %vm534, %v2807, 0.0
      %2828 = vadd.xlane.f32.xlu0 %v2827
      %v2829 = vpop.xlane.xlu0 %2828
      %v2830 = vsel %vm534, %v2808, 0.0
      %2831 = vadd.xlane.f32.xlu0 %v2830
      %v2832 = vpop.xlane.xlu0 %2831
      %v2833 = vmul.f32 %v2811, %v2784
      %v2834 = vmul.f32 %v2814, %v2784
      %v2835 = vmul.f32 %v2817, %v2784
      %v2836 = vmul.f32 %v2820, %v2784
      %v2837 = vmul.f32 %v2823, %v2784
      %v2838 = vmul.f32 %v2826, %v2784
      %v2839 = vmul.f32 %v2829, %v2784
      %v2840 = vmul.f32 %v2832, %v2784
      %v2841 = vadd.f32 %v2833, 1e-05
      %v2842 = vadd.f32 %v2834, 1e-05
      %v2843 = vadd.f32 %v2835, 1e-05
      %v2844 = vadd.f32 %v2836, 1e-05
      %v2845 = vadd.f32 %v2837, 1e-05
      %v2846 = vadd.f32 %v2838, 1e-05
      %v2847 = vadd.f32 %v2839, 1e-05
      %v2848 = vadd.f32 %v2840, 1e-05
      %v2849 = vrsqrt.pop %v2841
      %v2850 = vrsqrt.pop %v2842
      %v2851 = vrsqrt.pop %v2843
      %v2852 = vrsqrt.pop %v2844
      %v2853 = vrsqrt.pop %v2845
      %v2854 = vrsqrt.pop %v2846
      %v2855 = vrsqrt.pop %v2847
      %v2856 = vrsqrt.pop %v2848
      %v2857 = vmul.f32 %v2793, %v2849
      %v2858 = vmul.f32 %v2794, %v2850
      %v2859 = vmul.f32 %v2795, %v2851
      %v2860 = vmul.f32 %v2796, %v2852
      %v2861 = vmul.f32 %v2797, %v2853
      %v2862 = vmul.f32 %v2798, %v2854
      %v2863 = vmul.f32 %v2799, %v2855
      %v2864 = vmul.f32 %v2800, %v2856
      %v2865 = vld [vmem:[%s9] sm:$0x1]
      %v2867 = vlaneseq
      %v2868 = vshrl.u32 %v2867, 7
      %v2869 = vsub.s32 0, %v2868
      %v2870 = vrot.slane %v2865, %v2869
      %v2872 = vmul.f32 %v2857, %v2870
      %v2873 = vmul.f32 %v2858, %v2870
      %v2874 = vmul.f32 %v2859, %v2870
      %v2875 = vmul.f32 %v2860, %v2870
      %v2876 = vmul.f32 %v2861, %v2870
      %v2877 = vmul.f32 %v2862, %v2870
      %v2878 = vmul.f32 %v2863, %v2870
      %v2879 = vmul.f32 %v2864, %v2870
      %v2880 = vld [vmem:[%s10] sm:$0x1]
      %v2882 = vlaneseq
      %v2883 = vshrl.u32 %v2882, 7
      %v2884 = vsub.s32 0, %v2883
      %v2885 = vrot.slane %v2880, %v2884
      %v2887 = vadd.f32 %v2872, %v2885
      %v2888 = vadd.f32 %v2873, %v2885
      %v2889 = vadd.f32 %v2874, %v2885
      %v2890 = vadd.f32 %v2875, %v2885
      %v2891 = vadd.f32 %v2876, %v2885
      %v2892 = vadd.f32 %v2877, %v2885
      %v2893 = vadd.f32 %v2878, %v2885
      %v2894 = vadd.f32 %v2879, %v2885
      %v2895 = vpack.c.bf16 %v2888, %v2887
      %v2896 = vpack.c.bf16 %v2890, %v2889
      %v2897 = vpack.c.bf16 %v2892, %v2891
      %v2898 = vpack.c.bf16 %v2894, %v2893
      %v2899 = vld [vmem:[%s11] sm:$0xf]
      %v2900 = vld [vmem:[%s11 + $0x4] sm:$0xf]
      %v2901 = vld [vmem:[%s11 + $0x8] sm:$0xf]
      %v2902 = vld [vmem:[%s11 + $0xc] sm:$0xf]
      %v2903 = vld [vmem:[%s12] sm:$0x1]
      %v2905 = vlaneseq
      %v2906 = vshrl.u32 %v2905, 7
      %v2907 = vsub.s32 0, %v2906
      %v2908 = vrot.slane %v2903, %v2907
      %v2914 = vunpack.c.l.b16 %v2899
      %v2915 = vunpack.c.l.b16 %v2900
      %v2916 = vunpack.c.l.b16 %v2901
      %v2917 = vunpack.c.l.b16 %v2902
      %v2918 = vpack.c.b16 %v2915, %v2914
      %v2919 = vpack.c.b16 %v2917, %v2916
      %v2923 = vsel %vm534, %v2895, 0
      %v2926 = vsel %vm534, %v2896, 0
      %v2929 = vsel %vm534, %v2897, 0
      %v2932 = vsel %vm534, %v2898, 0
      %2934 = vmatprep.subr.bf16.mxu0 0
      %2935 = vmatpush1.bf16.msra.mxu0 %v2918
      %2936 = vmatprep.subr.bf16.mxu0 0
      %2937 = vmatpush1.bf16.msra.mxu0 %v2919
      %2938 = vmatprep.subr.bf16.mxu0 0
      %2939 = vmatpush1.bf16.msra.mxu0 0
      %2940 = vmatprep.subr.bf16.mxu0 0
      %2941 = vmatpush1.bf16.msra.mxu0 0
      %2942 = vmatprep.subr.bf16.mxu0 0
      %2943 = vmatpush1.bf16.msra.mxu0 0
      %2944 = vmatprep.subr.bf16.mxu0 0
      %2945 = vmatpush1.bf16.msra.mxu0 0
      %2946 = vmatprep.subr.bf16.mxu0 0
      %2947 = vmatpush1.bf16.msra.mxu0 0
      %2948 = vmatprep.subr.bf16.mxu0 0
      %2949 = vmatpush1.bf16.msra.mxu0 0
      %2950 = vmatprep.subr.bf16.mxu0 0
      %2951 = vmatpush1.bf16.msra.mxu0 0
      %2952 = vmatprep.subr.bf16.mxu0 0
      %2953 = vmatpush1.bf16.msra.mxu0 0
      %2954 = vmatprep.subr.bf16.mxu0 0
      %2955 = vmatpush1.bf16.msra.mxu0 0
      %2956 = vmatprep.subr.bf16.mxu0 0
      %2957 = vmatpush1.bf16.msra.mxu0 0
      %2958 = vmatprep.subr.bf16.mxu0 0
      %2959 = vmatpush1.bf16.msra.mxu0 0
      %2960 = vmatprep.subr.bf16.mxu0 0
      %2961 = vmatpush1.bf16.msra.mxu0 0
      %2962 = vmatprep.subr.bf16.mxu0 0
      %2963 = vmatpush1.bf16.msra.mxu0 0
      %2964 = vmatprep.subr.bf16.mxu0 0
      %2965 = vmatpush1.bf16.msra.mxu0 0
      %2966 = vmatprep.mubr.bf16.mxu0 0
      %2967 = vmatmul.mubr.bf16.gmra.mrb[0].mxu0 %v2923
      %v2968 = vpop.f32.mrb[0].mxu0
      %v2969 = vadd.f32 %v2908, %v2968
      %v2970 = vpop.f32.mrb[0].mxu0
      %v2971 = vpop.f32.mrb[0].mxu0
      %v2972 = vadd.f32 %v2908, %v2971
      %v2973 = vpop.f32.mrb[0].mxu0
      %2974 = vmatprep.mubr.bf16.mxu0 0
      %2975 = vmatmul.mubr.bf16.gmra.mrb[0].mxu0 %v2926
      %v2976 = vpop.f32.mrb[0].mxu0
      %v2977 = vadd.f32 %v2908, %v2976
      %v2978 = vpop.f32.mrb[0].mxu0
      %v2979 = vpop.f32.mrb[0].mxu0
      %v2980 = vadd.f32 %v2908, %v2979
      %v2981 = vpop.f32.mrb[0].mxu0
      %2982 = vmatprep.mubr.bf16.mxu0 0
      %2983 = vmatmul.mubr.bf16.gmra.mrb[0].mxu0 %v2929
      %v2984 = vpop.f32.mrb[0].mxu0
      %v2985 = vadd.f32 %v2908, %v2984
      %v2986 = vpop.f32.mrb[0].mxu0
      %v2987 = vpop.f32.mrb[0].mxu0
      %v2988 = vadd.f32 %v2908, %v2987
      %v2989 = vpop.f32.mrb[0].mxu0
      %2990 = vmatprep.mubr.bf16.mxu0 0
      %2991 = vmatmul.mubr.bf16.gmra.mrb[0].mxu0 %v2932
      %v2992 = vpop.f32.mrb[0].mxu0
      %v2993 = vadd.f32 %v2908, %v2992
      %v2994 = vpop.f32.mrb[0].mxu0
      %v2995 = vpop.f32.mrb[0].mxu0
      %v2996 = vadd.f32 %v2908, %v2995
      %v2997 = vpop.f32.mrb[0].mxu0
      %2998 = vdwg.mxu0
      %v2999 = vmax.f32 %v2969, 0.0
      %v3000 = vmax.f32 %v2972, 0.0
      %v3001 = vmax.f32 %v2977, 0.0
      %v3002 = vmax.f32 %v2980, 0.0
      %v3003 = vmax.f32 %v2985, 0.0
      %v3004 = vmax.f32 %v2988, 0.0
      %v3005 = vmax.f32 %v2993, 0.0
      %v3006 = vmax.f32 %v2996, 0.0
      %v3007 = vadd.f32 %v2999, %v2887
      %v3008 = vadd.f32 %v3000, %v2888
      %v3009 = vadd.f32 %v3001, %v2889
      %v3010 = vadd.f32 %v3002, %v2890
      %v3011 = vadd.f32 %v3003, %v2891
      %v3012 = vadd.f32 %v3004, %v2892
      %v3013 = vadd.f32 %v3005, %v2893
      %v3014 = vadd.f32 %v3006, %v2894
      %v3015 = vsel %vm534, %v3007, 0.0
      %3016 = vadd.xlane.f32.xlu0 %v3015
      %v3017 = vpop.xlane.xlu0 %3016
      %v3018 = vsel %vm534, %v3008, 0.0
      %3019 = vadd.xlane.f32.xlu0 %v3018
      %v3020 = vpop.xlane.xlu0 %3019
      %v3021 = vsel %vm534, %v3009, 0.0
      %3022 = vadd.xlane.f32.xlu0 %v3021
      %v3023 = vpop.xlane.xlu0 %3022
      %v3024 = vsel %vm534, %v3010, 0.0
      %3025 = vadd.xlane.f32.xlu0 %v3024
      %v3026 = vpop.xlane.xlu0 %3025
      %v3027 = vsel %vm534, %v3011, 0.0
      %3028 = vadd.xlane.f32.xlu0 %v3027
      %v3029 = vpop.xlane.xlu0 %3028
      %v3030 = vsel %vm534, %v3012, 0.0
      %3031 = vadd.xlane.f32.xlu0 %v3030
      %v3032 = vpop.xlane.xlu0 %3031
      %v3033 = vsel %vm534, %v3013, 0.0
      %3034 = vadd.xlane.f32.xlu0 %v3033
      %v3035 = vpop.xlane.xlu0 %3034
      %v3036 = vsel %vm534, %v3014, 0.0
      %3037 = vadd.xlane.f32.xlu0 %v3036
      %v3038 = vpop.xlane.xlu0 %3037
      %v3039 = vmul.f32 %v3017, %v2784
      %v3040 = vmul.f32 %v3020, %v2784
      %v3041 = vmul.f32 %v3023, %v2784
      %v3042 = vmul.f32 %v3026, %v2784
      %v3043 = vmul.f32 %v3029, %v2784
      %v3044 = vmul.f32 %v3032, %v2784
      %v3045 = vmul.f32 %v3035, %v2784
      %v3046 = vmul.f32 %v3038, %v2784
      %v3047 = vsub.f32 %v3007, %v3039
      %v3048 = vsub.f32 %v3008, %v3040
      %v3049 = vsub.f32 %v3009, %v3041
      %v3050 = vsub.f32 %v3010, %v3042
      %v3051 = vsub.f32 %v3011, %v3043
      %v3052 = vsub.f32 %v3012, %v3044
      %v3053 = vsub.f32 %v3013, %v3045
      %v3054 = vsub.f32 %v3014, %v3046
      %v3055 = vmul.f32 %v3047, %v3047
      %v3056 = vmul.f32 %v3048, %v3048
      %v3057 = vmul.f32 %v3049, %v3049
      %v3058 = vmul.f32 %v3050, %v3050
      %v3059 = vmul.f32 %v3051, %v3051
      %v3060 = vmul.f32 %v3052, %v3052
      %v3061 = vmul.f32 %v3053, %v3053
      %v3062 = vmul.f32 %v3054, %v3054
      %v3063 = vsel %vm534, %v3055, 0.0
      %3064 = vadd.xlane.f32.xlu0 %v3063
      %v3065 = vpop.xlane.xlu0 %3064
      %v3066 = vsel %vm534, %v3056, 0.0
      %3067 = vadd.xlane.f32.xlu0 %v3066
      %v3068 = vpop.xlane.xlu0 %3067
      %v3069 = vsel %vm534, %v3057, 0.0
      %3070 = vadd.xlane.f32.xlu0 %v3069
      %v3071 = vpop.xlane.xlu0 %3070
      %v3072 = vsel %vm534, %v3058, 0.0
      %3073 = vadd.xlane.f32.xlu0 %v3072
      %v3074 = vpop.xlane.xlu0 %3073
      %v3075 = vsel %vm534, %v3059, 0.0
      %3076 = vadd.xlane.f32.xlu0 %v3075
      %v3077 = vpop.xlane.xlu0 %3076
      %v3078 = vsel %vm534, %v3060, 0.0
      %3079 = vadd.xlane.f32.xlu0 %v3078
      %v3080 = vpop.xlane.xlu0 %3079
      %v3081 = vsel %vm534, %v3061, 0.0
      %3082 = vadd.xlane.f32.xlu0 %v3081
      %v3083 = vpop.xlane.xlu0 %3082
      %v3084 = vsel %vm534, %v3062, 0.0
      %3085 = vadd.xlane.f32.xlu0 %v3084
      %v3086 = vpop.xlane.xlu0 %3085
      %v3087 = vmul.f32 %v3065, %v2784
      %v3088 = vmul.f32 %v3068, %v2784
      %v3089 = vmul.f32 %v3071, %v2784
      %v3090 = vmul.f32 %v3074, %v2784
      %v3091 = vmul.f32 %v3077, %v2784
      %v3092 = vmul.f32 %v3080, %v2784
      %v3093 = vmul.f32 %v3083, %v2784
      %v3094 = vmul.f32 %v3086, %v2784
      %v3095 = vadd.f32 %v3087, 1e-05
      %v3096 = vadd.f32 %v3088, 1e-05
      %v3097 = vadd.f32 %v3089, 1e-05
      %v3098 = vadd.f32 %v3090, 1e-05
      %v3099 = vadd.f32 %v3091, 1e-05
      %v3100 = vadd.f32 %v3092, 1e-05
      %v3101 = vadd.f32 %v3093, 1e-05
      %v3102 = vadd.f32 %v3094, 1e-05
      %v3103 = vrsqrt.pop %v3095
      %v3104 = vrsqrt.pop %v3096
      %v3105 = vrsqrt.pop %v3097
      %v3106 = vrsqrt.pop %v3098
      %v3107 = vrsqrt.pop %v3099
      %v3108 = vrsqrt.pop %v3100
      %v3109 = vrsqrt.pop %v3101
      %v3110 = vrsqrt.pop %v3102
      %v3111 = vmul.f32 %v3047, %v3103
      %v3112 = vmul.f32 %v3048, %v3104
      %v3113 = vmul.f32 %v3049, %v3105
      %v3114 = vmul.f32 %v3050, %v3106
      %v3115 = vmul.f32 %v3051, %v3107
      %v3116 = vmul.f32 %v3052, %v3108
      %v3117 = vmul.f32 %v3053, %v3109
      %v3118 = vmul.f32 %v3054, %v3110
      %v3119 = vld [vmem:[%s13] sm:$0x1]
      %v3121 = vlaneseq
      %v3122 = vshrl.u32 %v3121, 7
      %v3123 = vsub.s32 0, %v3122
      %v3124 = vrot.slane %v3119, %v3123
      %v3126 = vmul.f32 %v3111, %v3124
      %v3127 = vmul.f32 %v3112, %v3124
      %v3128 = vmul.f32 %v3113, %v3124
      %v3129 = vmul.f32 %v3114, %v3124
      %v3130 = vmul.f32 %v3115, %v3124
      %v3131 = vmul.f32 %v3116, %v3124
      %v3132 = vmul.f32 %v3117, %v3124
      %v3133 = vmul.f32 %v3118, %v3124
      %v3134 = vld [vmem:[%s14] sm:$0x1]
      %v3136 = vlaneseq
      %v3137 = vshrl.u32 %v3136, 7
      %v3138 = vsub.s32 0, %v3137
      %v3139 = vrot.slane %v3134, %v3138
      %v3141 = vadd.f32 %v3126, %v3139
      %v3142 = vadd.f32 %v3127, %v3139
      %v3143 = vadd.f32 %v3128, %v3139
      %v3144 = vadd.f32 %v3129, %v3139
      %v3145 = vadd.f32 %v3130, %v3139
      %v3146 = vadd.f32 %v3131, %v3139
      %v3147 = vadd.f32 %v3132, %v3139
      %v3148 = vadd.f32 %v3133, %v3139
      %3149 = vst.msk [vmem:[%s496] sm:$0xff] %vm534, %v3141
      %3150 = vst.msk [vmem:[%s496 + $0x8] sm:$0xff] %vm534, %v3142
      %3151 = vst.msk [vmem:[%s496 + $0x10] sm:$0xff] %vm534, %v3143
      %3152 = vst.msk [vmem:[%s496 + $0x18] sm:$0xff] %vm534, %v3144
      %3153 = vst.msk [vmem:[%s496 + $0x20] sm:$0xff] %vm534, %v3145
      %3154 = vst.msk [vmem:[%s496 + $0x28] sm:$0xff] %vm534, %v3146
      %3155 = vst.msk [vmem:[%s496 + $0x30] sm:$0xff] %vm534, %v3147
      %3156 = vst.msk [vmem:[%s496 + $0x38] sm:$0xff] %vm534, %v3148
      %s3157 = smul.u32 8, %s26
      %p3158 = scmp.lt.s32.totalorder %s3157, 15
      %s3159 = scalar_select %p3158, %s3157, 15
      %s3160 = smul.addr %s3159, 8
      %s3161 = scalar_lea.vmem %s15, %s3160
      // Predicated region
      $region81: #{tpu_custom_call.1} parent=79 // pred_check
        %p3162 = pneg %p364
      $region82: #{tpu_custom_call.1} parent=79 // pred_check_branch
        %3164 = sbr.rel (%p3162) target = $region84
      $region83: #{tpu_custom_call.1} parent=79 // pred_region
        %s3165 = smul.u32 8, %s26
      $region84: #{tpu_custom_call.1} parent=79 // pred_fallthru
        _
    $region80: #{tpu_custom_call.1} parent=5 // pred_fallthru
      _
    %p3166 = scmp.le.s32.totalorder 2, %s21
    // Predicated region
    $region85: #{tpu_custom_call.1} parent=5 // pred_check
      %p3167 = pneg %p3166
    $region86: #{tpu_custom_call.1} parent=5 // pred_check_branch
      %3169 = sbr.rel (%p3167) target = $region88
    $region87: #{tpu_custom_call.1} parent=5 // pred_region
      %s3170 = ssub.s32 %s21, 2
      // Predicated region
      $region89: #{tpu_custom_call.1} parent=87 // pred_check
        %p3171 = pneg %p370
      $region90: #{tpu_custom_call.1} parent=87 // pred_check_branch
        %3173 = sbr.rel (%p3171) target = $region92
      $region91: #{tpu_custom_call.1} parent=87 // pred_region
        %s3174 = smul.u32 8, %s27
        %p3175 = scmp.lt.s32.totalorder %s3174, 15
        %s3176 = scalar_select %p3175, %s3174, 15
        %s3177 = smul.addr %s3176, 8
        %s3178 = scalar_lea.vmem %s15, %s3177
      $region92: #{tpu_custom_call.1} parent=87 // pred_fallthru
        _
    $region88: #{tpu_custom_call.1} parent=5 // pred_fallthru
      _
  $region6: #{tpu_custom_call.1} parent=0 // loop_footer
    %s25 = sadd.s32 1, %s21
  $region7: #{tpu_custom_call.1} parent=0 // loop_footer_branch
    %20 = sbr.rel target = $region3
  $region8: #{tpu_custom_call.1} parent=0 // loop_exit
    _

</llo_original>
